<compile_context>
chip_gen: v7x
topology: tpu7x:2x2x1
jax: 0.10.0
libtpu: 0.0.40
codegen_flags: <defaults>
</compile_context>

<pallas_src>
import functools

import jax
import jax.numpy as jnp
from jax import lax
from jax.experimental import pallas as pl
from jax.experimental.pallas import tpu as pltpu


HIDDEN = 2048


def _default_n_split():
    """Use 2 TensorCores only on v7x-like chips (2 TC/chip); 1 elsewhere."""
    try:
        kind = jax.devices()[0].device_kind.lower()
    except Exception:
        return 1
    return 2 if "v7" in kind else 1


def _deq_bf16(q_i8):
    # int8 -> bf16 via f32 (both converts are guaranteed Mosaic lowerings).
    # Values in [-127, 127] are exactly representable in bf16.
    return q_i8.astype(jnp.float32).astype(jnp.bfloat16)


def _fused_mlp_kernel(x_ref, w1_ref, s1_ref, b1_ref,
                      w2_ref, s2_ref, b2_ref, w3_ref,
                      o_ref, h2_acc_ref):
    """Grid is (j, k): j = output-column split (parallel, dual-TC on v7x),
    k = hidden-dim reduction slice (arbitrary / sequential).

    Per step (j, k):
        h1_k      = relu((x @ deq(w1[:, k_tile])) * s1[k_tile] + b1[k_tile])   (M, tk)
        part      = (h1_k @ deq(w2[k_tile, j_cols])) * s2[j_cols]              (M, Hn)
        h2_acc    = part            (k == 0)
        h2_acc   += part            (k  > 0)
    Epilogue at k == last (per j):
        o[j]      = (h2_acc + b2[j_cols]) @ w3t[:, j_cols]^T                   (M, Dout)
    b3 is added in the wrapper after summing the j partials.
    """
    k = pl.program_id(1)

    # ---- Layer 1 slice: (M, Din)bf16 @ (Din, tk)bf16 -> f32 on the MXU. ----
    h1 = jnp.dot(x_ref[...], _deq_bf16(w1_ref[...]),
                 preferred_element_type=jnp.float32)
    h1 = jnp.maximum(h1 * s1_ref[...] + b1_ref[...], 0.0)

    # ---- Layer 2 partial: (M, tk) @ (tk, Hn) -> f32, scaled per out column. --
    part = jnp.dot(h1.astype(jnp.bfloat16), _deq_bf16(w2_ref[...]),
                   preferred_element_type=jnp.float32) * s2_ref[...]

    @pl.when(k == 0)
    def _():
        h2_acc_ref[...] = part          # direct write: no zero-fill + RMW

    @pl.when(k > 0)
    def _():
        h2_acc_ref[...] += part

    # ---- Epilogue: this core's slice of layer 3 -> partial (M, Dout). -------
    @pl.when(k == pl.num_programs(1) - 1)
    def _():
        h2 = (h2_acc_ref[...] + b2_ref[...]).astype(jnp.bfloat16)
        # w3 stored transposed (Dout, Hn): contract the last dims (lane-dense).
        y = lax.dot_general(h2, w3_ref[...],
                            dimension_numbers=(((1,), (1,)), ((), ())),
                            preferred_element_type=jnp.float32)
        o_ref[0] = y.astype(o_ref.dtype)


def fused_mlp(x, w1_q, w1_s, b1, w2_q, w2_s, b2, w3t, b3, *,
              tk=1024, n_split=None):
    """y = ((relu(x@w1+b1)) @ w2 + b2) @ w3 + b3, single pallas_call.

    w1_q/w2_q are int8 with per-output-column f32 scales w1_s/w2_s
    (dequantized weight = q * scale).  w3t is the bf16 transpose (Dout, H).
    """
    if n_split is None:
        n_split = _default_n_split()

    M, D_in = x.shape
    H = w2_q.shape[0]
    D_out = w3t.shape[0]
    assert H == HIDDEN and w1_q.shape == (D_in, H) and w2_q.shape == (H, H)
    assert w3t.shape == (D_out, H)
    assert b1.shape == (1, H) and b2.shape == (1, H) and b3.shape == (1, D_out)
    assert w1_s.shape == (1, H) and w2_s.shape == (1, H)

    tk = min(tk, H)
    assert H % tk == 0, "tk must divide the hidden dim (2048)"
    assert H % n_split == 0 and (H // n_split) % 128 == 0
    Hn = H // n_split
    nk = H // tk

    x_bf16 = x.astype(jnp.bfloat16)

    flops = 2 * M * (D_in * H + H * H + H * D_out)
    bytes_accessed = (
        M * D_in * 2
        + n_split * (D_in * H * 1 + H * 4 + H * 4)     # w1 int8 + scale + b1
        + H * H * 1 + H * 4 + H * 4                    # w2 int8 + scale + b2
        + D_out * H * 2                                # w3t bf16
        + n_split * M * D_out * 4                      # partial outputs
    )

    partials = pl.pallas_call(
        _fused_mlp_kernel,
        out_shape=jax.ShapeDtypeStruct((n_split, M, D_out), jnp.float32),
        grid_spec=pltpu.PrefetchScalarGridSpec(
            num_scalar_prefetch=0,
            grid=(n_split, nk),
            in_specs=[
                pl.BlockSpec((M, D_in), lambda j, k: (0, 0)),     # x (bf16, resident)
                pl.BlockSpec((D_in, tk), lambda j, k: (0, k)),    # w1 int8 k-slice
                pl.BlockSpec((1, tk), lambda j, k: (0, k)),       # w1 scale k-slice
                pl.BlockSpec((1, tk), lambda j, k: (0, k)),       # b1 k-slice
                pl.BlockSpec((tk, Hn), lambda j, k: (k, j)),      # w2 int8 tile (big stream)
                pl.BlockSpec((1, Hn), lambda j, k: (0, j)),       # w2 scale cols
                pl.BlockSpec((1, Hn), lambda j, k: (0, j)),       # b2 cols
                pl.BlockSpec((D_out, Hn), lambda j, k: (0, j)),   # w3t cols (lane-dense)
            ],
            out_specs=pl.BlockSpec((1, M, D_out), lambda j, k: (j, 0, 0)),
            scratch_shapes=[pltpu.VMEM((M, Hn), jnp.float32)],
        ),
        compiler_params=pltpu.CompilerParams(
            # j: independent output-column halves (sharded across TCs on v7x);
            # k: reduction into the resident accumulator -> must stay sequential.
            dimension_semantics=("parallel", "arbitrary"),
        ),
        cost_estimate=pl.CostEstimate(
            flops=int(flops), transcendentals=0,
            bytes_accessed=int(bytes_accessed)),
    )(x_bf16, w1_q, w1_s, b1, w2_q, w2_s, b2, w3t)

    # Combine the per-core partials (trivial (M, Dout) add) and add b3 once.
    return jnp.sum(partials, axis=0) + b3


class MLPPallas:
    """Pallas re-implementation of the PyTorch MLP:

        hidden1: Linear(input_dim, 2048) -> ReLU
        hidden2: Linear(2048, 2048)             (no activation, matches forward())
        output : Linear(2048, output_dim)

    Weights are stored as (in_features, out_features) (transpose of nn.Linear).
    w1/w2 are int8 with per-output-column f32 scales (HBM-bound workload =>
    halving the dominant weight bytes); w3 is bf16 stored pre-transposed
    (out, in) for a lane-dense epilogue.  Biases f32; all accumulation f32.
    Numerics intentionally deviate from pure-f32 PyTorch (bf16/int8 weights).
    """

    def __init__(self, input_dim, hidden_dim, output_dim, key):
        # hidden_dim is unused in the original module (hardcoded 2048); kept
        # for signature parity.
        del hidden_dim
        k1, k2, k3, k4, k5, k6 = jax.random.split(key, 6)

        def init_linear(kw, kb, fan_in, fan_out):
            # PyTorch nn.Linear default init: U(-1/sqrt(fan_in), 1/sqrt(fan_in))
            bound = 1.0 / jnp.sqrt(jnp.float32(fan_in))
            w = jax.random.uniform(kw, (fan_in, fan_out), jnp.float32, -bound, bound)
            b = jax.random.uniform(kb, (1, fan_out), jnp.float32, -bound, bound)
            return w, b

        def quantize_per_col(w):
            amax = jnp.max(jnp.abs(w), axis=0, keepdims=True)      # (1, out)
            scale = jnp.maximum(amax, 1e-8) / 127.0
            q = jnp.clip(jnp.round(w / scale), -127, 127).astype(jnp.int8)
            return q, scale.astype(jnp.float32)

        w1, self.b1 = init_linear(k1, k2, input_dim, HIDDEN)
        w2, self.b2 = init_linear(k3, k4, HIDDEN, HIDDEN)
        w3, self.b3 = init_linear(k5, k6, HIDDEN, output_dim)

        self.w1_q, self.w1_s = quantize_per_col(w1)
        self.w2_q, self.w2_s = quantize_per_col(w2)
        self.w3t = jnp.transpose(w3).astype(jnp.bfloat16)          # (out, 2048)

    def __call__(self, x):
        return fused_mlp(x, self.w1_q, self.w1_s, self.b1,
                         self.w2_q, self.w2_s, self.b2,
                         self.w3t, self.b3)


if __name__ == "__main__":
    key = jax.random.PRNGKey(0)
    k_params, k_x = jax.random.split(key)

    batch = 8
    input_dim = 32
    output_dim = 16

    model = MLPPallas(input_dim, hidden_dim=2048, output_dim=output_dim, key=k_params)
    x = jax.random.normal(k_x, (batch, input_dim), dtype=jnp.float32)

    out = model(x)
    jax.block_until_ready(out)

    # Pure-JAX reference replicating the kernel's quantized-weight /
    # bf16-activation / f32-accumulate math (so this checks the kernel,
    # not the quantization error vs. a pure-f32 model).
    f32 = jnp.float32
    hp = lax.Precision.HIGHEST
    w1f = model.w1_q.astype(f32) * model.w1_s
    w2f = model.w2_q.astype(f32) * model.w2_s
    w3f = jnp.transpose(model.w3t).astype(f32)

    xb = x.astype(jnp.bfloat16).astype(f32)
    h1 = jnp.maximum(jnp.dot(xb, w1f, precision=hp) + model.b1, 0.0)
    h1b = h1.astype(jnp.bfloat16).astype(f32)
    h2 = jnp.dot(h1b, w2f, precision=hp) + model.b2
    h2b = h2.astype(jnp.bfloat16).astype(f32)
    ref = jnp.dot(h2b, w3f, precision=hp) + model.b3

    assert out.shape == (batch, output_dim)
    assert jnp.allclose(out, ref, atol=1e-2, rtol=1e-2), float(
        jnp.max(jnp.abs(out - ref))
    )

    print("KERNEL_OK")
</pallas_src>

<mosaic_0001>
module attributes {stable_mosaic.version = 11 : i64} {
  func.func @_fused_mlp_kernel(%arg0: i32, %arg1: i32, %arg2: memref<8x32xbf16, #tpu.memory_space<vmem>>, %arg3: memref<32x1024xi8, #tpu.memory_space<vmem>>, %arg4: memref<1x1024xf32, #tpu.memory_space<vmem>>, %arg5: memref<1x1024xf32, #tpu.memory_space<vmem>>, %arg6: memref<1024x2048xi8, #tpu.memory_space<vmem>>, %arg7: memref<1x2048xf32, #tpu.memory_space<vmem>>, %arg8: memref<1x2048xf32, #tpu.memory_space<vmem>>, %arg9: memref<16x2048xbf16, #tpu.memory_space<vmem>>, %arg10: memref<1x8x16xf32, #tpu.memory_space<vmem>>, %arg11: memref<8x2048xf32, #tpu.memory_space<vmem>>) attributes {dimension_semantics = [#tpu.dimension_semantics<parallel>, #tpu.dimension_semantics<arbitrary>], iteration_bounds = array<i64: 1, 2>, scalar_prefetch = 0 : i64, scratch_operands = 1 : i64, tpu.core_type = #tpu.core_type<tc>, window_params = [{pipeline_mode = #tpu.pipeline_mode<synchronous>, transform_indices = @transform_0, window_bounds = array<i64: 8, 32>}, {transform_indices = @transform_1, window_bounds = array<i64: 32, 1024>}, {transform_indices = @transform_2, window_bounds = array<i64: 1, 1024>}, {transform_indices = @transform_3, window_bounds = array<i64: 1, 1024>}, {transform_indices = @transform_4, window_bounds = array<i64: 1024, 2048>}, {transform_indices = @transform_5, window_bounds = array<i64: 1, 2048>}, {transform_indices = @transform_6, window_bounds = array<i64: 1, 2048>}, {transform_indices = @transform_7, window_bounds = array<i64: 16, 2048>}, {transform_indices = @transform_8, window_bounds = array<i64: 1, 8, 16>}]} {
    %c0 = arith.constant 0 : index
    %c0_0 = arith.constant 0 : index
    %0 = vector.load %arg2[%c0, %c0_0] : memref<8x32xbf16, #tpu.memory_space<vmem>>, vector<8x32xbf16>
    %c0_1 = arith.constant 0 : index
    %c0_2 = arith.constant 0 : index
    %1 = vector.load %arg3[%c0_1, %c0_2] : memref<32x1024xi8, #tpu.memory_space<vmem>>, vector<32x1024xi8>
    %2 = arith.sitofp %1 : vector<32x1024xi8> to vector<32x1024xf32>
    %3 = arith.truncf %2 : vector<32x1024xf32> to vector<32x1024xbf16>
    %cst = arith.constant dense<0.000000e+00> : vector<8x1024xf32>
    %4 = tpu.matmul %0, %3, %cst {dimension_numbers = #tpu.dot_dimension_numbers<[1], [0], [0], [1], [0, 0, 1, 1], [], []>} : vector<8x32xbf16>, vector<32x1024xbf16>, vector<8x1024xf32> -> vector<8x1024xf32>
    %c0_3 = arith.constant 0 : index
    %c0_4 = arith.constant 0 : index
    %5 = vector.load %arg4[%c0_3, %c0_4] : memref<1x1024xf32, #tpu.memory_space<vmem>>, vector<1x1024xf32>
    %6 = vector.broadcast %5 : vector<1x1024xf32> to vector<8x1024xf32>
    %7 = arith.mulf %4, %6 : vector<8x1024xf32>
    %c0_5 = arith.constant 0 : index
    %c0_6 = arith.constant 0 : index
    %8 = vector.load %arg5[%c0_5, %c0_6] : memref<1x1024xf32, #tpu.memory_space<vmem>>, vector<1x1024xf32>
    %9 = vector.broadcast %8 : vector<1x1024xf32> to vector<8x1024xf32>
    %10 = arith.addf %7, %9 : vector<8x1024xf32>
    %cst_7 = arith.constant 0.000000e+00 : f32
    %11 = vector.broadcast %cst_7 : f32 to vector<8x1024xf32>
    %12 = arith.maximumf %10, %11 : vector<8x1024xf32>
    %13 = arith.truncf %12 : vector<8x1024xf32> to vector<8x1024xbf16>
    %c0_8 = arith.constant 0 : index
    %c0_9 = arith.constant 0 : index
    %14 = vector.load %arg6[%c0_8, %c0_9] : memref<1024x2048xi8, #tpu.memory_space<vmem>>, vector<1024x2048xi8>
    %15 = arith.sitofp %14 : vector<1024x2048xi8> to vector<1024x2048xf32>
    %16 = arith.truncf %15 : vector<1024x2048xf32> to vector<1024x2048xbf16>
    %cst_10 = arith.constant dense<0.000000e+00> : vector<8x2048xf32>
    %17 = tpu.matmul %13, %16, %cst_10 {dimension_numbers = #tpu.dot_dimension_numbers<[1], [0], [0], [1], [0, 0, 1, 1], [], []>} : vector<8x1024xbf16>, vector<1024x2048xbf16>, vector<8x2048xf32> -> vector<8x2048xf32>
    %c0_11 = arith.constant 0 : index
    %c0_12 = arith.constant 0 : index
    %18 = vector.load %arg7[%c0_11, %c0_12] : memref<1x2048xf32, #tpu.memory_space<vmem>>, vector<1x2048xf32>
    %19 = vector.broadcast %18 : vector<1x2048xf32> to vector<8x2048xf32>
    %20 = arith.mulf %17, %19 : vector<8x2048xf32>
    %c0_i32 = arith.constant 0 : i32
    %21 = arith.cmpi eq, %arg1, %c0_i32 : i32
    %22 = arith.extui %21 : i1 to i32
    %c0_i32_13 = arith.constant 0 : i32
    %23 = arith.cmpi ne, %22, %c0_i32_13 : i32
    scf.if %23 {
      %c0_17 = arith.constant 0 : index
      %c0_18 = arith.constant 0 : index
      %30 = vector.load %arg11[%c0_17, %c0_18] : memref<8x2048xf32, #tpu.memory_space<vmem>>, vector<8x2048xf32>
      tpu.vector_store %arg11[%c0_17, %c0_18], %20 {strides = array<i32>} : memref<8x2048xf32, #tpu.memory_space<vmem>>, vector<8x2048xf32>,
    } else {
    }
    %c0_i32_14 = arith.constant 0 : i32
    %24 = arith.cmpi sgt, %arg1, %c0_i32_14 : i32
    %25 = arith.extui %24 : i1 to i32
    %c0_i32_15 = arith.constant 0 : i32
    %26 = arith.cmpi ne, %25, %c0_i32_15 : i32
    scf.if %26 {
      %c0_17 = arith.constant 0 : index
      %c0_18 = arith.constant 0 : index
      %30 = vector.load %arg11[%c0_17, %c0_18] : memref<8x2048xf32, #tpu.memory_space<vmem>>, vector<8x2048xf32>
      %31 = arith.addf %30, %20 : vector<8x2048xf32>
      %c0_19 = arith.constant 0 : index
      %c0_20 = arith.constant 0 : index
      %32 = vector.load %arg11[%c0_19, %c0_20] : memref<8x2048xf32, #tpu.memory_space<vmem>>, vector<8x2048xf32>
      tpu.vector_store %arg11[%c0_19, %c0_20], %31 {strides = array<i32>} : memref<8x2048xf32, #tpu.memory_space<vmem>>, vector<8x2048xf32>,
    } else {
    }
    %c1_i32 = arith.constant 1 : i32
    %27 = arith.cmpi eq, %arg1, %c1_i32 : i32
    %28 = arith.extui %27 : i1 to i32
    %c0_i32_16 = arith.constant 0 : i32
    %29 = arith.cmpi ne, %28, %c0_i32_16 : i32
    scf.if %29 {
      %c0_17 = arith.constant 0 : index
      %c0_18 = arith.constant 0 : index
      %30 = vector.load %arg11[%c0_17, %c0_18] : memref<8x2048xf32, #tpu.memory_space<vmem>>, vector<8x2048xf32>
      %c0_19 = arith.constant 0 : index
      %c0_20 = arith.constant 0 : index
      %31 = vector.load %arg8[%c0_19, %c0_20] : memref<1x2048xf32, #tpu.memory_space<vmem>>, vector<1x2048xf32>
      %32 = vector.broadcast %31 : vector<1x2048xf32> to vector<8x2048xf32>
      %33 = arith.addf %30, %32 : vector<8x2048xf32>
      %34 = arith.truncf %33 : vector<8x2048xf32> to vector<8x2048xbf16>
      %c0_21 = arith.constant 0 : index
      %c0_22 = arith.constant 0 : index
      %35 = vector.load %arg9[%c0_21, %c0_22] : memref<16x2048xbf16, #tpu.memory_space<vmem>>, vector<16x2048xbf16>
      %cst_23 = arith.constant dense<0.000000e+00> : vector<8x16xf32>
      %36 = tpu.matmul %34, %35, %cst_23 {dimension_numbers = #tpu.dot_dimension_numbers<[1], [1], [0], [0], [0, 0, 1, 0], [], []>} : vector<8x2048xbf16>, vector<16x2048xbf16>, vector<8x16xf32> -> vector<8x16xf32>
      %c0_24 = arith.constant 0 : index
      %c0_25 = arith.constant 0 : index
      %c0_26 = arith.constant 0 : index
      %37 = vector.load %arg10[%c0_24, %c0_25, %c0_26] : memref<1x8x16xf32, #tpu.memory_space<vmem>>, vector<1x8x16xf32>
      %38 = vector.shape_cast %37 : vector<1x8x16xf32> to vector<8x16xf32>
      %39 = vector.shape_cast %36 : vector<8x16xf32> to vector<1x8x16xf32>
      tpu.vector_store %arg10[%c0_24, %c0_25, %c0_26], %39 {strides = array<i32>} : memref<1x8x16xf32, #tpu.memory_space<vmem>>, vector<1x8x16xf32>,
    } else {
    }
    return
  }
  func.func @transform_0(%arg0: i32, %arg1: i32) -> (i32, i32) {
    %c0_i32 = arith.constant 0 : i32
    %c0_i32_0 = arith.constant 0 : i32
    %c0_i32_1 = arith.constant 0 : i32
    return %c0_i32, %c0_i32_0 : i32, i32
  }
  func.func @transform_1(%arg0: i32, %arg1: i32) -> (i32, i32) {
    %c0_i32 = arith.constant 0 : i32
    %c0_i32_0 = arith.constant 0 : i32
    return %c0_i32, %arg1 : i32, i32
  }
  func.func @transform_2(%arg0: i32, %arg1: i32) -> (i32, i32) {
    %c0_i32 = arith.constant 0 : i32
    %c0_i32_0 = arith.constant 0 : i32
    return %c0_i32, %arg1 : i32, i32
  }
  func.func @transform_3(%arg0: i32, %arg1: i32) -> (i32, i32) {
    %c0_i32 = arith.constant 0 : i32
    %c0_i32_0 = arith.constant 0 : i32
    return %c0_i32, %arg1 : i32, i32
  }
  func.func @transform_4(%arg0: i32, %arg1: i32) -> (i32, i32) {
    %c0_i32 = arith.constant 0 : i32
    return %arg1, %arg0 : i32, i32
  }
  func.func @transform_5(%arg0: i32, %arg1: i32) -> (i32, i32) {
    %c0_i32 = arith.constant 0 : i32
    %c0_i32_0 = arith.constant 0 : i32
    return %c0_i32, %arg0 : i32, i32
  }
  func.func @transform_6(%arg0: i32, %arg1: i32) -> (i32, i32) {
    %c0_i32 = arith.constant 0 : i32
    %c0_i32_0 = arith.constant 0 : i32
    return %c0_i32, %arg0 : i32, i32
  }
  func.func @transform_7(%arg0: i32, %arg1: i32) -> (i32, i32) {
    %c0_i32 = arith.constant 0 : i32
    %c0_i32_0 = arith.constant 0 : i32
    return %c0_i32, %arg0 : i32, i32
  }
  func.func @transform_8(%arg0: i32, %arg1: i32) -> (i32, i32, i32) {
    %c0_i32 = arith.constant 0 : i32
    %c0_i32_0 = arith.constant 0 : i32
    %c0_i32_1 = arith.constant 0 : i32
    return %arg0, %c0_i32, %c0_i32_0 : i32, i32, i32
  }
}

</mosaic_0001>

<llo_original>
// kernel: tpu_custom_call.1
$region0: #{tpu_custom_call.1}
  #allocation0 [shape = 'u32[]', space=smem, size = 0x4, offset = 0x4, fixed_abs, tag = 'smem constant byte address 0x4 - core index']
  #allocation1 [shape = 'u32[144,128]{1,0:T(1,128)}', space=vmem, size = 0x12000, scoped, tag = 'internal scratch']
  #allocation2 [shape = 'f32[8,2048]{1,0:T(8,128)}', space=vmem, size = 0x10000, scoped, tag = 'scratch operand']
  %s0 = inlined_call_operand.hbm [shape: bf16[8,32], index: 0, kind: input, shape index: {}]
  %s1 = inlined_call_operand.hbm [shape: s8[32,2048], index: 1, kind: input, shape index: {}]
  %s2 = inlined_call_operand.hbm [shape: f32[1,2048], index: 2, kind: input, shape index: {}]
  %s3 = inlined_call_operand.hbm [shape: f32[1,2048], index: 3, kind: input, shape index: {}]
  %s4 = inlined_call_operand.hbm [shape: s8[2048,2048], index: 4, kind: input, shape index: {}]
  %s5 = inlined_call_operand.hbm [shape: f32[1,2048], index: 5, kind: input, shape index: {}]
  %s6 = inlined_call_operand.hbm [shape: f32[1,2048], index: 6, kind: input, shape index: {}]
  %s7 = inlined_call_operand.hbm [shape: bf16[16,2048], index: 7, kind: input, shape index: {}]
  %s8 = inlined_call_operand.hbm [shape: f32[1,8,16], index: 8, kind: output, shape index: {}]
  %s9 = sld [smem:[#allocation0]]
  $region109: #{tpu_custom_call.1} parent=0
    _
  %s11 = ssub.s32 1, %s9
  %s12 = scalar_select 0, %s11, %s9
  $region1: #{tpu_custom_call.1} parent=0
    #allocation3 [shape = 'u8[2048]{0}', space=vmem, size = 0x800, scoped, tag = 'input window, operand 0, single buffered']
    #allocation4 [shape = 's32[2]{0}', space=sflag, size = 0x8, scoped, tag = 'scoped memory for tpu_custom_call.1']
    #allocation5 [shape = 's32[2]{0}', space=sflag, size = 0x8, scoped, tag = 'scoped memory for tpu_custom_call.1']
    #allocation6 [shape = 'u8[65536]{0}', space=vmem, size = 0x10000, scoped, tag = 'input window, operand 1']
    #allocation7 [shape = 's32[2]{0}', space=sflag, size = 0x8, scoped, tag = 'scoped memory for tpu_custom_call.1']
    #allocation8 [shape = 'u8[8192]{0}', space=vmem, size = 0x2000, scoped, tag = 'input window, operand 2']
    #allocation9 [shape = 'u8[8192]{0}', space=vmem, size = 0x2000, scoped, tag = 'input window, operand 3']
    #allocation10 [shape = 's32[2]{0}', space=sflag, size = 0x8, scoped, tag = 'scoped memory for tpu_custom_call.1']
    #allocation11 [shape = 'u8[4194304]{0}', space=vmem, size = 0x400000, scoped, tag = 'input window, operand 4']
    #allocation12 [shape = 'u8[8192]{0}', space=vmem, size = 0x2000, scoped, tag = 'input window, operand 5, single buffered']
    #allocation13 [shape = 's32[1]{0}', space=sflag, size = 0x4, scoped, tag = 'scoped memory for tpu_custom_call.1']
    #allocation14 [shape = 'u8[8192]{0}', space=vmem, size = 0x2000, scoped, tag = 'input window, operand 6, single buffered']
    #allocation15 [shape = 'u8[65536]{0}', space=vmem, size = 0x10000, scoped, tag = 'input window, operand 7, single buffered']
    #allocation16 [shape = 's32[1]{0}', space=sflag, size = 0x4, scoped, tag = 'scoped memory for tpu_custom_call.1']
    #allocation17 [shape = 'u8[4096]{0}', space=vmem, size = 0x1000, scoped, tag = 'output window, operand 0, single buffered']
    %13 = vsyncpa [#allocation4], 0
    %14 = vsyncpa [#allocation7], 0
    %s15 = scalar_lea.sflag [#allocation7], 1
    %16 = vsyncpa %s15, 0
    %17 = vsyncpa [#allocation10], 0
    %s18 = scalar_lea.sflag [#allocation10], 1
    %19 = vsyncpa %s18, 0
    %20 = vsyncpa [#allocation13], 0
    %21 = vsyncpa [#allocation16], 0
    %22 = vsyncpa [#allocation5], 0
    loop: start=0, step=1, limit=4
    $region2: #{tpu_custom_call.1} parent=1 // loop_pre_header
      _
    $region3: #{tpu_custom_call.1} parent=1 // loop_header
      %s24 = sphi 0, %s28
      %p25 = scmp.ge.s32.totalorder %s24, 4
      %s31 = sphi 0, %s43
      %s32 = sphi 0, %s39
      %s33 = sphi 0, %s31
      %s34 = sphi 0, %s32
      %s35 = sphi 0, %s33
      %s36 = sphi 0, %s34
      %s44 = sphi 0, %s44
      %s46 = sphi 0, %s44
      %s47 = sphi 0, %s46
      %s61 = sphi 0, %s47
      %s67 = sphi 0, %s69
      %s70 = sphi 0, %s67
      %s71 = sphi 0, %s70
      %s87 = sphi 0, %s71
      %s93 = sphi 0, %s95
      %s96 = sphi 0, %s93
      %s97 = sphi 0, %s96
      %s113 = sphi 0, %s97
      %s119 = sphi 0, %s121
      %s122 = sphi 0, %s119
      %s123 = sphi 0, %s122
      %s139 = sphi 0, %s123
      %s147 = sphi 0, %s149
      %s150 = sphi 0, %s147
      %s151 = sphi 0, %s150
      %s167 = sphi 0, %s151
      %s173 = sphi 0, %s175
      %s176 = sphi 0, %s173
      %s177 = sphi 0, %s176
      %s193 = sphi 0, %s177
      %s199 = sphi 0, %s201
      %s202 = sphi 0, %s199
      %s203 = sphi 0, %s202
      %s219 = sphi 0, %s203
      %s225 = sphi 0, %s227
      %s228 = sphi 0, %s225
      %s229 = sphi 0, %s228
      %s245 = sphi 0, %s229
      %s251 = sphi 0, %s253
      %s254 = sphi 0, %s251
      %s255 = sphi 0, %s254
      %s271 = sphi 0, %s255
    $region4: #{tpu_custom_call.1} parent=1 // loop_header_branch
      %27 = sbr.rel (%p25) target = $region8
    $region5: #{tpu_custom_call.1} parent=1 // loop_body
      %s29 = ssub.s32 %s24, 1
      %s30 = ssub.s32 %s24, 2
      %s37 = sadd.s32 1, %s32
      %p38 = scmp.ge.s32.totalorder %s37, 2
      %s39 = scalar_select %p38, 0, %s37
      %s40 = sadd.s32 1, %s31
      %s41 = scalar_select %p38, %s40, %s31
      %p42 = scmp.ge.s32.totalorder %s41, 1
      %s43 = scalar_select %p42, 0, %s41
      %s45 = sadd.s32 %s44, 1
      %p48 = scmp.eq.s32.totalorder %s24, 1
      %p49 = scmp.ne.s32.totalorder %s44, %s46
      %p50 = scmp.eq.s32.totalorder %s24, 0
      %p51 = por %p49, %p50
      %p52 = scmp.ne.s32.totalorder %s44, %s46
      %p53 = scmp.eq.s32.totalorder %s29, 1
      %p54 = por %p52, %p53
      %p55 = scmp.ne.s32.totalorder %s46, %s47
      %p56 = scmp.eq.s32.totalorder %s29, 0
      %p57 = por %p55, %p56
      %p58 = scmp.ne.s32.totalorder %s46, %s47
      %p59 = scmp.eq.s32.totalorder %s30, 1
      %p60 = por %p58, %p59
      %p62 = scmp.ne.s32.totalorder %s47, %s61
      %p63 = scmp.eq.s32.totalorder %s30, 0
      %p64 = por %p62, %p63
      %s65 = ssub.s32 %s32, %s39
      %p66 = scmp.eq.s32.totalorder %s65, 0
      %s68 = sadd.s32 %s67, 1
      %s69 = scalar_select %p66, %s67, %s68
      %p72 = pneg %p66
      %p73 = scmp.eq.s32.totalorder %s24, 1
      %p74 = por %p72, %p73
      %p75 = scmp.ne.s32.totalorder %s67, %s70
      %p76 = scmp.eq.s32.totalorder %s24, 0
      %p77 = por %p75, %p76
      %p78 = scmp.ne.s32.totalorder %s67, %s70
      %p79 = scmp.eq.s32.totalorder %s29, 1
      %p80 = por %p78, %p79
      %p81 = scmp.ne.s32.totalorder %s70, %s71
      %p82 = scmp.eq.s32.totalorder %s29, 0
      %p83 = por %p81, %p82
      %p84 = scmp.ne.s32.totalorder %s70, %s71
      %p85 = scmp.eq.s32.totalorder %s30, 1
      %p86 = por %p84, %p85
      %p88 = scmp.ne.s32.totalorder %s71, %s87
      %p89 = scmp.eq.s32.totalorder %s30, 0
      %p90 = por %p88, %p89
      %s91 = ssub.s32 %s32, %s39
      %p92 = scmp.eq.s32.totalorder %s91, 0
      %s94 = sadd.s32 %s93, 1
      %s95 = scalar_select %p92, %s93, %s94
      %p98 = pneg %p92
      %p99 = scmp.eq.s32.totalorder %s24, 1
      %p100 = por %p98, %p99
      %p101 = scmp.ne.s32.totalorder %s93, %s96
      %p102 = scmp.eq.s32.totalorder %s24, 0
      %p103 = por %p101, %p102
      %p104 = scmp.ne.s32.totalorder %s93, %s96
      %p105 = scmp.eq.s32.totalorder %s29, 1
      %p106 = por %p104, %p105
      %p107 = scmp.ne.s32.totalorder %s96, %s97
      %p108 = scmp.eq.s32.totalorder %s29, 0
      %p109 = por %p107, %p108
      %p110 = scmp.ne.s32.totalorder %s96, %s97
      %p111 = scmp.eq.s32.totalorder %s30, 1
      %p112 = por %p110, %p111
      %p114 = scmp.ne.s32.totalorder %s97, %s113
      %p115 = scmp.eq.s32.totalorder %s30, 0
      %p116 = por %p114, %p115
      %s117 = ssub.s32 %s32, %s39
      %p118 = scmp.eq.s32.totalorder %s117, 0
      %s120 = sadd.s32 %s119, 1
      %s121 = scalar_select %p118, %s119, %s120
      %p124 = pneg %p118
      %p125 = scmp.eq.s32.totalorder %s24, 1
      %p126 = por %p124, %p125
      %p127 = scmp.ne.s32.totalorder %s119, %s122
      %p128 = scmp.eq.s32.totalorder %s24, 0
      %p129 = por %p127, %p128
      %p130 = scmp.ne.s32.totalorder %s119, %s122
      %p131 = scmp.eq.s32.totalorder %s29, 1
      %p132 = por %p130, %p131
      %p133 = scmp.ne.s32.totalorder %s122, %s123
      %p134 = scmp.eq.s32.totalorder %s29, 0
      %p135 = por %p133, %p134
      %p136 = scmp.ne.s32.totalorder %s122, %s123
      %p137 = scmp.eq.s32.totalorder %s30, 1
      %p138 = por %p136, %p137
      %p140 = scmp.ne.s32.totalorder %s123, %s139
      %p141 = scmp.eq.s32.totalorder %s30, 0
      %p142 = por %p140, %p141
      %s143 = ssub.s32 %s32, %s39
      %s144 = ssub.s32 %s31, %s43
      %s145 = sor.u32 %s143, %s144
      %p146 = scmp.eq.s32.totalorder %s145, 0
      %s148 = sadd.s32 %s147, 1
      %s149 = scalar_select %p146, %s147, %s148
      %p152 = pneg %p146
      %p153 = scmp.eq.s32.totalorder %s24, 1
      %p154 = por %p152, %p153
      %p155 = scmp.ne.s32.totalorder %s147, %s150
      %p156 = scmp.eq.s32.totalorder %s24, 0
      %p157 = por %p155, %p156
      %p158 = scmp.ne.s32.totalorder %s147, %s150
      %p159 = scmp.eq.s32.totalorder %s29, 1
      %p160 = por %p158, %p159
      %p161 = scmp.ne.s32.totalorder %s150, %s151
      %p162 = scmp.eq.s32.totalorder %s29, 0
      %p163 = por %p161, %p162
      %p164 = scmp.ne.s32.totalorder %s150, %s151
      %p165 = scmp.eq.s32.totalorder %s30, 1
      %p166 = por %p164, %p165
      %p168 = scmp.ne.s32.totalorder %s151, %s167
      %p169 = scmp.eq.s32.totalorder %s30, 0
      %p170 = por %p168, %p169
      %s171 = ssub.s32 %s31, %s43
      %p172 = scmp.eq.s32.totalorder %s171, 0
      %s174 = sadd.s32 %s173, 1
      %s175 = scalar_select %p172, %s173, %s174
      %p178 = pneg %p172
      %p179 = scmp.eq.s32.totalorder %s24, 1
      %p180 = por %p178, %p179
      %p181 = scmp.ne.s32.totalorder %s173, %s176
      %p182 = scmp.eq.s32.totalorder %s24, 0
      %p183 = por %p181, %p182
      %p184 = scmp.ne.s32.totalorder %s173, %s176
      %p185 = scmp.eq.s32.totalorder %s29, 1
      %p186 = por %p184, %p185
      %p187 = scmp.ne.s32.totalorder %s176, %s177
      %p188 = scmp.eq.s32.totalorder %s29, 0
      %p189 = por %p187, %p188
      %p190 = scmp.ne.s32.totalorder %s176, %s177
      %p191 = scmp.eq.s32.totalorder %s30, 1
      %p192 = por %p190, %p191
      %p194 = scmp.ne.s32.totalorder %s177, %s193
      %p195 = scmp.eq.s32.totalorder %s30, 0
      %p196 = por %p194, %p195
      %s197 = ssub.s32 %s31, %s43
      %p198 = scmp.eq.s32.totalorder %s197, 0
      %s200 = sadd.s32 %s199, 1
      %s201 = scalar_select %p198, %s199, %s200
      %p204 = pneg %p198
      %p205 = scmp.eq.s32.totalorder %s24, 1
      %p206 = por %p204, %p205
      %p207 = scmp.ne.s32.totalorder %s199, %s202
      %p208 = scmp.eq.s32.totalorder %s24, 0
      %p209 = por %p207, %p208
      %p210 = scmp.ne.s32.totalorder %s199, %s202
      %p211 = scmp.eq.s32.totalorder %s29, 1
      %p212 = por %p210, %p211
      %p213 = scmp.ne.s32.totalorder %s202, %s203
      %p214 = scmp.eq.s32.totalorder %s29, 0
      %p215 = por %p213, %p214
      %p216 = scmp.ne.s32.totalorder %s202, %s203
      %p217 = scmp.eq.s32.totalorder %s30, 1
      %p218 = por %p216, %p217
      %p220 = scmp.ne.s32.totalorder %s203, %s219
      %p221 = scmp.eq.s32.totalorder %s30, 0
      %p222 = por %p220, %p221
      %s223 = ssub.s32 %s31, %s43
      %p224 = scmp.eq.s32.totalorder %s223, 0
      %s226 = sadd.s32 %s225, 1
      %s227 = scalar_select %p224, %s225, %s226
      %p230 = pneg %p224
      %p231 = scmp.eq.s32.totalorder %s24, 1
      %p232 = por %p230, %p231
      %p233 = scmp.ne.s32.totalorder %s225, %s228
      %p234 = scmp.eq.s32.totalorder %s24, 0
      %p235 = por %p233, %p234
      %p236 = scmp.ne.s32.totalorder %s225, %s228
      %p237 = scmp.eq.s32.totalorder %s29, 1
      %p238 = por %p236, %p237
      %p239 = scmp.ne.s32.totalorder %s228, %s229
      %p240 = scmp.eq.s32.totalorder %s29, 0
      %p241 = por %p239, %p240
      %p242 = scmp.ne.s32.totalorder %s228, %s229
      %p243 = scmp.eq.s32.totalorder %s30, 1
      %p244 = por %p242, %p243
      %p246 = scmp.ne.s32.totalorder %s229, %s245
      %p247 = scmp.eq.s32.totalorder %s30, 0
      %p248 = por %p246, %p247
      %s249 = ssub.s32 %s31, %s43
      %p250 = scmp.eq.s32.totalorder %s249, 0
      %s252 = sadd.s32 %s251, 1
      %s253 = scalar_select %p250, %s251, %s252
      %p256 = pneg %p250
      %p257 = scmp.eq.s32.totalorder %s24, 1
      %p258 = por %p256, %p257
      %p259 = scmp.ne.s32.totalorder %s251, %s254
      %p260 = scmp.eq.s32.totalorder %s24, 0
      %p261 = por %p259, %p260
      %p262 = scmp.ne.s32.totalorder %s251, %s254
      %p263 = scmp.eq.s32.totalorder %s29, 1
      %p264 = por %p262, %p263
      %p265 = scmp.ne.s32.totalorder %s254, %s255
      %p266 = scmp.eq.s32.totalorder %s29, 0
      %p267 = por %p265, %p266
      %p268 = scmp.ne.s32.totalorder %s254, %s255
      %p269 = scmp.eq.s32.totalorder %s30, 1
      %p270 = por %p268, %p269
      %p272 = scmp.ne.s32.totalorder %s255, %s271
      %p273 = scmp.eq.s32.totalorder %s30, 0
      %p274 = por %p272, %p273
      %p275 = scmp.le.s32.totalorder 1, %s24
      %p276 = scmp.lt.s32.totalorder %s24, 3
      %p277 = pnand %p275, %p276
      %p278 = pneg %p277
      // Predicated region
      $region9: #{tpu_custom_call.1} parent=5 // pred_check
        _
      $region10: #{tpu_custom_call.1} parent=5 // pred_check_branch
        %280 = sbr.rel (%p277) target = $region12
      $region11: #{tpu_custom_call.1} parent=5 // pred_region
        %s281 = ssub.s32 %s24, 1
        // Predicated region
        $region13: #{tpu_custom_call.1} parent=11 // pred_check
          %p282 = pneg %p57
        $region14: #{tpu_custom_call.1} parent=11 // pred_check_branch
          %284 = sbr.rel (%p282) target = $region16
        $region15: #{tpu_custom_call.1} parent=11 // pred_region
          %s286 = ssub.s32 64, 64
          %287 = vsyncadd [#allocation4], %s286
          %s289 = sshll.u32 [#allocation3], 4
          %s290 = int_to_ptr.vmem [resolvable:$true] %s289
          %292 = dma.hbm_to_vmem [thread:$0]  %s0, 64, %s290, [#allocation4]
        $region16: #{tpu_custom_call.1} parent=11 // pred_fallthru
          _
        // Predicated region
        $region17: #{tpu_custom_call.1} parent=11 // pred_check
          %p293 = pneg %p189
        $region18: #{tpu_custom_call.1} parent=11 // pred_check_branch
          %295 = sbr.rel (%p293) target = $region20
        $region19: #{tpu_custom_call.1} parent=11 // pred_region
          %s296 = smul.u32 16, %s33
          %s298 = ssub.s32 256, 256
          %299 = vsyncadd [#allocation13], %s298
          %s300 = smul.addr %s296, 16
          %s301 = scalar_lea.hbm %s5, %s300
          %s303 = sshll.u32 [#allocation12], 4
          %s304 = int_to_ptr.vmem [resolvable:$true] %s303
          %306 = dma.hbm_to_vmem [thread:$0]  %s301, 256, %s304, [#allocation13]
        $region20: #{tpu_custom_call.1} parent=11 // pred_fallthru
          _
        // Predicated region
        $region21: #{tpu_custom_call.1} parent=11 // pred_check
          %p307 = pneg %p215
        $region22: #{tpu_custom_call.1} parent=11 // pred_check_branch
          %309 = sbr.rel (%p307) target = $region24
        $region23: #{tpu_custom_call.1} parent=11 // pred_region
          %s310 = smul.u32 16, %s33
          %s312 = ssub.s32 256, 256
          %313 = vsyncadd [#allocation13], %s312
          %s314 = smul.addr %s310, 16
          %s315 = scalar_lea.hbm %s6, %s314
          %s317 = sshll.u32 [#allocation14], 4
          %s318 = int_to_ptr.vmem [resolvable:$true] %s317
          %320 = dma.hbm_to_vmem [thread:$0]  %s315, 256, %s318, [#allocation13]
        $region24: #{tpu_custom_call.1} parent=11 // pred_fallthru
          _
        // Predicated region
        $region25: #{tpu_custom_call.1} parent=11 // pred_check
          %p321 = pneg %p241
        $region26: #{tpu_custom_call.1} parent=11 // pred_check_branch
          %323 = sbr.rel (%p321) target = $region28
        $region27: #{tpu_custom_call.1} parent=11 // pred_region
          %s324 = smul.u32 16, %s33
          %s326 = ssub.s32 2048, 2048
          %327 = vsyncadd [#allocation16], %s326
          %s328 = smul.addr %s324, 64
          %s329 = scalar_lea.hbm %s7, %s328
          %s330 = sshll.u32 [#allocation15], 4
          %s331 = int_to_ptr.vmem [resolvable:$true] %s330
          %336 = dma.hbm_to_vmem [thread:$0]  %s329, 2048, %s331, [#allocation16], 1024, 1024, 64
        $region28: #{tpu_custom_call.1} parent=11 // pred_fallthru
          _
      $region12: #{tpu_custom_call.1} parent=5 // pred_fallthru
        _
      %p337 = scmp.lt.s32.totalorder %s24, 2
      // Predicated region
      $region29: #{tpu_custom_call.1} parent=5 // pred_check
        %p338 = pneg %p337
      $region30: #{tpu_custom_call.1} parent=5 // pred_check_branch
        %340 = sbr.rel (%p338) target = $region32
      $region31: #{tpu_custom_call.1} parent=5 // pred_region
        // Predicated region
        $region33: #{tpu_custom_call.1} parent=31 // pred_check
          %p341 = pneg %p77
        $region34: #{tpu_custom_call.1} parent=31 // pred_check_branch
          %343 = sbr.rel (%p341) target = $region36
        $region35: #{tpu_custom_call.1} parent=31 // pred_region
          %s344 = sand.u32 %s24, 1
          %s345 = scalar_lea.sflag [#allocation7], %s344
          %s346 = sand.u32 %s67, 1
          %s347 = smul.addr %s346, 64
          %s348 = scalar_lea.vmem [#allocation6], %s347
          %s349 = smul.u32 8, %s32
          %s351 = ssub.s32 1024, 1024
          %352 = vsyncadd %s345, %s351
          %s353 = smul.addr %s349, 128
          %s354 = scalar_lea.hbm %s1, %s353
          %s356 = sshll.u32 %s348, 4
          %s357 = int_to_ptr.vmem [resolvable:$true] %s356
          %359 = dma.hbm_to_vmem [thread:$0]  %s354, 1024, %s357, %s345
        $region36: #{tpu_custom_call.1} parent=31 // pred_fallthru
          _
        // Predicated region
        $region37: #{tpu_custom_call.1} parent=31 // pred_check
          %p360 = pneg %p103
        $region38: #{tpu_custom_call.1} parent=31 // pred_check_branch
          %362 = sbr.rel (%p360) target = $region40
        $region39: #{tpu_custom_call.1} parent=31 // pred_region
          %s363 = sand.u32 %s24, 1
          %s364 = scalar_lea.sflag [#allocation7], %s363
          %s365 = sand.u32 %s93, 1
          %s366 = smul.addr %s365, 8
          %s367 = scalar_lea.vmem [#allocation8], %s366
          %s368 = smul.u32 8, %s32
          %s370 = ssub.s32 128, 128
          %371 = vsyncadd %s364, %s370
          %s372 = smul.addr %s368, 16
          %s373 = scalar_lea.hbm %s2, %s372
          %s375 = sshll.u32 %s367, 4
          %s376 = int_to_ptr.vmem [resolvable:$true] %s375
          %378 = dma.hbm_to_vmem [thread:$0]  %s373, 128, %s376, %s364
        $region40: #{tpu_custom_call.1} parent=31 // pred_fallthru
          _
        // Predicated region
        $region41: #{tpu_custom_call.1} parent=31 // pred_check
          %p379 = pneg %p129
        $region42: #{tpu_custom_call.1} parent=31 // pred_check_branch
          %381 = sbr.rel (%p379) target = $region44
        $region43: #{tpu_custom_call.1} parent=31 // pred_region
          %s382 = sand.u32 %s24, 1
          %s383 = scalar_lea.sflag [#allocation10], %s382
          %s384 = sand.u32 %s119, 1
          %s385 = smul.addr %s384, 8
          %s386 = scalar_lea.vmem [#allocation9], %s385
          %s387 = smul.u32 8, %s32
          %s389 = ssub.s32 128, 128
          %390 = vsyncadd %s383, %s389
          %s391 = smul.addr %s387, 16
          %s392 = scalar_lea.hbm %s3, %s391
          %s394 = sshll.u32 %s386, 4
          %s395 = int_to_ptr.vmem [resolvable:$true] %s394
          %397 = dma.hbm_to_vmem [thread:$0]  %s392, 128, %s395, %s383
        $region44: #{tpu_custom_call.1} parent=31 // pred_fallthru
          _
        // Predicated region
        $region45: #{tpu_custom_call.1} parent=31 // pred_check
          %p398 = pneg %p157
        $region46: #{tpu_custom_call.1} parent=31 // pred_check_branch
          %400 = sbr.rel (%p398) target = $region48
        $region47: #{tpu_custom_call.1} parent=31 // pred_region
          %s401 = sand.u32 %s24, 1
          %s402 = scalar_lea.sflag [#allocation10], %s401
          %s403 = sand.u32 %s147, 1
          %s404 = smul.addr %s403, 4096
          %s405 = scalar_lea.vmem [#allocation11], %s404
          %s406 = smul.u32 32, %s32
          %s407 = smul.u32 16, %s31
          %s409 = ssub.s32 65536, 65536
          %410 = vsyncadd %s402, %s409
          %s411 = smul.addr %s406, 16
          %s412 = sadd.s32 %s407, %s411
          %s413 = smul.addr %s412, 128
          %s414 = scalar_lea.hbm %s4, %s413
          %s415 = sshll.u32 %s405, 4
          %s416 = int_to_ptr.vmem [resolvable:$true] %s415
          %421 = dma.hbm_to_vmem [thread:$0]  %s414, 65536, %s416, %s402, 2048, 2048, 128
        $region48: #{tpu_custom_call.1} parent=31 // pred_fallthru
          _
      $region32: #{tpu_custom_call.1} parent=5 // pred_fallthru
        _
      %p422 = scmp.le.s32.totalorder 1, %s24
      %p423 = scmp.lt.s32.totalorder %s24, 3
      %p424 = pnand %p422, %p423
      %p425 = pneg %p424
      // Predicated region
      $region49: #{tpu_custom_call.1} parent=5 // pred_check
        _
      $region50: #{tpu_custom_call.1} parent=5 // pred_check_branch
        %427 = sbr.rel (%p424) target = $region52
      $region51: #{tpu_custom_call.1} parent=5 // pred_region
        %s428 = ssub.s32 %s24, 1
        // Predicated region
        $region53: #{tpu_custom_call.1} parent=51 // pred_check
          %p429 = pneg %p57
        $region54: #{tpu_custom_call.1} parent=51 // pred_check_branch
          %431 = sbr.rel (%p429) target = $region56
        $region55: #{tpu_custom_call.1} parent=51 // pred_region
          %432 = dma.done [#allocation4], 64
        $region56: #{tpu_custom_call.1} parent=51 // pred_fallthru
          _
        %s433 = sand.u32 %s29, 1
        %s434 = scalar_lea.sflag [#allocation7], %s433
        %s435 = sand.u32 %s70, 1
        %s436 = smul.addr %s435, 64
        %s437 = scalar_lea.vmem [#allocation6], %s436
        // Predicated region
        $region57: #{tpu_custom_call.1} parent=51 // pred_check
          %p438 = pneg %p83
        $region58: #{tpu_custom_call.1} parent=51 // pred_check_branch
          %440 = sbr.rel (%p438) target = $region60
        $region59: #{tpu_custom_call.1} parent=51 // pred_region
          %441 = dma.done %s434, 1024
        $region60: #{tpu_custom_call.1} parent=51 // pred_fallthru
          _
        %s442 = sand.u32 %s29, 1
        %s443 = scalar_lea.sflag [#allocation7], %s442
        %s444 = sand.u32 %s96, 1
        %s445 = smul.addr %s444, 8
        %s446 = scalar_lea.vmem [#allocation8], %s445
        // Predicated region
        $region61: #{tpu_custom_call.1} parent=51 // pred_check
          %p447 = pneg %p109
        $region62: #{tpu_custom_call.1} parent=51 // pred_check_branch
          %449 = sbr.rel (%p447) target = $region64
        $region63: #{tpu_custom_call.1} parent=51 // pred_region
          %450 = dma.done %s443, 128
        $region64: #{tpu_custom_call.1} parent=51 // pred_fallthru
          _
        %s451 = sand.u32 %s29, 1
        %s452 = scalar_lea.sflag [#allocation10], %s451
        %s453 = sand.u32 %s122, 1
        %s454 = smul.addr %s453, 8
        %s455 = scalar_lea.vmem [#allocation9], %s454
        // Predicated region
        $region65: #{tpu_custom_call.1} parent=51 // pred_check
          %p456 = pneg %p135
        $region66: #{tpu_custom_call.1} parent=51 // pred_check_branch
          %458 = sbr.rel (%p456) target = $region68
        $region67: #{tpu_custom_call.1} parent=51 // pred_region
          %459 = dma.done %s452, 128
        $region68: #{tpu_custom_call.1} parent=51 // pred_fallthru
          _
        %s460 = sand.u32 %s29, 1
        %s461 = scalar_lea.sflag [#allocation10], %s460
        %s462 = sand.u32 %s150, 1
        %s463 = smul.addr %s462, 4096
        %s464 = scalar_lea.vmem [#allocation11], %s463
        // Predicated region
        $region69: #{tpu_custom_call.1} parent=51 // pred_check
          %p465 = pneg %p163
        $region70: #{tpu_custom_call.1} parent=51 // pred_check_branch
          %467 = sbr.rel (%p465) target = $region72
        $region71: #{tpu_custom_call.1} parent=51 // pred_region
          %468 = dma.done %s461, 65536
        $region72: #{tpu_custom_call.1} parent=51 // pred_fallthru
          _
        // Predicated region
        $region73: #{tpu_custom_call.1} parent=51 // pred_check
          %p469 = pneg %p189
        $region74: #{tpu_custom_call.1} parent=51 // pred_check_branch
          %471 = sbr.rel (%p469) target = $region76
        $region75: #{tpu_custom_call.1} parent=51 // pred_region
          %472 = dma.done [#allocation13], 256
        $region76: #{tpu_custom_call.1} parent=51 // pred_fallthru
          _
        // Predicated region
        $region77: #{tpu_custom_call.1} parent=51 // pred_check
          %p473 = pneg %p215
        $region78: #{tpu_custom_call.1} parent=51 // pred_check_branch
          %475 = sbr.rel (%p473) target = $region80
        $region79: #{tpu_custom_call.1} parent=51 // pred_region
          %476 = dma.done [#allocation13], 256
        $region80: #{tpu_custom_call.1} parent=51 // pred_fallthru
          _
        // Predicated region
        $region81: #{tpu_custom_call.1} parent=51 // pred_check
          %p477 = pneg %p241
        $region82: #{tpu_custom_call.1} parent=51 // pred_check_branch
          %479 = sbr.rel (%p477) target = $region84
        $region83: #{tpu_custom_call.1} parent=51 // pred_region
          %480 = dma.done [#allocation16], 2048
        $region84: #{tpu_custom_call.1} parent=51 // pred_fallthru
          _
        %p481 = pneg %p57
        %p482 = pneg %p54
        %s483 = sand.u32 %s29, 1
        %s484 = scalar_lea.sflag [#allocation7], %s483
        %s485 = sand.u32 %s70, 1
        %s486 = smul.addr %s485, 64
        %s487 = scalar_lea.vmem [#allocation6], %s486
        %p488 = pneg %p83
        %p489 = pneg %p80
        %s490 = sand.u32 %s29, 1
        %s491 = scalar_lea.sflag [#allocation7], %s490
        %s492 = sand.u32 %s96, 1
        %s493 = smul.addr %s492, 8
        %s494 = scalar_lea.vmem [#allocation8], %s493
        %p495 = pneg %p109
        %p496 = pneg %p106
        %s497 = sand.u32 %s29, 1
        %s498 = scalar_lea.sflag [#allocation10], %s497
        %s499 = sand.u32 %s122, 1
        %s500 = smul.addr %s499, 8
        %s501 = scalar_lea.vmem [#allocation9], %s500
        %p502 = pneg %p135
        %p503 = pneg %p132
        %s504 = sand.u32 %s29, 1
        %s505 = scalar_lea.sflag [#allocation10], %s504
        %s506 = sand.u32 %s150, 1
        %s507 = smul.addr %s506, 4096
        %s508 = scalar_lea.vmem [#allocation11], %s507
        %p509 = pneg %p163
        %p510 = pneg %p160
        %p511 = pneg %p189
        %p512 = pneg %p186
        %p513 = pneg %p215
        %p514 = pneg %p212
        %p515 = pneg %p241
        %p516 = pneg %p238
        %p517 = pneg %p267
        %p518 = pneg %p264
        %s519 = smul.u32 8, %s34
        %s520 = smul.u32 8, %s34
        %s521 = smul.u32 8, %s34
        %s522 = smul.u32 32, %s34
        %s523 = smul.u32 16, %s33
        %s524 = smul.u32 16, %s33
        %s525 = smul.u32 16, %s33
        %s526 = smul.u32 16, %s33
        %v528 = vld [vmem:[#allocation3] sm:$0xf]
        %v529 = vld [vmem:[%s437] sm:$0xff]
        %v530 = vld [vmem:[%s437 + $0x8] sm:$0xff]
        %v531 = vld [vmem:[%s437 + $0x10] sm:$0xff]
        %v532 = vld [vmem:[%s437 + $0x18] sm:$0xff]
        %v533 = vld [vmem:[%s437 + $0x20] sm:$0xff]
        %v534 = vld [vmem:[%s437 + $0x28] sm:$0xff]
        %v535 = vld [vmem:[%s437 + $0x30] sm:$0xff]
        %v536 = vld [vmem:[%s437 + $0x38] sm:$0xff]
        %v537 = vunpack.c.l.s8.bf16 %v529
        %v538 = vunpack.c.l.s8.bf16 %v530
        %v539 = vunpack.c.l.s8.bf16 %v531
        %v540 = vunpack.c.l.s8.bf16 %v532
        %v541 = vunpack.c.l.s8.bf16 %v533
        %v542 = vunpack.c.l.s8.bf16 %v534
        %v543 = vunpack.c.l.s8.bf16 %v535
        %v544 = vunpack.c.l.s8.bf16 %v536
        %v545 = vunpack.c.h.s8.bf16 %v529
        %v546 = vunpack.c.h.s8.bf16 %v530
        %v547 = vunpack.c.h.s8.bf16 %v531
        %v548 = vunpack.c.h.s8.bf16 %v532
        %v549 = vunpack.c.h.s8.bf16 %v533
        %v550 = vunpack.c.h.s8.bf16 %v534
        %v551 = vunpack.c.h.s8.bf16 %v535
        %v552 = vunpack.c.h.s8.bf16 %v536
        %vm553 = vcmask 261120
        %v555 = vsel %vm553, %v528, 0
        %557 = vmatprep.subr.bf16.mxu0 %v538
        %558 = vmatpush1.bf16.msra.mxu0 %v537
        %559 = vmatprep.subr.bf16.mxu0 %v546
        %560 = vmatpush1.bf16.msra.mxu0 %v545
        %561 = vmatprep.subr.bf16.mxu0 0
        %562 = vmatpush1.bf16.msra.mxu0 0
        %563 = vmatprep.subr.bf16.mxu0 0
        %564 = vmatpush1.bf16.msra.mxu0 0
        %565 = vmatprep.subr.bf16.mxu0 0
        %566 = vmatpush1.bf16.msra.mxu0 0
        %567 = vmatprep.subr.bf16.mxu0 0
        %568 = vmatpush1.bf16.msra.mxu0 0
        %569 = vmatprep.subr.bf16.mxu0 0
        %570 = vmatpush1.bf16.msra.mxu0 0
        %571 = vmatprep.subr.bf16.mxu0 0
        %572 = vmatpush1.bf16.msra.mxu0 0
        %573 = vmatprep.subr.bf16.mxu0 0
        %574 = vmatpush1.bf16.msra.mxu0 0
        %575 = vmatprep.subr.bf16.mxu0 0
        %576 = vmatpush1.bf16.msra.mxu0 0
        %577 = vmatprep.subr.bf16.mxu0 0
        %578 = vmatpush1.bf16.msra.mxu0 0
        %579 = vmatprep.subr.bf16.mxu0 0
        %580 = vmatpush1.bf16.msra.mxu0 0
        %581 = vmatprep.subr.bf16.mxu0 0
        %582 = vmatpush1.bf16.msra.mxu0 0
        %583 = vmatprep.subr.bf16.mxu0 0
        %584 = vmatpush1.bf16.msra.mxu0 0
        %585 = vmatprep.subr.bf16.mxu0 0
        %586 = vmatpush1.bf16.msra.mxu0 0
        %587 = vmatprep.subr.bf16.mxu0 0
        %588 = vmatpush1.bf16.msra.mxu0 0
        %589 = vmatprep.mubr.bf16.mxu0 0
        %590 = vmatmul.mubr.bf16.gmra.mrb[0].mxu0 %v555
        %v591 = vpop.f32.mrb[0].mxu0
        %v592 = vadd.f32 0.0, %v591
        %v593 = vpop.f32.mrb[0].mxu0
        %v594 = vadd.f32 0.0, %v593
        %v595 = vpop.f32.mrb[0].mxu0
        %v596 = vpop.f32.mrb[0].mxu0
        %597 = vdwg.mxu0
        %598 = vmatprep.subr.bf16.mxu0 %v540
        %599 = vmatpush1.bf16.msra.mxu0 %v539
        %600 = vmatprep.subr.bf16.mxu0 %v548
        %601 = vmatpush1.bf16.msra.mxu0 %v547
        %602 = vmatprep.subr.bf16.mxu0 0
        %603 = vmatpush1.bf16.msra.mxu0 0
        %604 = vmatprep.subr.bf16.mxu0 0
        %605 = vmatpush1.bf16.msra.mxu0 0
        %606 = vmatprep.subr.bf16.mxu0 0
        %607 = vmatpush1.bf16.msra.mxu0 0
        %608 = vmatprep.subr.bf16.mxu0 0
        %609 = vmatpush1.bf16.msra.mxu0 0
        %610 = vmatprep.subr.bf16.mxu0 0
        %611 = vmatpush1.bf16.msra.mxu0 0
        %612 = vmatprep.subr.bf16.mxu0 0
        %613 = vmatpush1.bf16.msra.mxu0 0
        %614 = vmatprep.subr.bf16.mxu0 0
        %615 = vmatpush1.bf16.msra.mxu0 0
        %616 = vmatprep.subr.bf16.mxu0 0
        %617 = vmatpush1.bf16.msra.mxu0 0
        %618 = vmatprep.subr.bf16.mxu0 0
        %619 = vmatpush1.bf16.msra.mxu0 0
        %620 = vmatprep.subr.bf16.mxu0 0
        %621 = vmatpush1.bf16.msra.mxu0 0
        %622 = vmatprep.subr.bf16.mxu0 0
        %623 = vmatpush1.bf16.msra.mxu0 0
        %624 = vmatprep.subr.bf16.mxu0 0
        %625 = vmatpush1.bf16.msra.mxu0 0
        %626 = vmatprep.subr.bf16.mxu0 0
        %627 = vmatpush1.bf16.msra.mxu0 0
        %628 = vmatprep.subr.bf16.mxu0 0
        %629 = vmatpush1.bf16.msra.mxu0 0
        %630 = vmatprep.mubr.bf16.mxu0 0
        %631 = vmatmul.mubr.bf16.gmra.mrb[0].mxu0 %v555
        %v632 = vpop.f32.mrb[0].mxu0
        %v633 = vadd.f32 0.0, %v632
        %v634 = vpop.f32.mrb[0].mxu0
        %v635 = vadd.f32 0.0, %v634
        %v636 = vpop.f32.mrb[0].mxu0
        %v637 = vpop.f32.mrb[0].mxu0
        %638 = vdwg.mxu0
        %639 = vmatprep.subr.bf16.mxu0 %v542
        %640 = vmatpush1.bf16.msra.mxu0 %v541
        %641 = vmatprep.subr.bf16.mxu0 %v550
        %642 = vmatpush1.bf16.msra.mxu0 %v549
        %643 = vmatprep.subr.bf16.mxu0 0
        %644 = vmatpush1.bf16.msra.mxu0 0
        %645 = vmatprep.subr.bf16.mxu0 0
        %646 = vmatpush1.bf16.msra.mxu0 0
        %647 = vmatprep.subr.bf16.mxu0 0
        %648 = vmatpush1.bf16.msra.mxu0 0
        %649 = vmatprep.subr.bf16.mxu0 0
        %650 = vmatpush1.bf16.msra.mxu0 0
        %651 = vmatprep.subr.bf16.mxu0 0
        %652 = vmatpush1.bf16.msra.mxu0 0
        %653 = vmatprep.subr.bf16.mxu0 0
        %654 = vmatpush1.bf16.msra.mxu0 0
        %655 = vmatprep.subr.bf16.mxu0 0
        %656 = vmatpush1.bf16.msra.mxu0 0
        %657 = vmatprep.subr.bf16.mxu0 0
        %658 = vmatpush1.bf16.msra.mxu0 0
        %659 = vmatprep.subr.bf16.mxu0 0
        %660 = vmatpush1.bf16.msra.mxu0 0
        %661 = vmatprep.subr.bf16.mxu0 0
        %662 = vmatpush1.bf16.msra.mxu0 0
        %663 = vmatprep.subr.bf16.mxu0 0
        %664 = vmatpush1.bf16.msra.mxu0 0
        %665 = vmatprep.subr.bf16.mxu0 0
        %666 = vmatpush1.bf16.msra.mxu0 0
        %667 = vmatprep.subr.bf16.mxu0 0
        %668 = vmatpush1.bf16.msra.mxu0 0
        %669 = vmatprep.subr.bf16.mxu0 0
        %670 = vmatpush1.bf16.msra.mxu0 0
        %671 = vmatprep.mubr.bf16.mxu0 0
        %672 = vmatmul.mubr.bf16.gmra.mrb[0].mxu0 %v555
        %v673 = vpop.f32.mrb[0].mxu0
        %v674 = vadd.f32 0.0, %v673
        %v675 = vpop.f32.mrb[0].mxu0
        %v676 = vadd.f32 0.0, %v675
        %v677 = vpop.f32.mrb[0].mxu0
        %v678 = vpop.f32.mrb[0].mxu0
        %679 = vdwg.mxu0
        %680 = vmatprep.subr.bf16.mxu0 %v544
        %681 = vmatpush1.bf16.msra.mxu0 %v543
        %682 = vmatprep.subr.bf16.mxu0 %v552
        %683 = vmatpush1.bf16.msra.mxu0 %v551
        %684 = vmatprep.subr.bf16.mxu0 0
        %685 = vmatpush1.bf16.msra.mxu0 0
        %686 = vmatprep.subr.bf16.mxu0 0
        %687 = vmatpush1.bf16.msra.mxu0 0
        %688 = vmatprep.subr.bf16.mxu0 0
        %689 = vmatpush1.bf16.msra.mxu0 0
        %690 = vmatprep.subr.bf16.mxu0 0
        %691 = vmatpush1.bf16.msra.mxu0 0
        %692 = vmatprep.subr.bf16.mxu0 0
        %693 = vmatpush1.bf16.msra.mxu0 0
        %694 = vmatprep.subr.bf16.mxu0 0
        %695 = vmatpush1.bf16.msra.mxu0 0
        %696 = vmatprep.subr.bf16.mxu0 0
        %697 = vmatpush1.bf16.msra.mxu0 0
        %698 = vmatprep.subr.bf16.mxu0 0
        %699 = vmatpush1.bf16.msra.mxu0 0
        %700 = vmatprep.subr.bf16.mxu0 0
        %701 = vmatpush1.bf16.msra.mxu0 0
        %702 = vmatprep.subr.bf16.mxu0 0
        %703 = vmatpush1.bf16.msra.mxu0 0
        %704 = vmatprep.subr.bf16.mxu0 0
        %705 = vmatpush1.bf16.msra.mxu0 0
        %706 = vmatprep.subr.bf16.mxu0 0
        %707 = vmatpush1.bf16.msra.mxu0 0
        %708 = vmatprep.subr.bf16.mxu0 0
        %709 = vmatpush1.bf16.msra.mxu0 0
        %710 = vmatprep.subr.bf16.mxu0 0
        %711 = vmatpush1.bf16.msra.mxu0 0
        %712 = vmatprep.mubr.bf16.mxu0 0
        %713 = vmatmul.mubr.bf16.gmra.mrb[0].mxu0 %v555
        %v714 = vpop.f32.mrb[0].mxu0
        %v715 = vadd.f32 0.0, %v714
        %v716 = vpop.f32.mrb[0].mxu0
        %v717 = vadd.f32 0.0, %v716
        %v718 = vpop.f32.mrb[0].mxu0
        %v719 = vpop.f32.mrb[0].mxu0
        %720 = vdwg.mxu0
        %v721 = vld [vmem:[%s446] sm:$0xff]
        %v723 = vlaneseq
        %v724 = vshrl.u32 %v723, 7
        %v725 = vsub.s32 0, %v724
        %v726 = vrot.slane %v721, %v725
        %v727 = vlaneseq
        %v728 = vshrl.u32 %v727, 7
        %v729 = vsub.s32 1, %v728
        %v730 = vrot.slane %v721, %v729
        %v731 = vlaneseq
        %v732 = vshrl.u32 %v731, 7
        %v733 = vsub.s32 2, %v732
        %v734 = vrot.slane %v721, %v733
        %v735 = vlaneseq
        %v736 = vshrl.u32 %v735, 7
        %v737 = vsub.s32 3, %v736
        %v738 = vrot.slane %v721, %v737
        %v739 = vlaneseq
        %v740 = vshrl.u32 %v739, 7
        %v741 = vsub.s32 4, %v740
        %v742 = vrot.slane %v721, %v741
        %v743 = vlaneseq
        %v744 = vshrl.u32 %v743, 7
        %v745 = vsub.s32 5, %v744
        %v746 = vrot.slane %v721, %v745
        %v747 = vlaneseq
        %v748 = vshrl.u32 %v747, 7
        %v749 = vsub.s32 6, %v748
        %v750 = vrot.slane %v721, %v749
        %v751 = vlaneseq
        %v752 = vshrl.u32 %v751, 7
        %v753 = vsub.s32 7, %v752
        %v754 = vrot.slane %v721, %v753
        %v763 = vmul.f32 %v592, %v726
        %v764 = vmul.f32 %v594, %v730
        %v765 = vmul.f32 %v633, %v734
        %v766 = vmul.f32 %v635, %v738
        %v767 = vmul.f32 %v674, %v742
        %v768 = vmul.f32 %v676, %v746
        %v769 = vmul.f32 %v715, %v750
        %v770 = vmul.f32 %v717, %v754
        %v771 = vld [vmem:[%s455] sm:$0xff]
        %v773 = vlaneseq
        %v774 = vshrl.u32 %v773, 7
        %v775 = vsub.s32 0, %v774
        %v776 = vrot.slane %v771, %v775
        %v777 = vlaneseq
        %v778 = vshrl.u32 %v777, 7
        %v779 = vsub.s32 1, %v778
        %v780 = vrot.slane %v771, %v779
        %v781 = vlaneseq
        %v782 = vshrl.u32 %v781, 7
        %v783 = vsub.s32 2, %v782
        %v784 = vrot.slane %v771, %v783
        %v785 = vlaneseq
        %v786 = vshrl.u32 %v785, 7
        %v787 = vsub.s32 3, %v786
        %v788 = vrot.slane %v771, %v787
        %v789 = vlaneseq
        %v790 = vshrl.u32 %v789, 7
        %v791 = vsub.s32 4, %v790
        %v792 = vrot.slane %v771, %v791
        %v793 = vlaneseq
        %v794 = vshrl.u32 %v793, 7
        %v795 = vsub.s32 5, %v794
        %v796 = vrot.slane %v771, %v795
        %v797 = vlaneseq
        %v798 = vshrl.u32 %v797, 7
        %v799 = vsub.s32 6, %v798
        %v800 = vrot.slane %v771, %v799
        %v801 = vlaneseq
        %v802 = vshrl.u32 %v801, 7
        %v803 = vsub.s32 7, %v802
        %v804 = vrot.slane %v771, %v803
        %v813 = vadd.f32 %v763, %v776
        %v814 = vadd.f32 %v764, %v780
        %v815 = vadd.f32 %v765, %v784
        %v816 = vadd.f32 %v766, %v788
        %v817 = vadd.f32 %v767, %v792
        %v818 = vadd.f32 %v768, %v796
        %v819 = vadd.f32 %v769, %v800
        %v820 = vadd.f32 %v770, %v804
        %v821 = vmax.f32 %v813, 0.0
        %v822 = vmax.f32 %v814, 0.0
        %v823 = vmax.f32 %v815, 0.0
        %v824 = vmax.f32 %v816, 0.0
        %v825 = vmax.f32 %v817, 0.0
        %v826 = vmax.f32 %v818, 0.0
        %v827 = vmax.f32 %v819, 0.0
        %v828 = vmax.f32 %v820, 0.0
        %v829 = vpack.c.bf16 %v821, %v821
        %v830 = vpack.c.bf16 %v822, %v822
        %v831 = vpack.c.bf16 %v823, %v823
        %v832 = vpack.c.bf16 %v824, %v824
        %v833 = vpack.c.bf16 %v825, %v825
        %v834 = vpack.c.bf16 %v826, %v826
        %v835 = vpack.c.bf16 %v827, %v827
        %v836 = vpack.c.bf16 %v828, %v828
        %v837 = vld [vmem:[%s464] sm:$0xff]
        %v838 = vld [vmem:[%s464 + $0x8] sm:$0xff]
        %v839 = vld [vmem:[%s464 + $0x10] sm:$0xff]
        %v840 = vld [vmem:[%s464 + $0x18] sm:$0xff]
        %v841 = vld [vmem:[%s464 + $0x20] sm:$0xff]
        %v842 = vld [vmem:[%s464 + $0x28] sm:$0xff]
        %v843 = vld [vmem:[%s464 + $0x30] sm:$0xff]
        %v844 = vld [vmem:[%s464 + $0x38] sm:$0xff]
        %v845 = vld [vmem:[%s464 + $0x40] sm:$0xff]
        %v846 = vld [vmem:[%s464 + $0x48] sm:$0xff]
        %v847 = vld [vmem:[%s464 + $0x50] sm:$0xff]
        %v848 = vld [vmem:[%s464 + $0x58] sm:$0xff]
        %v849 = vld [vmem:[%s464 + $0x60] sm:$0xff]
        %v850 = vld [vmem:[%s464 + $0x68] sm:$0xff]
        %v851 = vld [vmem:[%s464 + $0x70] sm:$0xff]
        %v852 = vld [vmem:[%s464 + $0x78] sm:$0xff]
        %v853 = vld [vmem:[%s464 + $0x80] sm:$0xff]
        %v854 = vld [vmem:[%s464 + $0x88] sm:$0xff]
        %v855 = vld [vmem:[%s464 + $0x90] sm:$0xff]
        %v856 = vld [vmem:[%s464 + $0x98] sm:$0xff]
        %v857 = vld [vmem:[%s464 + $0xa0] sm:$0xff]
        %v858 = vld [vmem:[%s464 + $0xa8] sm:$0xff]
        %v859 = vld [vmem:[%s464 + $0xb0] sm:$0xff]
        %v860 = vld [vmem:[%s464 + $0xb8] sm:$0xff]
        %v861 = vld [vmem:[%s464 + $0xc0] sm:$0xff]
        %v862 = vld [vmem:[%s464 + $0xc8] sm:$0xff]
        %v863 = vld [vmem:[%s464 + $0xd0] sm:$0xff]
        %v864 = vld [vmem:[%s464 + $0xd8] sm:$0xff]
        %v865 = vld [vmem:[%s464 + $0xe0] sm:$0xff]
        %v866 = vld [vmem:[%s464 + $0xe8] sm:$0xff]
        %v867 = vld [vmem:[%s464 + $0xf0] sm:$0xff]
        %v868 = vld [vmem:[%s464 + $0xf8] sm:$0xff]
        %v869 = vld [vmem:[%s464 + $0x100] sm:$0xff]
        %v870 = vld [vmem:[%s464 + $0x108] sm:$0xff]
        %v871 = vld [vmem:[%s464 + $0x110] sm:$0xff]
        %v872 = vld [vmem:[%s464 + $0x118] sm:$0xff]
        %v873 = vld [vmem:[%s464 + $0x120] sm:$0xff]
        %v874 = vld [vmem:[%s464 + $0x128] sm:$0xff]
        %v875 = vld [vmem:[%s464 + $0x130] sm:$0xff]
        %v876 = vld [vmem:[%s464 + $0x138] sm:$0xff]
        %v877 = vld [vmem:[%s464 + $0x140] sm:$0xff]
        %v878 = vld [vmem:[%s464 + $0x148] sm:$0xff]
        %v879 = vld [vmem:[%s464 + $0x150] sm:$0xff]
        %v880 = vld [vmem:[%s464 + $0x158] sm:$0xff]
        %v881 = vld [vmem:[%s464 + $0x160] sm:$0xff]
        %v882 = vld [vmem:[%s464 + $0x168] sm:$0xff]
        %v883 = vld [vmem:[%s464 + $0x170] sm:$0xff]
        %v884 = vld [vmem:[%s464 + $0x178] sm:$0xff]
        %v885 = vld [vmem:[%s464 + $0x180] sm:$0xff]
        %v886 = vld [vmem:[%s464 + $0x188] sm:$0xff]
        %v887 = vld [vmem:[%s464 + $0x190] sm:$0xff]
        %v888 = vld [vmem:[%s464 + $0x198] sm:$0xff]
        %v889 = vld [vmem:[%s464 + $0x1a0] sm:$0xff]
        %v890 = vld [vmem:[%s464 + $0x1a8] sm:$0xff]
        %v891 = vld [vmem:[%s464 + $0x1b0] sm:$0xff]
        %v892 = vld [vmem:[%s464 + $0x1b8] sm:$0xff]
        %v893 = vld [vmem:[%s464 + $0x1c0] sm:$0xff]
        %v894 = vld [vmem:[%s464 + $0x1c8] sm:$0xff]
        %v895 = vld [vmem:[%s464 + $0x1d0] sm:$0xff]
        %v896 = vld [vmem:[%s464 + $0x1d8] sm:$0xff]
        %v897 = vld [vmem:[%s464 + $0x1e0] sm:$0xff]
        %v898 = vld [vmem:[%s464 + $0x1e8] sm:$0xff]
        %v899 = vld [vmem:[%s464 + $0x1f0] sm:$0xff]
        %v900 = vld [vmem:[%s464 + $0x1f8] sm:$0xff]
        %v901 = vld [vmem:[%s464 + $0x200] sm:$0xff]
        %v902 = vld [vmem:[%s464 + $0x208] sm:$0xff]
        %v903 = vld [vmem:[%s464 + $0x210] sm:$0xff]
        %v904 = vld [vmem:[%s464 + $0x218] sm:$0xff]
        %v905 = vld [vmem:[%s464 + $0x220] sm:$0xff]
        %v906 = vld [vmem:[%s464 + $0x228] sm:$0xff]
        %v907 = vld [vmem:[%s464 + $0x230] sm:$0xff]
        %v908 = vld [vmem:[%s464 + $0x238] sm:$0xff]
        %v909 = vld [vmem:[%s464 + $0x240] sm:$0xff]
        %v910 = vld [vmem:[%s464 + $0x248] sm:$0xff]
        %v911 = vld [vmem:[%s464 + $0x250] sm:$0xff]
        %v912 = vld [vmem:[%s464 + $0x258] sm:$0xff]
        %v913 = vld [vmem:[%s464 + $0x260] sm:$0xff]
        %v914 = vld [vmem:[%s464 + $0x268] sm:$0xff]
        %v915 = vld [vmem:[%s464 + $0x270] sm:$0xff]
        %v916 = vld [vmem:[%s464 + $0x278] sm:$0xff]
        %v917 = vld [vmem:[%s464 + $0x280] sm:$0xff]
        %v918 = vld [vmem:[%s464 + $0x288] sm:$0xff]
        %v919 = vld [vmem:[%s464 + $0x290] sm:$0xff]
        %v920 = vld [vmem:[%s464 + $0x298] sm:$0xff]
        %v921 = vld [vmem:[%s464 + $0x2a0] sm:$0xff]
        %v922 = vld [vmem:[%s464 + $0x2a8] sm:$0xff]
        %v923 = vld [vmem:[%s464 + $0x2b0] sm:$0xff]
        %v924 = vld [vmem:[%s464 + $0x2b8] sm:$0xff]
        %v925 = vld [vmem:[%s464 + $0x2c0] sm:$0xff]
        %v926 = vld [vmem:[%s464 + $0x2c8] sm:$0xff]
        %v927 = vld [vmem:[%s464 + $0x2d0] sm:$0xff]
        %v928 = vld [vmem:[%s464 + $0x2d8] sm:$0xff]
        %v929 = vld [vmem:[%s464 + $0x2e0] sm:$0xff]
        %v930 = vld [vmem:[%s464 + $0x2e8] sm:$0xff]
        %v931 = vld [vmem:[%s464 + $0x2f0] sm:$0xff]
        %v932 = vld [vmem:[%s464 + $0x2f8] sm:$0xff]
        %v933 = vld [vmem:[%s464 + $0x300] sm:$0xff]
        %v934 = vld [vmem:[%s464 + $0x308] sm:$0xff]
        %v935 = vld [vmem:[%s464 + $0x310] sm:$0xff]
        %v936 = vld [vmem:[%s464 + $0x318] sm:$0xff]
        %v937 = vld [vmem:[%s464 + $0x320] sm:$0xff]
        %v938 = vld [vmem:[%s464 + $0x328] sm:$0xff]
        %v939 = vld [vmem:[%s464 + $0x330] sm:$0xff]
        %v940 = vld [vmem:[%s464 + $0x338] sm:$0xff]
        %v941 = vld [vmem:[%s464 + $0x340] sm:$0xff]
        %v942 = vld [vmem:[%s464 + $0x348] sm:$0xff]
        %v943 = vld [vmem:[%s464 + $0x350] sm:$0xff]
        %v944 = vld [vmem:[%s464 + $0x358] sm:$0xff]
        %v945 = vld [vmem:[%s464 + $0x360] sm:$0xff]
        %v946 = vld [vmem:[%s464 + $0x368] sm:$0xff]
        %v947 = vld [vmem:[%s464 + $0x370] sm:$0xff]
        %v948 = vld [vmem:[%s464 + $0x378] sm:$0xff]
        %v949 = vld [vmem:[%s464 + $0x380] sm:$0xff]
        %v950 = vld [vmem:[%s464 + $0x388] sm:$0xff]
        %v951 = vld [vmem:[%s464 + $0x390] sm:$0xff]
        %v952 = vld [vmem:[%s464 + $0x398] sm:$0xff]
        %v953 = vld [vmem:[%s464 + $0x3a0] sm:$0xff]
        %v954 = vld [vmem:[%s464 + $0x3a8] sm:$0xff]
        %v955 = vld [vmem:[%s464 + $0x3b0] sm:$0xff]
        %v956 = vld [vmem:[%s464 + $0x3b8] sm:$0xff]
        %v957 = vld [vmem:[%s464 + $0x3c0] sm:$0xff]
        %v958 = vld [vmem:[%s464 + $0x3c8] sm:$0xff]
        %v959 = vld [vmem:[%s464 + $0x3d0] sm:$0xff]
        %v960 = vld [vmem:[%s464 + $0x3d8] sm:$0xff]
        %v961 = vld [vmem:[%s464 + $0x3e0] sm:$0xff]
        %v962 = vld [vmem:[%s464 + $0x3e8] sm:$0xff]
        %v963 = vld [vmem:[%s464 + $0x3f0] sm:$0xff]
        %v964 = vld [vmem:[%s464 + $0x3f8] sm:$0xff]
        %v965 = vld [vmem:[%s464 + $0x400] sm:$0xff]
        %v966 = vld [vmem:[%s464 + $0x408] sm:$0xff]
        %v967 = vld [vmem:[%s464 + $0x410] sm:$0xff]
        %v968 = vld [vmem:[%s464 + $0x418] sm:$0xff]
        %v969 = vld [vmem:[%s464 + $0x420] sm:$0xff]
        %v970 = vld [vmem:[%s464 + $0x428] sm:$0xff]
        %v971 = vld [vmem:[%s464 + $0x430] sm:$0xff]
        %v972 = vld [vmem:[%s464 + $0x438] sm:$0xff]
        %v973 = vld [vmem:[%s464 + $0x440] sm:$0xff]
        %v974 = vld [vmem:[%s464 + $0x448] sm:$0xff]
        %v975 = vld [vmem:[%s464 + $0x450] sm:$0xff]
        %v976 = vld [vmem:[%s464 + $0x458] sm:$0xff]
        %v977 = vld [vmem:[%s464 + $0x460] sm:$0xff]
        %v978 = vld [vmem:[%s464 + $0x468] sm:$0xff]
        %v979 = vld [vmem:[%s464 + $0x470] sm:$0xff]
        %v980 = vld [vmem:[%s464 + $0x478] sm:$0xff]
        %v981 = vld [vmem:[%s464 + $0x480] sm:$0xff]
        %v982 = vld [vmem:[%s464 + $0x488] sm:$0xff]
        %v983 = vld [vmem:[%s464 + $0x490] sm:$0xff]
        %v984 = vld [vmem:[%s464 + $0x498] sm:$0xff]
        %v985 = vld [vmem:[%s464 + $0x4a0] sm:$0xff]
        %v986 = vld [vmem:[%s464 + $0x4a8] sm:$0xff]
        %v987 = vld [vmem:[%s464 + $0x4b0] sm:$0xff]
        %v988 = vld [vmem:[%s464 + $0x4b8] sm:$0xff]
        %v989 = vld [vmem:[%s464 + $0x4c0] sm:$0xff]
        %v990 = vld [vmem:[%s464 + $0x4c8] sm:$0xff]
        %v991 = vld [vmem:[%s464 + $0x4d0] sm:$0xff]
        %v992 = vld [vmem:[%s464 + $0x4d8] sm:$0xff]
        %v993 = vld [vmem:[%s464 + $0x4e0] sm:$0xff]
        %v994 = vld [vmem:[%s464 + $0x4e8] sm:$0xff]
        %v995 = vld [vmem:[%s464 + $0x4f0] sm:$0xff]
        %v996 = vld [vmem:[%s464 + $0x4f8] sm:$0xff]
        %v997 = vld [vmem:[%s464 + $0x500] sm:$0xff]
        %v998 = vld [vmem:[%s464 + $0x508] sm:$0xff]
        %v999 = vld [vmem:[%s464 + $0x510] sm:$0xff]
        %v1000 = vld [vmem:[%s464 + $0x518] sm:$0xff]
        %v1001 = vld [vmem:[%s464 + $0x520] sm:$0xff]
        %v1002 = vld [vmem:[%s464 + $0x528] sm:$0xff]
        %v1003 = vld [vmem:[%s464 + $0x530] sm:$0xff]
        %v1004 = vld [vmem:[%s464 + $0x538] sm:$0xff]
        %v1005 = vld [vmem:[%s464 + $0x540] sm:$0xff]
        %v1006 = vld [vmem:[%s464 + $0x548] sm:$0xff]
        %v1007 = vld [vmem:[%s464 + $0x550] sm:$0xff]
        %v1008 = vld [vmem:[%s464 + $0x558] sm:$0xff]
        %v1009 = vld [vmem:[%s464 + $0x560] sm:$0xff]
        %v1010 = vld [vmem:[%s464 + $0x568] sm:$0xff]
        %v1011 = vld [vmem:[%s464 + $0x570] sm:$0xff]
        %v1012 = vld [vmem:[%s464 + $0x578] sm:$0xff]
        %v1013 = vld [vmem:[%s464 + $0x580] sm:$0xff]
        %v1014 = vld [vmem:[%s464 + $0x588] sm:$0xff]
        %v1015 = vld [vmem:[%s464 + $0x590] sm:$0xff]
        %v1016 = vld [vmem:[%s464 + $0x598] sm:$0xff]
        %v1017 = vld [vmem:[%s464 + $0x5a0] sm:$0xff]
        %v1018 = vld [vmem:[%s464 + $0x5a8] sm:$0xff]
        %v1019 = vld [vmem:[%s464 + $0x5b0] sm:$0xff]
        %v1020 = vld [vmem:[%s464 + $0x5b8] sm:$0xff]
        %v1021 = vld [vmem:[%s464 + $0x5c0] sm:$0xff]
        %v1022 = vld [vmem:[%s464 + $0x5c8] sm:$0xff]
        %v1023 = vld [vmem:[%s464 + $0x5d0] sm:$0xff]
        %v1024 = vld [vmem:[%s464 + $0x5d8] sm:$0xff]
        %v1025 = vld [vmem:[%s464 + $0x5e0] sm:$0xff]
        %v1026 = vld [vmem:[%s464 + $0x5e8] sm:$0xff]
        %v1027 = vld [vmem:[%s464 + $0x5f0] sm:$0xff]
        %v1028 = vld [vmem:[%s464 + $0x5f8] sm:$0xff]
        %v1029 = vld [vmem:[%s464 + $0x600] sm:$0xff]
        %v1030 = vld [vmem:[%s464 + $0x608] sm:$0xff]
        %v1031 = vld [vmem:[%s464 + $0x610] sm:$0xff]
        %v1032 = vld [vmem:[%s464 + $0x618] sm:$0xff]
        %v1033 = vld [vmem:[%s464 + $0x620] sm:$0xff]
        %v1034 = vld [vmem:[%s464 + $0x628] sm:$0xff]
        %v1035 = vld [vmem:[%s464 + $0x630] sm:$0xff]
        %v1036 = vld [vmem:[%s464 + $0x638] sm:$0xff]
        %v1037 = vld [vmem:[%s464 + $0x640] sm:$0xff]
        %v1038 = vld [vmem:[%s464 + $0x648] sm:$0xff]
        %v1039 = vld [vmem:[%s464 + $0x650] sm:$0xff]
        %v1040 = vld [vmem:[%s464 + $0x658] sm:$0xff]
        %v1041 = vld [vmem:[%s464 + $0x660] sm:$0xff]
        %v1042 = vld [vmem:[%s464 + $0x668] sm:$0xff]
        %v1043 = vld [vmem:[%s464 + $0x670] sm:$0xff]
        %v1044 = vld [vmem:[%s464 + $0x678] sm:$0xff]
        %v1045 = vld [vmem:[%s464 + $0x680] sm:$0xff]
        %v1046 = vld [vmem:[%s464 + $0x688] sm:$0xff]
        %v1047 = vld [vmem:[%s464 + $0x690] sm:$0xff]
        %v1048 = vld [vmem:[%s464 + $0x698] sm:$0xff]
        %v1049 = vld [vmem:[%s464 + $0x6a0] sm:$0xff]
        %v1050 = vld [vmem:[%s464 + $0x6a8] sm:$0xff]
        %v1051 = vld [vmem:[%s464 + $0x6b0] sm:$0xff]
        %v1052 = vld [vmem:[%s464 + $0x6b8] sm:$0xff]
        %v1053 = vld [vmem:[%s464 + $0x6c0] sm:$0xff]
        %v1054 = vld [vmem:[%s464 + $0x6c8] sm:$0xff]
        %v1055 = vld [vmem:[%s464 + $0x6d0] sm:$0xff]
        %v1056 = vld [vmem:[%s464 + $0x6d8] sm:$0xff]
        %v1057 = vld [vmem:[%s464 + $0x6e0] sm:$0xff]
        %v1058 = vld [vmem:[%s464 + $0x6e8] sm:$0xff]
        %v1059 = vld [vmem:[%s464 + $0x6f0] sm:$0xff]
        %v1060 = vld [vmem:[%s464 + $0x6f8] sm:$0xff]
        %v1061 = vld [vmem:[%s464 + $0x700] sm:$0xff]
        %v1062 = vld [vmem:[%s464 + $0x708] sm:$0xff]
        %v1063 = vld [vmem:[%s464 + $0x710] sm:$0xff]
        %v1064 = vld [vmem:[%s464 + $0x718] sm:$0xff]
        %v1065 = vld [vmem:[%s464 + $0x720] sm:$0xff]
        %v1066 = vld [vmem:[%s464 + $0x728] sm:$0xff]
        %v1067 = vld [vmem:[%s464 + $0x730] sm:$0xff]
        %v1068 = vld [vmem:[%s464 + $0x738] sm:$0xff]
        %v1069 = vld [vmem:[%s464 + $0x740] sm:$0xff]
        %v1070 = vld [vmem:[%s464 + $0x748] sm:$0xff]
        %v1071 = vld [vmem:[%s464 + $0x750] sm:$0xff]
        %v1072 = vld [vmem:[%s464 + $0x758] sm:$0xff]
        %v1073 = vld [vmem:[%s464 + $0x760] sm:$0xff]
        %v1074 = vld [vmem:[%s464 + $0x768] sm:$0xff]
        %v1075 = vld [vmem:[%s464 + $0x770] sm:$0xff]
        %v1076 = vld [vmem:[%s464 + $0x778] sm:$0xff]
        %v1077 = vld [vmem:[%s464 + $0x780] sm:$0xff]
        %v1078 = vld [vmem:[%s464 + $0x788] sm:$0xff]
        %v1079 = vld [vmem:[%s464 + $0x790] sm:$0xff]
        %v1080 = vld [vmem:[%s464 + $0x798] sm:$0xff]
        %v1081 = vld [vmem:[%s464 + $0x7a0] sm:$0xff]
        %v1082 = vld [vmem:[%s464 + $0x7a8] sm:$0xff]
        %v1083 = vld [vmem:[%s464 + $0x7b0] sm:$0xff]
        %v1084 = vld [vmem:[%s464 + $0x7b8] sm:$0xff]
        %v1085 = vld [vmem:[%s464 + $0x7c0] sm:$0xff]
        %v1086 = vld [vmem:[%s464 + $0x7c8] sm:$0xff]
        %v1087 = vld [vmem:[%s464 + $0x7d0] sm:$0xff]
        %v1088 = vld [vmem:[%s464 + $0x7d8] sm:$0xff]
        %v1089 = vld [vmem:[%s464 + $0x7e0] sm:$0xff]
        %v1090 = vld [vmem:[%s464 + $0x7e8] sm:$0xff]
        %v1091 = vld [vmem:[%s464 + $0x7f0] sm:$0xff]
        %v1092 = vld [vmem:[%s464 + $0x7f8] sm:$0xff]
        %v1093 = vld [vmem:[%s464 + $0x800] sm:$0xff]
        %v1094 = vld [vmem:[%s464 + $0x808] sm:$0xff]
        %v1095 = vld [vmem:[%s464 + $0x810] sm:$0xff]
        %v1096 = vld [vmem:[%s464 + $0x818] sm:$0xff]
        %v1097 = vld [vmem:[%s464 + $0x820] sm:$0xff]
        %v1098 = vld [vmem:[%s464 + $0x828] sm:$0xff]
        %v1099 = vld [vmem:[%s464 + $0x830] sm:$0xff]
        %v1100 = vld [vmem:[%s464 + $0x838] sm:$0xff]
        %v1101 = vld [vmem:[%s464 + $0x840] sm:$0xff]
        %v1102 = vld [vmem:[%s464 + $0x848] sm:$0xff]
        %v1103 = vld [vmem:[%s464 + $0x850] sm:$0xff]
        %v1104 = vld [vmem:[%s464 + $0x858] sm:$0xff]
        %v1105 = vld [vmem:[%s464 + $0x860] sm:$0xff]
        %v1106 = vld [vmem:[%s464 + $0x868] sm:$0xff]
        %v1107 = vld [vmem:[%s464 + $0x870] sm:$0xff]
        %v1108 = vld [vmem:[%s464 + $0x878] sm:$0xff]
        %v1109 = vld [vmem:[%s464 + $0x880] sm:$0xff]
        %v1110 = vld [vmem:[%s464 + $0x888] sm:$0xff]
        %v1111 = vld [vmem:[%s464 + $0x890] sm:$0xff]
        %v1112 = vld [vmem:[%s464 + $0x898] sm:$0xff]
        %v1113 = vld [vmem:[%s464 + $0x8a0] sm:$0xff]
        %v1114 = vld [vmem:[%s464 + $0x8a8] sm:$0xff]
        %v1115 = vld [vmem:[%s464 + $0x8b0] sm:$0xff]
        %v1116 = vld [vmem:[%s464 + $0x8b8] sm:$0xff]
        %v1117 = vld [vmem:[%s464 + $0x8c0] sm:$0xff]
        %v1118 = vld [vmem:[%s464 + $0x8c8] sm:$0xff]
        %v1119 = vld [vmem:[%s464 + $0x8d0] sm:$0xff]
        %v1120 = vld [vmem:[%s464 + $0x8d8] sm:$0xff]
        %v1121 = vld [vmem:[%s464 + $0x8e0] sm:$0xff]
        %v1122 = vld [vmem:[%s464 + $0x8e8] sm:$0xff]
        %v1123 = vld [vmem:[%s464 + $0x8f0] sm:$0xff]
        %v1124 = vld [vmem:[%s464 + $0x8f8] sm:$0xff]
        %v1125 = vld [vmem:[%s464 + $0x900] sm:$0xff]
        %v1126 = vld [vmem:[%s464 + $0x908] sm:$0xff]
        %v1127 = vld [vmem:[%s464 + $0x910] sm:$0xff]
        %v1128 = vld [vmem:[%s464 + $0x918] sm:$0xff]
        %v1129 = vld [vmem:[%s464 + $0x920] sm:$0xff]
        %v1130 = vld [vmem:[%s464 + $0x928] sm:$0xff]
        %v1131 = vld [vmem:[%s464 + $0x930] sm:$0xff]
        %v1132 = vld [vmem:[%s464 + $0x938] sm:$0xff]
        %v1133 = vld [vmem:[%s464 + $0x940] sm:$0xff]
        %v1134 = vld [vmem:[%s464 + $0x948] sm:$0xff]
        %v1135 = vld [vmem:[%s464 + $0x950] sm:$0xff]
        %v1136 = vld [vmem:[%s464 + $0x958] sm:$0xff]
        %v1137 = vld [vmem:[%s464 + $0x960] sm:$0xff]
        %v1138 = vld [vmem:[%s464 + $0x968] sm:$0xff]
        %v1139 = vld [vmem:[%s464 + $0x970] sm:$0xff]
        %v1140 = vld [vmem:[%s464 + $0x978] sm:$0xff]
        %v1141 = vld [vmem:[%s464 + $0x980] sm:$0xff]
        %v1142 = vld [vmem:[%s464 + $0x988] sm:$0xff]
        %v1143 = vld [vmem:[%s464 + $0x990] sm:$0xff]
        %v1144 = vld [vmem:[%s464 + $0x998] sm:$0xff]
        %v1145 = vld [vmem:[%s464 + $0x9a0] sm:$0xff]
        %v1146 = vld [vmem:[%s464 + $0x9a8] sm:$0xff]
        %v1147 = vld [vmem:[%s464 + $0x9b0] sm:$0xff]
        %v1148 = vld [vmem:[%s464 + $0x9b8] sm:$0xff]
        %v1149 = vld [vmem:[%s464 + $0x9c0] sm:$0xff]
        %v1150 = vld [vmem:[%s464 + $0x9c8] sm:$0xff]
        %v1151 = vld [vmem:[%s464 + $0x9d0] sm:$0xff]
        %v1152 = vld [vmem:[%s464 + $0x9d8] sm:$0xff]
        %v1153 = vld [vmem:[%s464 + $0x9e0] sm:$0xff]
        %v1154 = vld [vmem:[%s464 + $0x9e8] sm:$0xff]
        %v1155 = vld [vmem:[%s464 + $0x9f0] sm:$0xff]
        %v1156 = vld [vmem:[%s464 + $0x9f8] sm:$0xff]
        %v1157 = vld [vmem:[%s464 + $0xa00] sm:$0xff]
        %v1158 = vld [vmem:[%s464 + $0xa08] sm:$0xff]
        %v1159 = vld [vmem:[%s464 + $0xa10] sm:$0xff]
        %v1160 = vld [vmem:[%s464 + $0xa18] sm:$0xff]
        %v1161 = vld [vmem:[%s464 + $0xa20] sm:$0xff]
        %v1162 = vld [vmem:[%s464 + $0xa28] sm:$0xff]
        %v1163 = vld [vmem:[%s464 + $0xa30] sm:$0xff]
        %v1164 = vld [vmem:[%s464 + $0xa38] sm:$0xff]
        %v1165 = vld [vmem:[%s464 + $0xa40] sm:$0xff]
        %v1166 = vld [vmem:[%s464 + $0xa48] sm:$0xff]
        %v1167 = vld [vmem:[%s464 + $0xa50] sm:$0xff]
        %v1168 = vld [vmem:[%s464 + $0xa58] sm:$0xff]
        %v1169 = vld [vmem:[%s464 + $0xa60] sm:$0xff]
        %v1170 = vld [vmem:[%s464 + $0xa68] sm:$0xff]
        %v1171 = vld [vmem:[%s464 + $0xa70] sm:$0xff]
        %v1172 = vld [vmem:[%s464 + $0xa78] sm:$0xff]
        %v1173 = vld [vmem:[%s464 + $0xa80] sm:$0xff]
        %v1174 = vld [vmem:[%s464 + $0xa88] sm:$0xff]
        %v1175 = vld [vmem:[%s464 + $0xa90] sm:$0xff]
        %v1176 = vld [vmem:[%s464 + $0xa98] sm:$0xff]
        %v1177 = vld [vmem:[%s464 + $0xaa0] sm:$0xff]
        %v1178 = vld [vmem:[%s464 + $0xaa8] sm:$0xff]
        %v1179 = vld [vmem:[%s464 + $0xab0] sm:$0xff]
        %v1180 = vld [vmem:[%s464 + $0xab8] sm:$0xff]
        %v1181 = vld [vmem:[%s464 + $0xac0] sm:$0xff]
        %v1182 = vld [vmem:[%s464 + $0xac8] sm:$0xff]
        %v1183 = vld [vmem:[%s464 + $0xad0] sm:$0xff]
        %v1184 = vld [vmem:[%s464 + $0xad8] sm:$0xff]
        %v1185 = vld [vmem:[%s464 + $0xae0] sm:$0xff]
        %v1186 = vld [vmem:[%s464 + $0xae8] sm:$0xff]
        %v1187 = vld [vmem:[%s464 + $0xaf0] sm:$0xff]
        %v1188 = vld [vmem:[%s464 + $0xaf8] sm:$0xff]
        %v1189 = vld [vmem:[%s464 + $0xb00] sm:$0xff]
        %v1190 = vld [vmem:[%s464 + $0xb08] sm:$0xff]
        %v1191 = vld [vmem:[%s464 + $0xb10] sm:$0xff]
        %v1192 = vld [vmem:[%s464 + $0xb18] sm:$0xff]
        %v1193 = vld [vmem:[%s464 + $0xb20] sm:$0xff]
        %v1194 = vld [vmem:[%s464 + $0xb28] sm:$0xff]
        %v1195 = vld [vmem:[%s464 + $0xb30] sm:$0xff]
        %v1196 = vld [vmem:[%s464 + $0xb38] sm:$0xff]
        %v1197 = vld [vmem:[%s464 + $0xb40] sm:$0xff]
        %v1198 = vld [vmem:[%s464 + $0xb48] sm:$0xff]
        %v1199 = vld [vmem:[%s464 + $0xb50] sm:$0xff]
        %v1200 = vld [vmem:[%s464 + $0xb58] sm:$0xff]
        %v1201 = vld [vmem:[%s464 + $0xb60] sm:$0xff]
        %v1202 = vld [vmem:[%s464 + $0xb68] sm:$0xff]
        %v1203 = vld [vmem:[%s464 + $0xb70] sm:$0xff]
        %v1204 = vld [vmem:[%s464 + $0xb78] sm:$0xff]
        %v1205 = vld [vmem:[%s464 + $0xb80] sm:$0xff]
        %v1206 = vld [vmem:[%s464 + $0xb88] sm:$0xff]
        %v1207 = vld [vmem:[%s464 + $0xb90] sm:$0xff]
        %v1208 = vld [vmem:[%s464 + $0xb98] sm:$0xff]
        %v1209 = vld [vmem:[%s464 + $0xba0] sm:$0xff]
        %v1210 = vld [vmem:[%s464 + $0xba8] sm:$0xff]
        %v1211 = vld [vmem:[%s464 + $0xbb0] sm:$0xff]
        %v1212 = vld [vmem:[%s464 + $0xbb8] sm:$0xff]
        %v1213 = vld [vmem:[%s464 + $0xbc0] sm:$0xff]
        %v1214 = vld [vmem:[%s464 + $0xbc8] sm:$0xff]
        %v1215 = vld [vmem:[%s464 + $0xbd0] sm:$0xff]
        %v1216 = vld [vmem:[%s464 + $0xbd8] sm:$0xff]
        %v1217 = vld [vmem:[%s464 + $0xbe0] sm:$0xff]
        %v1218 = vld [vmem:[%s464 + $0xbe8] sm:$0xff]
        %v1219 = vld [vmem:[%s464 + $0xbf0] sm:$0xff]
        %v1220 = vld [vmem:[%s464 + $0xbf8] sm:$0xff]
        %v1221 = vld [vmem:[%s464 + $0xc00] sm:$0xff]
        %v1222 = vld [vmem:[%s464 + $0xc08] sm:$0xff]
        %v1223 = vld [vmem:[%s464 + $0xc10] sm:$0xff]
        %v1224 = vld [vmem:[%s464 + $0xc18] sm:$0xff]
        %v1225 = vld [vmem:[%s464 + $0xc20] sm:$0xff]
        %v1226 = vld [vmem:[%s464 + $0xc28] sm:$0xff]
        %v1227 = vld [vmem:[%s464 + $0xc30] sm:$0xff]
        %v1228 = vld [vmem:[%s464 + $0xc38] sm:$0xff]
        %v1229 = vld [vmem:[%s464 + $0xc40] sm:$0xff]
        %v1230 = vld [vmem:[%s464 + $0xc48] sm:$0xff]
        %v1231 = vld [vmem:[%s464 + $0xc50] sm:$0xff]
        %v1232 = vld [vmem:[%s464 + $0xc58] sm:$0xff]
        %v1233 = vld [vmem:[%s464 + $0xc60] sm:$0xff]
        %v1234 = vld [vmem:[%s464 + $0xc68] sm:$0xff]
        %v1235 = vld [vmem:[%s464 + $0xc70] sm:$0xff]
        %v1236 = vld [vmem:[%s464 + $0xc78] sm:$0xff]
        %v1237 = vld [vmem:[%s464 + $0xc80] sm:$0xff]
        %v1238 = vld [vmem:[%s464 + $0xc88] sm:$0xff]
        %v1239 = vld [vmem:[%s464 + $0xc90] sm:$0xff]
        %v1240 = vld [vmem:[%s464 + $0xc98] sm:$0xff]
        %v1241 = vld [vmem:[%s464 + $0xca0] sm:$0xff]
        %v1242 = vld [vmem:[%s464 + $0xca8] sm:$0xff]
        %v1243 = vld [vmem:[%s464 + $0xcb0] sm:$0xff]
        %v1244 = vld [vmem:[%s464 + $0xcb8] sm:$0xff]
        %v1245 = vld [vmem:[%s464 + $0xcc0] sm:$0xff]
        %v1246 = vld [vmem:[%s464 + $0xcc8] sm:$0xff]
        %v1247 = vld [vmem:[%s464 + $0xcd0] sm:$0xff]
        %v1248 = vld [vmem:[%s464 + $0xcd8] sm:$0xff]
        %v1249 = vld [vmem:[%s464 + $0xce0] sm:$0xff]
        %v1250 = vld [vmem:[%s464 + $0xce8] sm:$0xff]
        %v1251 = vld [vmem:[%s464 + $0xcf0] sm:$0xff]
        %v1252 = vld [vmem:[%s464 + $0xcf8] sm:$0xff]
        %v1253 = vld [vmem:[%s464 + $0xd00] sm:$0xff]
        %v1254 = vld [vmem:[%s464 + $0xd08] sm:$0xff]
        %v1255 = vld [vmem:[%s464 + $0xd10] sm:$0xff]
        %v1256 = vld [vmem:[%s464 + $0xd18] sm:$0xff]
        %v1257 = vld [vmem:[%s464 + $0xd20] sm:$0xff]
        %v1258 = vld [vmem:[%s464 + $0xd28] sm:$0xff]
        %v1259 = vld [vmem:[%s464 + $0xd30] sm:$0xff]
        %v1260 = vld [vmem:[%s464 + $0xd38] sm:$0xff]
        %v1261 = vld [vmem:[%s464 + $0xd40] sm:$0xff]
        %v1262 = vld [vmem:[%s464 + $0xd48] sm:$0xff]
        %v1263 = vld [vmem:[%s464 + $0xd50] sm:$0xff]
        %v1264 = vld [vmem:[%s464 + $0xd58] sm:$0xff]
        %v1265 = vld [vmem:[%s464 + $0xd60] sm:$0xff]
        %v1266 = vld [vmem:[%s464 + $0xd68] sm:$0xff]
        %v1267 = vld [vmem:[%s464 + $0xd70] sm:$0xff]
        %v1268 = vld [vmem:[%s464 + $0xd78] sm:$0xff]
        %v1269 = vld [vmem:[%s464 + $0xd80] sm:$0xff]
        %v1270 = vld [vmem:[%s464 + $0xd88] sm:$0xff]
        %v1271 = vld [vmem:[%s464 + $0xd90] sm:$0xff]
        %v1272 = vld [vmem:[%s464 + $0xd98] sm:$0xff]
        %v1273 = vld [vmem:[%s464 + $0xda0] sm:$0xff]
        %v1274 = vld [vmem:[%s464 + $0xda8] sm:$0xff]
        %v1275 = vld [vmem:[%s464 + $0xdb0] sm:$0xff]
        %v1276 = vld [vmem:[%s464 + $0xdb8] sm:$0xff]
        %v1277 = vld [vmem:[%s464 + $0xdc0] sm:$0xff]
        %v1278 = vld [vmem:[%s464 + $0xdc8] sm:$0xff]
        %v1279 = vld [vmem:[%s464 + $0xdd0] sm:$0xff]
        %v1280 = vld [vmem:[%s464 + $0xdd8] sm:$0xff]
        %v1281 = vld [vmem:[%s464 + $0xde0] sm:$0xff]
        %v1282 = vld [vmem:[%s464 + $0xde8] sm:$0xff]
        %v1283 = vld [vmem:[%s464 + $0xdf0] sm:$0xff]
        %v1284 = vld [vmem:[%s464 + $0xdf8] sm:$0xff]
        %v1285 = vld [vmem:[%s464 + $0xe00] sm:$0xff]
        %v1286 = vld [vmem:[%s464 + $0xe08] sm:$0xff]
        %v1287 = vld [vmem:[%s464 + $0xe10] sm:$0xff]
        %v1288 = vld [vmem:[%s464 + $0xe18] sm:$0xff]
        %v1289 = vld [vmem:[%s464 + $0xe20] sm:$0xff]
        %v1290 = vld [vmem:[%s464 + $0xe28] sm:$0xff]
        %v1291 = vld [vmem:[%s464 + $0xe30] sm:$0xff]
        %v1292 = vld [vmem:[%s464 + $0xe38] sm:$0xff]
        %v1293 = vld [vmem:[%s464 + $0xe40] sm:$0xff]
        %v1294 = vld [vmem:[%s464 + $0xe48] sm:$0xff]
        %v1295 = vld [vmem:[%s464 + $0xe50] sm:$0xff]
        %v1296 = vld [vmem:[%s464 + $0xe58] sm:$0xff]
        %v1297 = vld [vmem:[%s464 + $0xe60] sm:$0xff]
        %v1298 = vld [vmem:[%s464 + $0xe68] sm:$0xff]
        %v1299 = vld [vmem:[%s464 + $0xe70] sm:$0xff]
        %v1300 = vld [vmem:[%s464 + $0xe78] sm:$0xff]
        %v1301 = vld [vmem:[%s464 + $0xe80] sm:$0xff]
        %v1302 = vld [vmem:[%s464 + $0xe88] sm:$0xff]
        %v1303 = vld [vmem:[%s464 + $0xe90] sm:$0xff]
        %v1304 = vld [vmem:[%s464 + $0xe98] sm:$0xff]
        %v1305 = vld [vmem:[%s464 + $0xea0] sm:$0xff]
        %v1306 = vld [vmem:[%s464 + $0xea8] sm:$0xff]
        %v1307 = vld [vmem:[%s464 + $0xeb0] sm:$0xff]
        %v1308 = vld [vmem:[%s464 + $0xeb8] sm:$0xff]
        %v1309 = vld [vmem:[%s464 + $0xec0] sm:$0xff]
        %v1310 = vld [vmem:[%s464 + $0xec8] sm:$0xff]
        %v1311 = vld [vmem:[%s464 + $0xed0] sm:$0xff]
        %v1312 = vld [vmem:[%s464 + $0xed8] sm:$0xff]
        %v1313 = vld [vmem:[%s464 + $0xee0] sm:$0xff]
        %v1314 = vld [vmem:[%s464 + $0xee8] sm:$0xff]
        %v1315 = vld [vmem:[%s464 + $0xef0] sm:$0xff]
        %v1316 = vld [vmem:[%s464 + $0xef8] sm:$0xff]
        %v1317 = vld [vmem:[%s464 + $0xf00] sm:$0xff]
        %v1318 = vld [vmem:[%s464 + $0xf08] sm:$0xff]
        %v1319 = vld [vmem:[%s464 + $0xf10] sm:$0xff]
        %v1320 = vld [vmem:[%s464 + $0xf18] sm:$0xff]
        %v1321 = vld [vmem:[%s464 + $0xf20] sm:$0xff]
        %v1322 = vld [vmem:[%s464 + $0xf28] sm:$0xff]
        %v1323 = vld [vmem:[%s464 + $0xf30] sm:$0xff]
        %v1324 = vld [vmem:[%s464 + $0xf38] sm:$0xff]
        %v1325 = vld [vmem:[%s464 + $0xf40] sm:$0xff]
        %v1326 = vld [vmem:[%s464 + $0xf48] sm:$0xff]
        %v1327 = vld [vmem:[%s464 + $0xf50] sm:$0xff]
        %v1328 = vld [vmem:[%s464 + $0xf58] sm:$0xff]
        %v1329 = vld [vmem:[%s464 + $0xf60] sm:$0xff]
        %v1330 = vld [vmem:[%s464 + $0xf68] sm:$0xff]
        %v1331 = vld [vmem:[%s464 + $0xf70] sm:$0xff]
        %v1332 = vld [vmem:[%s464 + $0xf78] sm:$0xff]
        %v1333 = vld [vmem:[%s464 + $0xf80] sm:$0xff]
        %v1334 = vld [vmem:[%s464 + $0xf88] sm:$0xff]
        %v1335 = vld [vmem:[%s464 + $0xf90] sm:$0xff]
        %v1336 = vld [vmem:[%s464 + $0xf98] sm:$0xff]
        %v1337 = vld [vmem:[%s464 + $0xfa0] sm:$0xff]
        %v1338 = vld [vmem:[%s464 + $0xfa8] sm:$0xff]
        %v1339 = vld [vmem:[%s464 + $0xfb0] sm:$0xff]
        %v1340 = vld [vmem:[%s464 + $0xfb8] sm:$0xff]
        %v1341 = vld [vmem:[%s464 + $0xfc0] sm:$0xff]
        %v1342 = vld [vmem:[%s464 + $0xfc8] sm:$0xff]
        %v1343 = vld [vmem:[%s464 + $0xfd0] sm:$0xff]
        %v1344 = vld [vmem:[%s464 + $0xfd8] sm:$0xff]
        %v1345 = vld [vmem:[%s464 + $0xfe0] sm:$0xff]
        %v1346 = vld [vmem:[%s464 + $0xfe8] sm:$0xff]
        %v1347 = vld [vmem:[%s464 + $0xff0] sm:$0xff]
        %v1348 = vld [vmem:[%s464 + $0xff8] sm:$0xff]
        %v1349 = vunpack.c.l.s8.bf16 %v837
        %v1350 = vunpack.c.l.s8.bf16 %v838
        %v1351 = vunpack.c.l.s8.bf16 %v839
        %v1352 = vunpack.c.l.s8.bf16 %v840
        %v1353 = vunpack.c.l.s8.bf16 %v841
        %v1354 = vunpack.c.l.s8.bf16 %v842
        %v1355 = vunpack.c.l.s8.bf16 %v843
        %v1356 = vunpack.c.l.s8.bf16 %v844
        %v1357 = vunpack.c.l.s8.bf16 %v845
        %v1358 = vunpack.c.l.s8.bf16 %v846
        %v1359 = vunpack.c.l.s8.bf16 %v847
        %v1360 = vunpack.c.l.s8.bf16 %v848
        %v1361 = vunpack.c.l.s8.bf16 %v849
        %v1362 = vunpack.c.l.s8.bf16 %v850
        %v1363 = vunpack.c.l.s8.bf16 %v851
        %v1364 = vunpack.c.l.s8.bf16 %v852
        %v1365 = vunpack.c.h.s8.bf16 %v837
        %v1366 = vunpack.c.h.s8.bf16 %v838
        %v1367 = vunpack.c.h.s8.bf16 %v839
        %v1368 = vunpack.c.h.s8.bf16 %v840
        %v1369 = vunpack.c.h.s8.bf16 %v841
        %v1370 = vunpack.c.h.s8.bf16 %v842
        %v1371 = vunpack.c.h.s8.bf16 %v843
        %v1372 = vunpack.c.h.s8.bf16 %v844
        %v1373 = vunpack.c.h.s8.bf16 %v845
        %v1374 = vunpack.c.h.s8.bf16 %v846
        %v1375 = vunpack.c.h.s8.bf16 %v847
        %v1376 = vunpack.c.h.s8.bf16 %v848
        %v1377 = vunpack.c.h.s8.bf16 %v849
        %v1378 = vunpack.c.h.s8.bf16 %v850
        %v1379 = vunpack.c.h.s8.bf16 %v851
        %v1380 = vunpack.c.h.s8.bf16 %v852
        %v1381 = vunpack.c.l.s8.bf16 %v853
        %v1382 = vunpack.c.l.s8.bf16 %v854
        %v1383 = vunpack.c.l.s8.bf16 %v855
        %v1384 = vunpack.c.l.s8.bf16 %v856
        %v1385 = vunpack.c.l.s8.bf16 %v857
        %v1386 = vunpack.c.l.s8.bf16 %v858
        %v1387 = vunpack.c.l.s8.bf16 %v859
        %v1388 = vunpack.c.l.s8.bf16 %v860
        %v1389 = vunpack.c.l.s8.bf16 %v861
        %v1390 = vunpack.c.l.s8.bf16 %v862
        %v1391 = vunpack.c.l.s8.bf16 %v863
        %v1392 = vunpack.c.l.s8.bf16 %v864
        %v1393 = vunpack.c.l.s8.bf16 %v865
        %v1394 = vunpack.c.l.s8.bf16 %v866
        %v1395 = vunpack.c.l.s8.bf16 %v867
        %v1396 = vunpack.c.l.s8.bf16 %v868
        %v1397 = vunpack.c.h.s8.bf16 %v853
        %v1398 = vunpack.c.h.s8.bf16 %v854
        %v1399 = vunpack.c.h.s8.bf16 %v855
        %v1400 = vunpack.c.h.s8.bf16 %v856
        %v1401 = vunpack.c.h.s8.bf16 %v857
        %v1402 = vunpack.c.h.s8.bf16 %v858
        %v1403 = vunpack.c.h.s8.bf16 %v859
        %v1404 = vunpack.c.h.s8.bf16 %v860
        %v1405 = vunpack.c.h.s8.bf16 %v861
        %v1406 = vunpack.c.h.s8.bf16 %v862
        %v1407 = vunpack.c.h.s8.bf16 %v863
        %v1408 = vunpack.c.h.s8.bf16 %v864
        %v1409 = vunpack.c.h.s8.bf16 %v865
        %v1410 = vunpack.c.h.s8.bf16 %v866
        %v1411 = vunpack.c.h.s8.bf16 %v867
        %v1412 = vunpack.c.h.s8.bf16 %v868
        %v1413 = vunpack.c.l.s8.bf16 %v869
        %v1414 = vunpack.c.l.s8.bf16 %v870
        %v1415 = vunpack.c.l.s8.bf16 %v871
        %v1416 = vunpack.c.l.s8.bf16 %v872
        %v1417 = vunpack.c.l.s8.bf16 %v873
        %v1418 = vunpack.c.l.s8.bf16 %v874
        %v1419 = vunpack.c.l.s8.bf16 %v875
        %v1420 = vunpack.c.l.s8.bf16 %v876
        %v1421 = vunpack.c.l.s8.bf16 %v877
        %v1422 = vunpack.c.l.s8.bf16 %v878
        %v1423 = vunpack.c.l.s8.bf16 %v879
        %v1424 = vunpack.c.l.s8.bf16 %v880
        %v1425 = vunpack.c.l.s8.bf16 %v881
        %v1426 = vunpack.c.l.s8.bf16 %v882
        %v1427 = vunpack.c.l.s8.bf16 %v883
        %v1428 = vunpack.c.l.s8.bf16 %v884
        %v1429 = vunpack.c.h.s8.bf16 %v869
        %v1430 = vunpack.c.h.s8.bf16 %v870
        %v1431 = vunpack.c.h.s8.bf16 %v871
        %v1432 = vunpack.c.h.s8.bf16 %v872
        %v1433 = vunpack.c.h.s8.bf16 %v873
        %v1434 = vunpack.c.h.s8.bf16 %v874
        %v1435 = vunpack.c.h.s8.bf16 %v875
        %v1436 = vunpack.c.h.s8.bf16 %v876
        %v1437 = vunpack.c.h.s8.bf16 %v877
        %v1438 = vunpack.c.h.s8.bf16 %v878
        %v1439 = vunpack.c.h.s8.bf16 %v879
        %v1440 = vunpack.c.h.s8.bf16 %v880
        %v1441 = vunpack.c.h.s8.bf16 %v881
        %v1442 = vunpack.c.h.s8.bf16 %v882
        %v1443 = vunpack.c.h.s8.bf16 %v883
        %v1444 = vunpack.c.h.s8.bf16 %v884
        %v1445 = vunpack.c.l.s8.bf16 %v885
        %v1446 = vunpack.c.l.s8.bf16 %v886
        %v1447 = vunpack.c.l.s8.bf16 %v887
        %v1448 = vunpack.c.l.s8.bf16 %v888
        %v1449 = vunpack.c.l.s8.bf16 %v889
        %v1450 = vunpack.c.l.s8.bf16 %v890
        %v1451 = vunpack.c.l.s8.bf16 %v891
        %v1452 = vunpack.c.l.s8.bf16 %v892
        %v1453 = vunpack.c.l.s8.bf16 %v893
        %v1454 = vunpack.c.l.s8.bf16 %v894
        %v1455 = vunpack.c.l.s8.bf16 %v895
        %v1456 = vunpack.c.l.s8.bf16 %v896
        %v1457 = vunpack.c.l.s8.bf16 %v897
        %v1458 = vunpack.c.l.s8.bf16 %v898
        %v1459 = vunpack.c.l.s8.bf16 %v899
        %v1460 = vunpack.c.l.s8.bf16 %v900
        %v1461 = vunpack.c.h.s8.bf16 %v885
        %v1462 = vunpack.c.h.s8.bf16 %v886
        %v1463 = vunpack.c.h.s8.bf16 %v887
        %v1464 = vunpack.c.h.s8.bf16 %v888
        %v1465 = vunpack.c.h.s8.bf16 %v889
        %v1466 = vunpack.c.h.s8.bf16 %v890
        %v1467 = vunpack.c.h.s8.bf16 %v891
        %v1468 = vunpack.c.h.s8.bf16 %v892
        %v1469 = vunpack.c.h.s8.bf16 %v893
        %v1470 = vunpack.c.h.s8.bf16 %v894
        %v1471 = vunpack.c.h.s8.bf16 %v895
        %v1472 = vunpack.c.h.s8.bf16 %v896
        %v1473 = vunpack.c.h.s8.bf16 %v897
        %v1474 = vunpack.c.h.s8.bf16 %v898
        %v1475 = vunpack.c.h.s8.bf16 %v899
        %v1476 = vunpack.c.h.s8.bf16 %v900
        %v1477 = vunpack.c.l.s8.bf16 %v901
        %v1478 = vunpack.c.l.s8.bf16 %v902
        %v1479 = vunpack.c.l.s8.bf16 %v903
        %v1480 = vunpack.c.l.s8.bf16 %v904
        %v1481 = vunpack.c.l.s8.bf16 %v905
        %v1482 = vunpack.c.l.s8.bf16 %v906
        %v1483 = vunpack.c.l.s8.bf16 %v907
        %v1484 = vunpack.c.l.s8.bf16 %v908
        %v1485 = vunpack.c.l.s8.bf16 %v909
        %v1486 = vunpack.c.l.s8.bf16 %v910
        %v1487 = vunpack.c.l.s8.bf16 %v911
        %v1488 = vunpack.c.l.s8.bf16 %v912
        %v1489 = vunpack.c.l.s8.bf16 %v913
        %v1490 = vunpack.c.l.s8.bf16 %v914
        %v1491 = vunpack.c.l.s8.bf16 %v915
        %v1492 = vunpack.c.l.s8.bf16 %v916
        %v1493 = vunpack.c.h.s8.bf16 %v901
        %v1494 = vunpack.c.h.s8.bf16 %v902
        %v1495 = vunpack.c.h.s8.bf16 %v903
        %v1496 = vunpack.c.h.s8.bf16 %v904
        %v1497 = vunpack.c.h.s8.bf16 %v905
        %v1498 = vunpack.c.h.s8.bf16 %v906
        %v1499 = vunpack.c.h.s8.bf16 %v907
        %v1500 = vunpack.c.h.s8.bf16 %v908
        %v1501 = vunpack.c.h.s8.bf16 %v909
        %v1502 = vunpack.c.h.s8.bf16 %v910
        %v1503 = vunpack.c.h.s8.bf16 %v911
        %v1504 = vunpack.c.h.s8.bf16 %v912
        %v1505 = vunpack.c.h.s8.bf16 %v913
        %v1506 = vunpack.c.h.s8.bf16 %v914
        %v1507 = vunpack.c.h.s8.bf16 %v915
        %v1508 = vunpack.c.h.s8.bf16 %v916
        %v1509 = vunpack.c.l.s8.bf16 %v917
        %v1510 = vunpack.c.l.s8.bf16 %v918
        %v1511 = vunpack.c.l.s8.bf16 %v919
        %v1512 = vunpack.c.l.s8.bf16 %v920
        %v1513 = vunpack.c.l.s8.bf16 %v921
        %v1514 = vunpack.c.l.s8.bf16 %v922
        %v1515 = vunpack.c.l.s8.bf16 %v923
        %v1516 = vunpack.c.l.s8.bf16 %v924
        %v1517 = vunpack.c.l.s8.bf16 %v925
        %v1518 = vunpack.c.l.s8.bf16 %v926
        %v1519 = vunpack.c.l.s8.bf16 %v927
        %v1520 = vunpack.c.l.s8.bf16 %v928
        %v1521 = vunpack.c.l.s8.bf16 %v929
        %v1522 = vunpack.c.l.s8.bf16 %v930
        %v1523 = vunpack.c.l.s8.bf16 %v931
        %v1524 = vunpack.c.l.s8.bf16 %v932
        %v1525 = vunpack.c.h.s8.bf16 %v917
        %v1526 = vunpack.c.h.s8.bf16 %v918
        %v1527 = vunpack.c.h.s8.bf16 %v919
        %v1528 = vunpack.c.h.s8.bf16 %v920
        %v1529 = vunpack.c.h.s8.bf16 %v921
        %v1530 = vunpack.c.h.s8.bf16 %v922
        %v1531 = vunpack.c.h.s8.bf16 %v923
        %v1532 = vunpack.c.h.s8.bf16 %v924
        %v1533 = vunpack.c.h.s8.bf16 %v925
        %v1534 = vunpack.c.h.s8.bf16 %v926
        %v1535 = vunpack.c.h.s8.bf16 %v927
        %v1536 = vunpack.c.h.s8.bf16 %v928
        %v1537 = vunpack.c.h.s8.bf16 %v929
        %v1538 = vunpack.c.h.s8.bf16 %v930
        %v1539 = vunpack.c.h.s8.bf16 %v931
        %v1540 = vunpack.c.h.s8.bf16 %v932
        %v1541 = vunpack.c.l.s8.bf16 %v933
        %v1542 = vunpack.c.l.s8.bf16 %v934
        %v1543 = vunpack.c.l.s8.bf16 %v935
        %v1544 = vunpack.c.l.s8.bf16 %v936
        %v1545 = vunpack.c.l.s8.bf16 %v937
        %v1546 = vunpack.c.l.s8.bf16 %v938
        %v1547 = vunpack.c.l.s8.bf16 %v939
        %v1548 = vunpack.c.l.s8.bf16 %v940
        %v1549 = vunpack.c.l.s8.bf16 %v941
        %v1550 = vunpack.c.l.s8.bf16 %v942
        %v1551 = vunpack.c.l.s8.bf16 %v943
        %v1552 = vunpack.c.l.s8.bf16 %v944
        %v1553 = vunpack.c.l.s8.bf16 %v945
        %v1554 = vunpack.c.l.s8.bf16 %v946
        %v1555 = vunpack.c.l.s8.bf16 %v947
        %v1556 = vunpack.c.l.s8.bf16 %v948
        %v1557 = vunpack.c.h.s8.bf16 %v933
        %v1558 = vunpack.c.h.s8.bf16 %v934
        %v1559 = vunpack.c.h.s8.bf16 %v935
        %v1560 = vunpack.c.h.s8.bf16 %v936
        %v1561 = vunpack.c.h.s8.bf16 %v937
        %v1562 = vunpack.c.h.s8.bf16 %v938
        %v1563 = vunpack.c.h.s8.bf16 %v939
        %v1564 = vunpack.c.h.s8.bf16 %v940
        %v1565 = vunpack.c.h.s8.bf16 %v941
        %v1566 = vunpack.c.h.s8.bf16 %v942
        %v1567 = vunpack.c.h.s8.bf16 %v943
        %v1568 = vunpack.c.h.s8.bf16 %v944
        %v1569 = vunpack.c.h.s8.bf16 %v945
        %v1570 = vunpack.c.h.s8.bf16 %v946
        %v1571 = vunpack.c.h.s8.bf16 %v947
        %v1572 = vunpack.c.h.s8.bf16 %v948
        %v1573 = vunpack.c.l.s8.bf16 %v949
        %v1574 = vunpack.c.l.s8.bf16 %v950
        %v1575 = vunpack.c.l.s8.bf16 %v951
        %v1576 = vunpack.c.l.s8.bf16 %v952
        %v1577 = vunpack.c.l.s8.bf16 %v953
        %v1578 = vunpack.c.l.s8.bf16 %v954
        %v1579 = vunpack.c.l.s8.bf16 %v955
        %v1580 = vunpack.c.l.s8.bf16 %v956
        %v1581 = vunpack.c.l.s8.bf16 %v957
        %v1582 = vunpack.c.l.s8.bf16 %v958
        %v1583 = vunpack.c.l.s8.bf16 %v959
        %v1584 = vunpack.c.l.s8.bf16 %v960
        %v1585 = vunpack.c.l.s8.bf16 %v961
        %v1586 = vunpack.c.l.s8.bf16 %v962
        %v1587 = vunpack.c.l.s8.bf16 %v963
        %v1588 = vunpack.c.l.s8.bf16 %v964
        %v1589 = vunpack.c.h.s8.bf16 %v949
        %v1590 = vunpack.c.h.s8.bf16 %v950
        %v1591 = vunpack.c.h.s8.bf16 %v951
        %v1592 = vunpack.c.h.s8.bf16 %v952
        %v1593 = vunpack.c.h.s8.bf16 %v953
        %v1594 = vunpack.c.h.s8.bf16 %v954
        %v1595 = vunpack.c.h.s8.bf16 %v955
        %v1596 = vunpack.c.h.s8.bf16 %v956
        %v1597 = vunpack.c.h.s8.bf16 %v957
        %v1598 = vunpack.c.h.s8.bf16 %v958
        %v1599 = vunpack.c.h.s8.bf16 %v959
        %v1600 = vunpack.c.h.s8.bf16 %v960
        %v1601 = vunpack.c.h.s8.bf16 %v961
        %v1602 = vunpack.c.h.s8.bf16 %v962
        %v1603 = vunpack.c.h.s8.bf16 %v963
        %v1604 = vunpack.c.h.s8.bf16 %v964
        %v1605 = vunpack.c.l.s8.bf16 %v965
        %v1606 = vunpack.c.l.s8.bf16 %v966
        %v1607 = vunpack.c.l.s8.bf16 %v967
        %v1608 = vunpack.c.l.s8.bf16 %v968
        %v1609 = vunpack.c.l.s8.bf16 %v969
        %v1610 = vunpack.c.l.s8.bf16 %v970
        %v1611 = vunpack.c.l.s8.bf16 %v971
        %v1612 = vunpack.c.l.s8.bf16 %v972
        %v1613 = vunpack.c.l.s8.bf16 %v973
        %v1614 = vunpack.c.l.s8.bf16 %v974
        %v1615 = vunpack.c.l.s8.bf16 %v975
        %v1616 = vunpack.c.l.s8.bf16 %v976
        %v1617 = vunpack.c.l.s8.bf16 %v977
        %v1618 = vunpack.c.l.s8.bf16 %v978
        %v1619 = vunpack.c.l.s8.bf16 %v979
        %v1620 = vunpack.c.l.s8.bf16 %v980
        %v1621 = vunpack.c.h.s8.bf16 %v965
        %v1622 = vunpack.c.h.s8.bf16 %v966
        %v1623 = vunpack.c.h.s8.bf16 %v967
        %v1624 = vunpack.c.h.s8.bf16 %v968
        %v1625 = vunpack.c.h.s8.bf16 %v969
        %v1626 = vunpack.c.h.s8.bf16 %v970
        %v1627 = vunpack.c.h.s8.bf16 %v971
        %v1628 = vunpack.c.h.s8.bf16 %v972
        %v1629 = vunpack.c.h.s8.bf16 %v973
        %v1630 = vunpack.c.h.s8.bf16 %v974
        %v1631 = vunpack.c.h.s8.bf16 %v975
        %v1632 = vunpack.c.h.s8.bf16 %v976
        %v1633 = vunpack.c.h.s8.bf16 %v977
        %v1634 = vunpack.c.h.s8.bf16 %v978
        %v1635 = vunpack.c.h.s8.bf16 %v979
        %v1636 = vunpack.c.h.s8.bf16 %v980
        %v1637 = vunpack.c.l.s8.bf16 %v981
        %v1638 = vunpack.c.l.s8.bf16 %v982
        %v1639 = vunpack.c.l.s8.bf16 %v983
        %v1640 = vunpack.c.l.s8.bf16 %v984
        %v1641 = vunpack.c.l.s8.bf16 %v985
        %v1642 = vunpack.c.l.s8.bf16 %v986
        %v1643 = vunpack.c.l.s8.bf16 %v987
        %v1644 = vunpack.c.l.s8.bf16 %v988
        %v1645 = vunpack.c.l.s8.bf16 %v989
        %v1646 = vunpack.c.l.s8.bf16 %v990
        %v1647 = vunpack.c.l.s8.bf16 %v991
        %v1648 = vunpack.c.l.s8.bf16 %v992
        %v1649 = vunpack.c.l.s8.bf16 %v993
        %v1650 = vunpack.c.l.s8.bf16 %v994
        %v1651 = vunpack.c.l.s8.bf16 %v995
        %v1652 = vunpack.c.l.s8.bf16 %v996
        %v1653 = vunpack.c.h.s8.bf16 %v981
        %v1654 = vunpack.c.h.s8.bf16 %v982
        %v1655 = vunpack.c.h.s8.bf16 %v983
        %v1656 = vunpack.c.h.s8.bf16 %v984
        %v1657 = vunpack.c.h.s8.bf16 %v985
        %v1658 = vunpack.c.h.s8.bf16 %v986
        %v1659 = vunpack.c.h.s8.bf16 %v987
        %v1660 = vunpack.c.h.s8.bf16 %v988
        %v1661 = vunpack.c.h.s8.bf16 %v989
        %v1662 = vunpack.c.h.s8.bf16 %v990
        %v1663 = vunpack.c.h.s8.bf16 %v991
        %v1664 = vunpack.c.h.s8.bf16 %v992
        %v1665 = vunpack.c.h.s8.bf16 %v993
        %v1666 = vunpack.c.h.s8.bf16 %v994
        %v1667 = vunpack.c.h.s8.bf16 %v995
        %v1668 = vunpack.c.h.s8.bf16 %v996
        %v1669 = vunpack.c.l.s8.bf16 %v997
        %v1670 = vunpack.c.l.s8.bf16 %v998
        %v1671 = vunpack.c.l.s8.bf16 %v999
        %v1672 = vunpack.c.l.s8.bf16 %v1000
        %v1673 = vunpack.c.l.s8.bf16 %v1001
        %v1674 = vunpack.c.l.s8.bf16 %v1002
        %v1675 = vunpack.c.l.s8.bf16 %v1003
        %v1676 = vunpack.c.l.s8.bf16 %v1004
        %v1677 = vunpack.c.l.s8.bf16 %v1005
        %v1678 = vunpack.c.l.s8.bf16 %v1006
        %v1679 = vunpack.c.l.s8.bf16 %v1007
        %v1680 = vunpack.c.l.s8.bf16 %v1008
        %v1681 = vunpack.c.l.s8.bf16 %v1009
        %v1682 = vunpack.c.l.s8.bf16 %v1010
        %v1683 = vunpack.c.l.s8.bf16 %v1011
        %v1684 = vunpack.c.l.s8.bf16 %v1012
        %v1685 = vunpack.c.h.s8.bf16 %v997
        %v1686 = vunpack.c.h.s8.bf16 %v998
        %v1687 = vunpack.c.h.s8.bf16 %v999
        %v1688 = vunpack.c.h.s8.bf16 %v1000
        %v1689 = vunpack.c.h.s8.bf16 %v1001
        %v1690 = vunpack.c.h.s8.bf16 %v1002
        %v1691 = vunpack.c.h.s8.bf16 %v1003
        %v1692 = vunpack.c.h.s8.bf16 %v1004
        %v1693 = vunpack.c.h.s8.bf16 %v1005
        %v1694 = vunpack.c.h.s8.bf16 %v1006
        %v1695 = vunpack.c.h.s8.bf16 %v1007
        %v1696 = vunpack.c.h.s8.bf16 %v1008
        %v1697 = vunpack.c.h.s8.bf16 %v1009
        %v1698 = vunpack.c.h.s8.bf16 %v1010
        %v1699 = vunpack.c.h.s8.bf16 %v1011
        %v1700 = vunpack.c.h.s8.bf16 %v1012
        %v1701 = vunpack.c.l.s8.bf16 %v1013
        %v1702 = vunpack.c.l.s8.bf16 %v1014
        %v1703 = vunpack.c.l.s8.bf16 %v1015
        %v1704 = vunpack.c.l.s8.bf16 %v1016
        %v1705 = vunpack.c.l.s8.bf16 %v1017
        %v1706 = vunpack.c.l.s8.bf16 %v1018
        %v1707 = vunpack.c.l.s8.bf16 %v1019
        %v1708 = vunpack.c.l.s8.bf16 %v1020
        %v1709 = vunpack.c.l.s8.bf16 %v1021
        %v1710 = vunpack.c.l.s8.bf16 %v1022
        %v1711 = vunpack.c.l.s8.bf16 %v1023
        %v1712 = vunpack.c.l.s8.bf16 %v1024
        %v1713 = vunpack.c.l.s8.bf16 %v1025
        %v1714 = vunpack.c.l.s8.bf16 %v1026
        %v1715 = vunpack.c.l.s8.bf16 %v1027
        %v1716 = vunpack.c.l.s8.bf16 %v1028
        %v1717 = vunpack.c.h.s8.bf16 %v1013
        %v1718 = vunpack.c.h.s8.bf16 %v1014
        %v1719 = vunpack.c.h.s8.bf16 %v1015
        %v1720 = vunpack.c.h.s8.bf16 %v1016
        %v1721 = vunpack.c.h.s8.bf16 %v1017
        %v1722 = vunpack.c.h.s8.bf16 %v1018
        %v1723 = vunpack.c.h.s8.bf16 %v1019
        %v1724 = vunpack.c.h.s8.bf16 %v1020
        %v1725 = vunpack.c.h.s8.bf16 %v1021
        %v1726 = vunpack.c.h.s8.bf16 %v1022
        %v1727 = vunpack.c.h.s8.bf16 %v1023
        %v1728 = vunpack.c.h.s8.bf16 %v1024
        %v1729 = vunpack.c.h.s8.bf16 %v1025
        %v1730 = vunpack.c.h.s8.bf16 %v1026
        %v1731 = vunpack.c.h.s8.bf16 %v1027
        %v1732 = vunpack.c.h.s8.bf16 %v1028
        %v1733 = vunpack.c.l.s8.bf16 %v1029
        %v1734 = vunpack.c.l.s8.bf16 %v1030
        %v1735 = vunpack.c.l.s8.bf16 %v1031
        %v1736 = vunpack.c.l.s8.bf16 %v1032
        %v1737 = vunpack.c.l.s8.bf16 %v1033
        %v1738 = vunpack.c.l.s8.bf16 %v1034
        %v1739 = vunpack.c.l.s8.bf16 %v1035
        %v1740 = vunpack.c.l.s8.bf16 %v1036
        %v1741 = vunpack.c.l.s8.bf16 %v1037
        %v1742 = vunpack.c.l.s8.bf16 %v1038
        %v1743 = vunpack.c.l.s8.bf16 %v1039
        %v1744 = vunpack.c.l.s8.bf16 %v1040
        %v1745 = vunpack.c.l.s8.bf16 %v1041
        %v1746 = vunpack.c.l.s8.bf16 %v1042
        %v1747 = vunpack.c.l.s8.bf16 %v1043
        %v1748 = vunpack.c.l.s8.bf16 %v1044
        %v1749 = vunpack.c.h.s8.bf16 %v1029
        %v1750 = vunpack.c.h.s8.bf16 %v1030
        %v1751 = vunpack.c.h.s8.bf16 %v1031
        %v1752 = vunpack.c.h.s8.bf16 %v1032
        %v1753 = vunpack.c.h.s8.bf16 %v1033
        %v1754 = vunpack.c.h.s8.bf16 %v1034
        %v1755 = vunpack.c.h.s8.bf16 %v1035
        %v1756 = vunpack.c.h.s8.bf16 %v1036
        %v1757 = vunpack.c.h.s8.bf16 %v1037
        %v1758 = vunpack.c.h.s8.bf16 %v1038
        %v1759 = vunpack.c.h.s8.bf16 %v1039
        %v1760 = vunpack.c.h.s8.bf16 %v1040
        %v1761 = vunpack.c.h.s8.bf16 %v1041
        %v1762 = vunpack.c.h.s8.bf16 %v1042
        %v1763 = vunpack.c.h.s8.bf16 %v1043
        %v1764 = vunpack.c.h.s8.bf16 %v1044
        %v1765 = vunpack.c.l.s8.bf16 %v1045
        %v1766 = vunpack.c.l.s8.bf16 %v1046
        %v1767 = vunpack.c.l.s8.bf16 %v1047
        %v1768 = vunpack.c.l.s8.bf16 %v1048
        %v1769 = vunpack.c.l.s8.bf16 %v1049
        %v1770 = vunpack.c.l.s8.bf16 %v1050
        %v1771 = vunpack.c.l.s8.bf16 %v1051
        %v1772 = vunpack.c.l.s8.bf16 %v1052
        %v1773 = vunpack.c.l.s8.bf16 %v1053
        %v1774 = vunpack.c.l.s8.bf16 %v1054
        %v1775 = vunpack.c.l.s8.bf16 %v1055
        %v1776 = vunpack.c.l.s8.bf16 %v1056
        %v1777 = vunpack.c.l.s8.bf16 %v1057
        %v1778 = vunpack.c.l.s8.bf16 %v1058
        %v1779 = vunpack.c.l.s8.bf16 %v1059
        %v1780 = vunpack.c.l.s8.bf16 %v1060
        %v1781 = vunpack.c.h.s8.bf16 %v1045
        %v1782 = vunpack.c.h.s8.bf16 %v1046
        %v1783 = vunpack.c.h.s8.bf16 %v1047
        %v1784 = vunpack.c.h.s8.bf16 %v1048
        %v1785 = vunpack.c.h.s8.bf16 %v1049
        %v1786 = vunpack.c.h.s8.bf16 %v1050
        %v1787 = vunpack.c.h.s8.bf16 %v1051
        %v1788 = vunpack.c.h.s8.bf16 %v1052
        %v1789 = vunpack.c.h.s8.bf16 %v1053
        %v1790 = vunpack.c.h.s8.bf16 %v1054
        %v1791 = vunpack.c.h.s8.bf16 %v1055
        %v1792 = vunpack.c.h.s8.bf16 %v1056
        %v1793 = vunpack.c.h.s8.bf16 %v1057
        %v1794 = vunpack.c.h.s8.bf16 %v1058
        %v1795 = vunpack.c.h.s8.bf16 %v1059
        %v1796 = vunpack.c.h.s8.bf16 %v1060
        %v1797 = vunpack.c.l.s8.bf16 %v1061
        %v1798 = vunpack.c.l.s8.bf16 %v1062
        %v1799 = vunpack.c.l.s8.bf16 %v1063
        %v1800 = vunpack.c.l.s8.bf16 %v1064
        %v1801 = vunpack.c.l.s8.bf16 %v1065
        %v1802 = vunpack.c.l.s8.bf16 %v1066
        %v1803 = vunpack.c.l.s8.bf16 %v1067
        %v1804 = vunpack.c.l.s8.bf16 %v1068
        %v1805 = vunpack.c.l.s8.bf16 %v1069
        %v1806 = vunpack.c.l.s8.bf16 %v1070
        %v1807 = vunpack.c.l.s8.bf16 %v1071
        %v1808 = vunpack.c.l.s8.bf16 %v1072
        %v1809 = vunpack.c.l.s8.bf16 %v1073
        %v1810 = vunpack.c.l.s8.bf16 %v1074
        %v1811 = vunpack.c.l.s8.bf16 %v1075
        %v1812 = vunpack.c.l.s8.bf16 %v1076
        %v1813 = vunpack.c.h.s8.bf16 %v1061
        %v1814 = vunpack.c.h.s8.bf16 %v1062
        %v1815 = vunpack.c.h.s8.bf16 %v1063
        %v1816 = vunpack.c.h.s8.bf16 %v1064
        %v1817 = vunpack.c.h.s8.bf16 %v1065
        %v1818 = vunpack.c.h.s8.bf16 %v1066
        %v1819 = vunpack.c.h.s8.bf16 %v1067
        %v1820 = vunpack.c.h.s8.bf16 %v1068
        %v1821 = vunpack.c.h.s8.bf16 %v1069
        %v1822 = vunpack.c.h.s8.bf16 %v1070
        %v1823 = vunpack.c.h.s8.bf16 %v1071
        %v1824 = vunpack.c.h.s8.bf16 %v1072
        %v1825 = vunpack.c.h.s8.bf16 %v1073
        %v1826 = vunpack.c.h.s8.bf16 %v1074
        %v1827 = vunpack.c.h.s8.bf16 %v1075
        %v1828 = vunpack.c.h.s8.bf16 %v1076
        %v1829 = vunpack.c.l.s8.bf16 %v1077
        %v1830 = vunpack.c.l.s8.bf16 %v1078
        %v1831 = vunpack.c.l.s8.bf16 %v1079
        %v1832 = vunpack.c.l.s8.bf16 %v1080
        %v1833 = vunpack.c.l.s8.bf16 %v1081
        %v1834 = vunpack.c.l.s8.bf16 %v1082
        %v1835 = vunpack.c.l.s8.bf16 %v1083
        %v1836 = vunpack.c.l.s8.bf16 %v1084
        %v1837 = vunpack.c.l.s8.bf16 %v1085
        %v1838 = vunpack.c.l.s8.bf16 %v1086
        %v1839 = vunpack.c.l.s8.bf16 %v1087
        %v1840 = vunpack.c.l.s8.bf16 %v1088
        %v1841 = vunpack.c.l.s8.bf16 %v1089
        %v1842 = vunpack.c.l.s8.bf16 %v1090
        %v1843 = vunpack.c.l.s8.bf16 %v1091
        %v1844 = vunpack.c.l.s8.bf16 %v1092
        %v1845 = vunpack.c.h.s8.bf16 %v1077
        %v1846 = vunpack.c.h.s8.bf16 %v1078
        %v1847 = vunpack.c.h.s8.bf16 %v1079
        %v1848 = vunpack.c.h.s8.bf16 %v1080
        %v1849 = vunpack.c.h.s8.bf16 %v1081
        %v1850 = vunpack.c.h.s8.bf16 %v1082
        %v1851 = vunpack.c.h.s8.bf16 %v1083
        %v1852 = vunpack.c.h.s8.bf16 %v1084
        %v1853 = vunpack.c.h.s8.bf16 %v1085
        %v1854 = vunpack.c.h.s8.bf16 %v1086
        %v1855 = vunpack.c.h.s8.bf16 %v1087
        %v1856 = vunpack.c.h.s8.bf16 %v1088
        %v1857 = vunpack.c.h.s8.bf16 %v1089
        %v1858 = vunpack.c.h.s8.bf16 %v1090
        %v1859 = vunpack.c.h.s8.bf16 %v1091
        %v1860 = vunpack.c.h.s8.bf16 %v1092
        %v1861 = vunpack.c.l.s8.bf16 %v1093
        %v1862 = vunpack.c.l.s8.bf16 %v1094
        %v1863 = vunpack.c.l.s8.bf16 %v1095
        %v1864 = vunpack.c.l.s8.bf16 %v1096
        %v1865 = vunpack.c.l.s8.bf16 %v1097
        %v1866 = vunpack.c.l.s8.bf16 %v1098
        %v1867 = vunpack.c.l.s8.bf16 %v1099
        %v1868 = vunpack.c.l.s8.bf16 %v1100
        %v1869 = vunpack.c.l.s8.bf16 %v1101
        %v1870 = vunpack.c.l.s8.bf16 %v1102
        %v1871 = vunpack.c.l.s8.bf16 %v1103
        %v1872 = vunpack.c.l.s8.bf16 %v1104
        %v1873 = vunpack.c.l.s8.bf16 %v1105
        %v1874 = vunpack.c.l.s8.bf16 %v1106
        %v1875 = vunpack.c.l.s8.bf16 %v1107
        %v1876 = vunpack.c.l.s8.bf16 %v1108
        %v1877 = vunpack.c.h.s8.bf16 %v1093
        %v1878 = vunpack.c.h.s8.bf16 %v1094
        %v1879 = vunpack.c.h.s8.bf16 %v1095
        %v1880 = vunpack.c.h.s8.bf16 %v1096
        %v1881 = vunpack.c.h.s8.bf16 %v1097
        %v1882 = vunpack.c.h.s8.bf16 %v1098
        %v1883 = vunpack.c.h.s8.bf16 %v1099
        %v1884 = vunpack.c.h.s8.bf16 %v1100
        %v1885 = vunpack.c.h.s8.bf16 %v1101
        %v1886 = vunpack.c.h.s8.bf16 %v1102
        %v1887 = vunpack.c.h.s8.bf16 %v1103
        %v1888 = vunpack.c.h.s8.bf16 %v1104
        %v1889 = vunpack.c.h.s8.bf16 %v1105
        %v1890 = vunpack.c.h.s8.bf16 %v1106
        %v1891 = vunpack.c.h.s8.bf16 %v1107
        %v1892 = vunpack.c.h.s8.bf16 %v1108
        %v1893 = vunpack.c.l.s8.bf16 %v1109
        %v1894 = vunpack.c.l.s8.bf16 %v1110
        %v1895 = vunpack.c.l.s8.bf16 %v1111
        %v1896 = vunpack.c.l.s8.bf16 %v1112
        %v1897 = vunpack.c.l.s8.bf16 %v1113
        %v1898 = vunpack.c.l.s8.bf16 %v1114
        %v1899 = vunpack.c.l.s8.bf16 %v1115
        %v1900 = vunpack.c.l.s8.bf16 %v1116
        %v1901 = vunpack.c.l.s8.bf16 %v1117
        %v1902 = vunpack.c.l.s8.bf16 %v1118
        %v1903 = vunpack.c.l.s8.bf16 %v1119
        %v1904 = vunpack.c.l.s8.bf16 %v1120
        %v1905 = vunpack.c.l.s8.bf16 %v1121
        %v1906 = vunpack.c.l.s8.bf16 %v1122
        %v1907 = vunpack.c.l.s8.bf16 %v1123
        %v1908 = vunpack.c.l.s8.bf16 %v1124
        %v1909 = vunpack.c.h.s8.bf16 %v1109
        %v1910 = vunpack.c.h.s8.bf16 %v1110
        %v1911 = vunpack.c.h.s8.bf16 %v1111
        %v1912 = vunpack.c.h.s8.bf16 %v1112
        %v1913 = vunpack.c.h.s8.bf16 %v1113
        %v1914 = vunpack.c.h.s8.bf16 %v1114
        %v1915 = vunpack.c.h.s8.bf16 %v1115
        %v1916 = vunpack.c.h.s8.bf16 %v1116
        %v1917 = vunpack.c.h.s8.bf16 %v1117
        %v1918 = vunpack.c.h.s8.bf16 %v1118
        %v1919 = vunpack.c.h.s8.bf16 %v1119
        %v1920 = vunpack.c.h.s8.bf16 %v1120
        %v1921 = vunpack.c.h.s8.bf16 %v1121
        %v1922 = vunpack.c.h.s8.bf16 %v1122
        %v1923 = vunpack.c.h.s8.bf16 %v1123
        %v1924 = vunpack.c.h.s8.bf16 %v1124
        %v1925 = vunpack.c.l.s8.bf16 %v1125
        %v1926 = vunpack.c.l.s8.bf16 %v1126
        %v1927 = vunpack.c.l.s8.bf16 %v1127
        %v1928 = vunpack.c.l.s8.bf16 %v1128
        %v1929 = vunpack.c.l.s8.bf16 %v1129
        %v1930 = vunpack.c.l.s8.bf16 %v1130
        %v1931 = vunpack.c.l.s8.bf16 %v1131
        %v1932 = vunpack.c.l.s8.bf16 %v1132
        %v1933 = vunpack.c.l.s8.bf16 %v1133
        %v1934 = vunpack.c.l.s8.bf16 %v1134
        %v1935 = vunpack.c.l.s8.bf16 %v1135
        %v1936 = vunpack.c.l.s8.bf16 %v1136
        %v1937 = vunpack.c.l.s8.bf16 %v1137
        %v1938 = vunpack.c.l.s8.bf16 %v1138
        %v1939 = vunpack.c.l.s8.bf16 %v1139
        %v1940 = vunpack.c.l.s8.bf16 %v1140
        %v1941 = vunpack.c.h.s8.bf16 %v1125
        %v1942 = vunpack.c.h.s8.bf16 %v1126
        %v1943 = vunpack.c.h.s8.bf16 %v1127
        %v1944 = vunpack.c.h.s8.bf16 %v1128
        %v1945 = vunpack.c.h.s8.bf16 %v1129
        %v1946 = vunpack.c.h.s8.bf16 %v1130
        %v1947 = vunpack.c.h.s8.bf16 %v1131
        %v1948 = vunpack.c.h.s8.bf16 %v1132
        %v1949 = vunpack.c.h.s8.bf16 %v1133
        %v1950 = vunpack.c.h.s8.bf16 %v1134
        %v1951 = vunpack.c.h.s8.bf16 %v1135
        %v1952 = vunpack.c.h.s8.bf16 %v1136
        %v1953 = vunpack.c.h.s8.bf16 %v1137
        %v1954 = vunpack.c.h.s8.bf16 %v1138
        %v1955 = vunpack.c.h.s8.bf16 %v1139
        %v1956 = vunpack.c.h.s8.bf16 %v1140
        %v1957 = vunpack.c.l.s8.bf16 %v1141
        %v1958 = vunpack.c.l.s8.bf16 %v1142
        %v1959 = vunpack.c.l.s8.bf16 %v1143
        %v1960 = vunpack.c.l.s8.bf16 %v1144
        %v1961 = vunpack.c.l.s8.bf16 %v1145
        %v1962 = vunpack.c.l.s8.bf16 %v1146
        %v1963 = vunpack.c.l.s8.bf16 %v1147
        %v1964 = vunpack.c.l.s8.bf16 %v1148
        %v1965 = vunpack.c.l.s8.bf16 %v1149
        %v1966 = vunpack.c.l.s8.bf16 %v1150
        %v1967 = vunpack.c.l.s8.bf16 %v1151
        %v1968 = vunpack.c.l.s8.bf16 %v1152
        %v1969 = vunpack.c.l.s8.bf16 %v1153
        %v1970 = vunpack.c.l.s8.bf16 %v1154
        %v1971 = vunpack.c.l.s8.bf16 %v1155
        %v1972 = vunpack.c.l.s8.bf16 %v1156
        %v1973 = vunpack.c.h.s8.bf16 %v1141
        %v1974 = vunpack.c.h.s8.bf16 %v1142
        %v1975 = vunpack.c.h.s8.bf16 %v1143
        %v1976 = vunpack.c.h.s8.bf16 %v1144
        %v1977 = vunpack.c.h.s8.bf16 %v1145
        %v1978 = vunpack.c.h.s8.bf16 %v1146
        %v1979 = vunpack.c.h.s8.bf16 %v1147
        %v1980 = vunpack.c.h.s8.bf16 %v1148
        %v1981 = vunpack.c.h.s8.bf16 %v1149
        %v1982 = vunpack.c.h.s8.bf16 %v1150
        %v1983 = vunpack.c.h.s8.bf16 %v1151
        %v1984 = vunpack.c.h.s8.bf16 %v1152
        %v1985 = vunpack.c.h.s8.bf16 %v1153
        %v1986 = vunpack.c.h.s8.bf16 %v1154
        %v1987 = vunpack.c.h.s8.bf16 %v1155
        %v1988 = vunpack.c.h.s8.bf16 %v1156
        %v1989 = vunpack.c.l.s8.bf16 %v1157
        %v1990 = vunpack.c.l.s8.bf16 %v1158
        %v1991 = vunpack.c.l.s8.bf16 %v1159
        %v1992 = vunpack.c.l.s8.bf16 %v1160
        %v1993 = vunpack.c.l.s8.bf16 %v1161
        %v1994 = vunpack.c.l.s8.bf16 %v1162
        %v1995 = vunpack.c.l.s8.bf16 %v1163
        %v1996 = vunpack.c.l.s8.bf16 %v1164
        %v1997 = vunpack.c.l.s8.bf16 %v1165
        %v1998 = vunpack.c.l.s8.bf16 %v1166
        %v1999 = vunpack.c.l.s8.bf16 %v1167
        %v2000 = vunpack.c.l.s8.bf16 %v1168
        %v2001 = vunpack.c.l.s8.bf16 %v1169
        %v2002 = vunpack.c.l.s8.bf16 %v1170
        %v2003 = vunpack.c.l.s8.bf16 %v1171
        %v2004 = vunpack.c.l.s8.bf16 %v1172
        %v2005 = vunpack.c.h.s8.bf16 %v1157
        %v2006 = vunpack.c.h.s8.bf16 %v1158
        %v2007 = vunpack.c.h.s8.bf16 %v1159
        %v2008 = vunpack.c.h.s8.bf16 %v1160
        %v2009 = vunpack.c.h.s8.bf16 %v1161
        %v2010 = vunpack.c.h.s8.bf16 %v1162
        %v2011 = vunpack.c.h.s8.bf16 %v1163
        %v2012 = vunpack.c.h.s8.bf16 %v1164
        %v2013 = vunpack.c.h.s8.bf16 %v1165
        %v2014 = vunpack.c.h.s8.bf16 %v1166
        %v2015 = vunpack.c.h.s8.bf16 %v1167
        %v2016 = vunpack.c.h.s8.bf16 %v1168
        %v2017 = vunpack.c.h.s8.bf16 %v1169
        %v2018 = vunpack.c.h.s8.bf16 %v1170
        %v2019 = vunpack.c.h.s8.bf16 %v1171
        %v2020 = vunpack.c.h.s8.bf16 %v1172
        %v2021 = vunpack.c.l.s8.bf16 %v1173
        %v2022 = vunpack.c.l.s8.bf16 %v1174
        %v2023 = vunpack.c.l.s8.bf16 %v1175
        %v2024 = vunpack.c.l.s8.bf16 %v1176
        %v2025 = vunpack.c.l.s8.bf16 %v1177
        %v2026 = vunpack.c.l.s8.bf16 %v1178
        %v2027 = vunpack.c.l.s8.bf16 %v1179
        %v2028 = vunpack.c.l.s8.bf16 %v1180
        %v2029 = vunpack.c.l.s8.bf16 %v1181
        %v2030 = vunpack.c.l.s8.bf16 %v1182
        %v2031 = vunpack.c.l.s8.bf16 %v1183
        %v2032 = vunpack.c.l.s8.bf16 %v1184
        %v2033 = vunpack.c.l.s8.bf16 %v1185
        %v2034 = vunpack.c.l.s8.bf16 %v1186
        %v2035 = vunpack.c.l.s8.bf16 %v1187
        %v2036 = vunpack.c.l.s8.bf16 %v1188
        %v2037 = vunpack.c.h.s8.bf16 %v1173
        %v2038 = vunpack.c.h.s8.bf16 %v1174
        %v2039 = vunpack.c.h.s8.bf16 %v1175
        %v2040 = vunpack.c.h.s8.bf16 %v1176
        %v2041 = vunpack.c.h.s8.bf16 %v1177
        %v2042 = vunpack.c.h.s8.bf16 %v1178
        %v2043 = vunpack.c.h.s8.bf16 %v1179
        %v2044 = vunpack.c.h.s8.bf16 %v1180
        %v2045 = vunpack.c.h.s8.bf16 %v1181
        %v2046 = vunpack.c.h.s8.bf16 %v1182
        %v2047 = vunpack.c.h.s8.bf16 %v1183
        %v2048 = vunpack.c.h.s8.bf16 %v1184
        %v2049 = vunpack.c.h.s8.bf16 %v1185
        %v2050 = vunpack.c.h.s8.bf16 %v1186
        %v2051 = vunpack.c.h.s8.bf16 %v1187
        %v2052 = vunpack.c.h.s8.bf16 %v1188
        %v2053 = vunpack.c.l.s8.bf16 %v1189
        %v2054 = vunpack.c.l.s8.bf16 %v1190
        %v2055 = vunpack.c.l.s8.bf16 %v1191
        %v2056 = vunpack.c.l.s8.bf16 %v1192
        %v2057 = vunpack.c.l.s8.bf16 %v1193
        %v2058 = vunpack.c.l.s8.bf16 %v1194
        %v2059 = vunpack.c.l.s8.bf16 %v1195
        %v2060 = vunpack.c.l.s8.bf16 %v1196
        %v2061 = vunpack.c.l.s8.bf16 %v1197
        %v2062 = vunpack.c.l.s8.bf16 %v1198
        %v2063 = vunpack.c.l.s8.bf16 %v1199
        %v2064 = vunpack.c.l.s8.bf16 %v1200
        %v2065 = vunpack.c.l.s8.bf16 %v1201
        %v2066 = vunpack.c.l.s8.bf16 %v1202
        %v2067 = vunpack.c.l.s8.bf16 %v1203
        %v2068 = vunpack.c.l.s8.bf16 %v1204
        %v2069 = vunpack.c.h.s8.bf16 %v1189
        %v2070 = vunpack.c.h.s8.bf16 %v1190
        %v2071 = vunpack.c.h.s8.bf16 %v1191
        %v2072 = vunpack.c.h.s8.bf16 %v1192
        %v2073 = vunpack.c.h.s8.bf16 %v1193
        %v2074 = vunpack.c.h.s8.bf16 %v1194
        %v2075 = vunpack.c.h.s8.bf16 %v1195
        %v2076 = vunpack.c.h.s8.bf16 %v1196
        %v2077 = vunpack.c.h.s8.bf16 %v1197
        %v2078 = vunpack.c.h.s8.bf16 %v1198
        %v2079 = vunpack.c.h.s8.bf16 %v1199
        %v2080 = vunpack.c.h.s8.bf16 %v1200
        %v2081 = vunpack.c.h.s8.bf16 %v1201
        %v2082 = vunpack.c.h.s8.bf16 %v1202
        %v2083 = vunpack.c.h.s8.bf16 %v1203
        %v2084 = vunpack.c.h.s8.bf16 %v1204
        %v2085 = vunpack.c.l.s8.bf16 %v1205
        %v2086 = vunpack.c.l.s8.bf16 %v1206
        %v2087 = vunpack.c.l.s8.bf16 %v1207
        %v2088 = vunpack.c.l.s8.bf16 %v1208
        %v2089 = vunpack.c.l.s8.bf16 %v1209
        %v2090 = vunpack.c.l.s8.bf16 %v1210
        %v2091 = vunpack.c.l.s8.bf16 %v1211
        %v2092 = vunpack.c.l.s8.bf16 %v1212
        %v2093 = vunpack.c.l.s8.bf16 %v1213
        %v2094 = vunpack.c.l.s8.bf16 %v1214
        %v2095 = vunpack.c.l.s8.bf16 %v1215
        %v2096 = vunpack.c.l.s8.bf16 %v1216
        %v2097 = vunpack.c.l.s8.bf16 %v1217
        %v2098 = vunpack.c.l.s8.bf16 %v1218
        %v2099 = vunpack.c.l.s8.bf16 %v1219
        %v2100 = vunpack.c.l.s8.bf16 %v1220
        %v2101 = vunpack.c.h.s8.bf16 %v1205
        %v2102 = vunpack.c.h.s8.bf16 %v1206
        %v2103 = vunpack.c.h.s8.bf16 %v1207
        %v2104 = vunpack.c.h.s8.bf16 %v1208
        %v2105 = vunpack.c.h.s8.bf16 %v1209
        %v2106 = vunpack.c.h.s8.bf16 %v1210
        %v2107 = vunpack.c.h.s8.bf16 %v1211
        %v2108 = vunpack.c.h.s8.bf16 %v1212
        %v2109 = vunpack.c.h.s8.bf16 %v1213
        %v2110 = vunpack.c.h.s8.bf16 %v1214
        %v2111 = vunpack.c.h.s8.bf16 %v1215
        %v2112 = vunpack.c.h.s8.bf16 %v1216
        %v2113 = vunpack.c.h.s8.bf16 %v1217
        %v2114 = vunpack.c.h.s8.bf16 %v1218
        %v2115 = vunpack.c.h.s8.bf16 %v1219
        %v2116 = vunpack.c.h.s8.bf16 %v1220
        %v2117 = vunpack.c.l.s8.bf16 %v1221
        %v2118 = vunpack.c.l.s8.bf16 %v1222
        %v2119 = vunpack.c.l.s8.bf16 %v1223
        %v2120 = vunpack.c.l.s8.bf16 %v1224
        %v2121 = vunpack.c.l.s8.bf16 %v1225
        %v2122 = vunpack.c.l.s8.bf16 %v1226
        %v2123 = vunpack.c.l.s8.bf16 %v1227
        %v2124 = vunpack.c.l.s8.bf16 %v1228
        %v2125 = vunpack.c.l.s8.bf16 %v1229
        %v2126 = vunpack.c.l.s8.bf16 %v1230
        %v2127 = vunpack.c.l.s8.bf16 %v1231
        %v2128 = vunpack.c.l.s8.bf16 %v1232
        %v2129 = vunpack.c.l.s8.bf16 %v1233
        %v2130 = vunpack.c.l.s8.bf16 %v1234
        %v2131 = vunpack.c.l.s8.bf16 %v1235
        %v2132 = vunpack.c.l.s8.bf16 %v1236
        %v2133 = vunpack.c.h.s8.bf16 %v1221
        %v2134 = vunpack.c.h.s8.bf16 %v1222
        %v2135 = vunpack.c.h.s8.bf16 %v1223
        %v2136 = vunpack.c.h.s8.bf16 %v1224
        %v2137 = vunpack.c.h.s8.bf16 %v1225
        %v2138 = vunpack.c.h.s8.bf16 %v1226
        %v2139 = vunpack.c.h.s8.bf16 %v1227
        %v2140 = vunpack.c.h.s8.bf16 %v1228
        %v2141 = vunpack.c.h.s8.bf16 %v1229
        %v2142 = vunpack.c.h.s8.bf16 %v1230
        %v2143 = vunpack.c.h.s8.bf16 %v1231
        %v2144 = vunpack.c.h.s8.bf16 %v1232
        %v2145 = vunpack.c.h.s8.bf16 %v1233
        %v2146 = vunpack.c.h.s8.bf16 %v1234
        %v2147 = vunpack.c.h.s8.bf16 %v1235
        %v2148 = vunpack.c.h.s8.bf16 %v1236
        %v2149 = vunpack.c.l.s8.bf16 %v1237
        %v2150 = vunpack.c.l.s8.bf16 %v1238
        %v2151 = vunpack.c.l.s8.bf16 %v1239
        %v2152 = vunpack.c.l.s8.bf16 %v1240
        %v2153 = vunpack.c.l.s8.bf16 %v1241
        %v2154 = vunpack.c.l.s8.bf16 %v1242
        %v2155 = vunpack.c.l.s8.bf16 %v1243
        %v2156 = vunpack.c.l.s8.bf16 %v1244
        %v2157 = vunpack.c.l.s8.bf16 %v1245
        %v2158 = vunpack.c.l.s8.bf16 %v1246
        %v2159 = vunpack.c.l.s8.bf16 %v1247
        %v2160 = vunpack.c.l.s8.bf16 %v1248
        %v2161 = vunpack.c.l.s8.bf16 %v1249
        %v2162 = vunpack.c.l.s8.bf16 %v1250
        %v2163 = vunpack.c.l.s8.bf16 %v1251
        %v2164 = vunpack.c.l.s8.bf16 %v1252
        %v2165 = vunpack.c.h.s8.bf16 %v1237
        %v2166 = vunpack.c.h.s8.bf16 %v1238
        %v2167 = vunpack.c.h.s8.bf16 %v1239
        %v2168 = vunpack.c.h.s8.bf16 %v1240
        %v2169 = vunpack.c.h.s8.bf16 %v1241
        %v2170 = vunpack.c.h.s8.bf16 %v1242
        %v2171 = vunpack.c.h.s8.bf16 %v1243
        %v2172 = vunpack.c.h.s8.bf16 %v1244
        %v2173 = vunpack.c.h.s8.bf16 %v1245
        %v2174 = vunpack.c.h.s8.bf16 %v1246
        %v2175 = vunpack.c.h.s8.bf16 %v1247
        %v2176 = vunpack.c.h.s8.bf16 %v1248
        %v2177 = vunpack.c.h.s8.bf16 %v1249
        %v2178 = vunpack.c.h.s8.bf16 %v1250
        %v2179 = vunpack.c.h.s8.bf16 %v1251
        %v2180 = vunpack.c.h.s8.bf16 %v1252
        %v2181 = vunpack.c.l.s8.bf16 %v1253
        %v2182 = vunpack.c.l.s8.bf16 %v1254
        %v2183 = vunpack.c.l.s8.bf16 %v1255
        %v2184 = vunpack.c.l.s8.bf16 %v1256
        %v2185 = vunpack.c.l.s8.bf16 %v1257
        %v2186 = vunpack.c.l.s8.bf16 %v1258
        %v2187 = vunpack.c.l.s8.bf16 %v1259
        %v2188 = vunpack.c.l.s8.bf16 %v1260
        %v2189 = vunpack.c.l.s8.bf16 %v1261
        %v2190 = vunpack.c.l.s8.bf16 %v1262
        %v2191 = vunpack.c.l.s8.bf16 %v1263
        %v2192 = vunpack.c.l.s8.bf16 %v1264
        %v2193 = vunpack.c.l.s8.bf16 %v1265
        %v2194 = vunpack.c.l.s8.bf16 %v1266
        %v2195 = vunpack.c.l.s8.bf16 %v1267
        %v2196 = vunpack.c.l.s8.bf16 %v1268
        %v2197 = vunpack.c.h.s8.bf16 %v1253
        %v2198 = vunpack.c.h.s8.bf16 %v1254
        %v2199 = vunpack.c.h.s8.bf16 %v1255
        %v2200 = vunpack.c.h.s8.bf16 %v1256
        %v2201 = vunpack.c.h.s8.bf16 %v1257
        %v2202 = vunpack.c.h.s8.bf16 %v1258
        %v2203 = vunpack.c.h.s8.bf16 %v1259
        %v2204 = vunpack.c.h.s8.bf16 %v1260
        %v2205 = vunpack.c.h.s8.bf16 %v1261
        %v2206 = vunpack.c.h.s8.bf16 %v1262
        %v2207 = vunpack.c.h.s8.bf16 %v1263
        %v2208 = vunpack.c.h.s8.bf16 %v1264
        %v2209 = vunpack.c.h.s8.bf16 %v1265
        %v2210 = vunpack.c.h.s8.bf16 %v1266
        %v2211 = vunpack.c.h.s8.bf16 %v1267
        %v2212 = vunpack.c.h.s8.bf16 %v1268
        %v2213 = vunpack.c.l.s8.bf16 %v1269
        %v2214 = vunpack.c.l.s8.bf16 %v1270
        %v2215 = vunpack.c.l.s8.bf16 %v1271
        %v2216 = vunpack.c.l.s8.bf16 %v1272
        %v2217 = vunpack.c.l.s8.bf16 %v1273
        %v2218 = vunpack.c.l.s8.bf16 %v1274
        %v2219 = vunpack.c.l.s8.bf16 %v1275
        %v2220 = vunpack.c.l.s8.bf16 %v1276
        %v2221 = vunpack.c.l.s8.bf16 %v1277
        %v2222 = vunpack.c.l.s8.bf16 %v1278
        %v2223 = vunpack.c.l.s8.bf16 %v1279
        %v2224 = vunpack.c.l.s8.bf16 %v1280
        %v2225 = vunpack.c.l.s8.bf16 %v1281
        %v2226 = vunpack.c.l.s8.bf16 %v1282
        %v2227 = vunpack.c.l.s8.bf16 %v1283
        %v2228 = vunpack.c.l.s8.bf16 %v1284
        %v2229 = vunpack.c.h.s8.bf16 %v1269
        %v2230 = vunpack.c.h.s8.bf16 %v1270
        %v2231 = vunpack.c.h.s8.bf16 %v1271
        %v2232 = vunpack.c.h.s8.bf16 %v1272
        %v2233 = vunpack.c.h.s8.bf16 %v1273
        %v2234 = vunpack.c.h.s8.bf16 %v1274
        %v2235 = vunpack.c.h.s8.bf16 %v1275
        %v2236 = vunpack.c.h.s8.bf16 %v1276
        %v2237 = vunpack.c.h.s8.bf16 %v1277
        %v2238 = vunpack.c.h.s8.bf16 %v1278
        %v2239 = vunpack.c.h.s8.bf16 %v1279
        %v2240 = vunpack.c.h.s8.bf16 %v1280
        %v2241 = vunpack.c.h.s8.bf16 %v1281
        %v2242 = vunpack.c.h.s8.bf16 %v1282
        %v2243 = vunpack.c.h.s8.bf16 %v1283
        %v2244 = vunpack.c.h.s8.bf16 %v1284
        %v2245 = vunpack.c.l.s8.bf16 %v1285
        %v2246 = vunpack.c.l.s8.bf16 %v1286
        %v2247 = vunpack.c.l.s8.bf16 %v1287
        %v2248 = vunpack.c.l.s8.bf16 %v1288
        %v2249 = vunpack.c.l.s8.bf16 %v1289
        %v2250 = vunpack.c.l.s8.bf16 %v1290
        %v2251 = vunpack.c.l.s8.bf16 %v1291
        %v2252 = vunpack.c.l.s8.bf16 %v1292
        %v2253 = vunpack.c.l.s8.bf16 %v1293
        %v2254 = vunpack.c.l.s8.bf16 %v1294
        %v2255 = vunpack.c.l.s8.bf16 %v1295
        %v2256 = vunpack.c.l.s8.bf16 %v1296
        %v2257 = vunpack.c.l.s8.bf16 %v1297
        %v2258 = vunpack.c.l.s8.bf16 %v1298
        %v2259 = vunpack.c.l.s8.bf16 %v1299
        %v2260 = vunpack.c.l.s8.bf16 %v1300
        %v2261 = vunpack.c.h.s8.bf16 %v1285
        %v2262 = vunpack.c.h.s8.bf16 %v1286
        %v2263 = vunpack.c.h.s8.bf16 %v1287
        %v2264 = vunpack.c.h.s8.bf16 %v1288
        %v2265 = vunpack.c.h.s8.bf16 %v1289
        %v2266 = vunpack.c.h.s8.bf16 %v1290
        %v2267 = vunpack.c.h.s8.bf16 %v1291
        %v2268 = vunpack.c.h.s8.bf16 %v1292
        %v2269 = vunpack.c.h.s8.bf16 %v1293
        %v2270 = vunpack.c.h.s8.bf16 %v1294
        %v2271 = vunpack.c.h.s8.bf16 %v1295
        %v2272 = vunpack.c.h.s8.bf16 %v1296
        %v2273 = vunpack.c.h.s8.bf16 %v1297
        %v2274 = vunpack.c.h.s8.bf16 %v1298
        %v2275 = vunpack.c.h.s8.bf16 %v1299
        %v2276 = vunpack.c.h.s8.bf16 %v1300
        %v2277 = vunpack.c.l.s8.bf16 %v1301
        %v2278 = vunpack.c.l.s8.bf16 %v1302
        %v2279 = vunpack.c.l.s8.bf16 %v1303
        %v2280 = vunpack.c.l.s8.bf16 %v1304
        %v2281 = vunpack.c.l.s8.bf16 %v1305
        %v2282 = vunpack.c.l.s8.bf16 %v1306
        %v2283 = vunpack.c.l.s8.bf16 %v1307
        %v2284 = vunpack.c.l.s8.bf16 %v1308
        %v2285 = vunpack.c.l.s8.bf16 %v1309
        %v2286 = vunpack.c.l.s8.bf16 %v1310
        %v2287 = vunpack.c.l.s8.bf16 %v1311
        %v2288 = vunpack.c.l.s8.bf16 %v1312
        %v2289 = vunpack.c.l.s8.bf16 %v1313
        %v2290 = vunpack.c.l.s8.bf16 %v1314
        %v2291 = vunpack.c.l.s8.bf16 %v1315
        %v2292 = vunpack.c.l.s8.bf16 %v1316
        %v2293 = vunpack.c.h.s8.bf16 %v1301
        %v2294 = vunpack.c.h.s8.bf16 %v1302
        %v2295 = vunpack.c.h.s8.bf16 %v1303
        %v2296 = vunpack.c.h.s8.bf16 %v1304
        %v2297 = vunpack.c.h.s8.bf16 %v1305
        %v2298 = vunpack.c.h.s8.bf16 %v1306
        %v2299 = vunpack.c.h.s8.bf16 %v1307
        %v2300 = vunpack.c.h.s8.bf16 %v1308
        %v2301 = vunpack.c.h.s8.bf16 %v1309
        %v2302 = vunpack.c.h.s8.bf16 %v1310
        %v2303 = vunpack.c.h.s8.bf16 %v1311
        %v2304 = vunpack.c.h.s8.bf16 %v1312
        %v2305 = vunpack.c.h.s8.bf16 %v1313
        %v2306 = vunpack.c.h.s8.bf16 %v1314
        %v2307 = vunpack.c.h.s8.bf16 %v1315
        %v2308 = vunpack.c.h.s8.bf16 %v1316
        %v2309 = vunpack.c.l.s8.bf16 %v1317
        %v2310 = vunpack.c.l.s8.bf16 %v1318
        %v2311 = vunpack.c.l.s8.bf16 %v1319
        %v2312 = vunpack.c.l.s8.bf16 %v1320
        %v2313 = vunpack.c.l.s8.bf16 %v1321
        %v2314 = vunpack.c.l.s8.bf16 %v1322
        %v2315 = vunpack.c.l.s8.bf16 %v1323
        %v2316 = vunpack.c.l.s8.bf16 %v1324
        %v2317 = vunpack.c.l.s8.bf16 %v1325
        %v2318 = vunpack.c.l.s8.bf16 %v1326
        %v2319 = vunpack.c.l.s8.bf16 %v1327
        %v2320 = vunpack.c.l.s8.bf16 %v1328
        %v2321 = vunpack.c.l.s8.bf16 %v1329
        %v2322 = vunpack.c.l.s8.bf16 %v1330
        %v2323 = vunpack.c.l.s8.bf16 %v1331
        %v2324 = vunpack.c.l.s8.bf16 %v1332
        %v2325 = vunpack.c.h.s8.bf16 %v1317
        %v2326 = vunpack.c.h.s8.bf16 %v1318
        %v2327 = vunpack.c.h.s8.bf16 %v1319
        %v2328 = vunpack.c.h.s8.bf16 %v1320
        %v2329 = vunpack.c.h.s8.bf16 %v1321
        %v2330 = vunpack.c.h.s8.bf16 %v1322
        %v2331 = vunpack.c.h.s8.bf16 %v1323
        %v2332 = vunpack.c.h.s8.bf16 %v1324
        %v2333 = vunpack.c.h.s8.bf16 %v1325
        %v2334 = vunpack.c.h.s8.bf16 %v1326
        %v2335 = vunpack.c.h.s8.bf16 %v1327
        %v2336 = vunpack.c.h.s8.bf16 %v1328
        %v2337 = vunpack.c.h.s8.bf16 %v1329
        %v2338 = vunpack.c.h.s8.bf16 %v1330
        %v2339 = vunpack.c.h.s8.bf16 %v1331
        %v2340 = vunpack.c.h.s8.bf16 %v1332
        %v2341 = vunpack.c.l.s8.bf16 %v1333
        %v2342 = vunpack.c.l.s8.bf16 %v1334
        %v2343 = vunpack.c.l.s8.bf16 %v1335
        %v2344 = vunpack.c.l.s8.bf16 %v1336
        %v2345 = vunpack.c.l.s8.bf16 %v1337
        %v2346 = vunpack.c.l.s8.bf16 %v1338
        %v2347 = vunpack.c.l.s8.bf16 %v1339
        %v2348 = vunpack.c.l.s8.bf16 %v1340
        %v2349 = vunpack.c.l.s8.bf16 %v1341
        %v2350 = vunpack.c.l.s8.bf16 %v1342
        %v2351 = vunpack.c.l.s8.bf16 %v1343
        %v2352 = vunpack.c.l.s8.bf16 %v1344
        %v2353 = vunpack.c.l.s8.bf16 %v1345
        %v2354 = vunpack.c.l.s8.bf16 %v1346
        %v2355 = vunpack.c.l.s8.bf16 %v1347
        %v2356 = vunpack.c.l.s8.bf16 %v1348
        %v2357 = vunpack.c.h.s8.bf16 %v1333
        %v2358 = vunpack.c.h.s8.bf16 %v1334
        %v2359 = vunpack.c.h.s8.bf16 %v1335
        %v2360 = vunpack.c.h.s8.bf16 %v1336
        %v2361 = vunpack.c.h.s8.bf16 %v1337
        %v2362 = vunpack.c.h.s8.bf16 %v1338
        %v2363 = vunpack.c.h.s8.bf16 %v1339
        %v2364 = vunpack.c.h.s8.bf16 %v1340
        %v2365 = vunpack.c.h.s8.bf16 %v1341
        %v2366 = vunpack.c.h.s8.bf16 %v1342
        %v2367 = vunpack.c.h.s8.bf16 %v1343
        %v2368 = vunpack.c.h.s8.bf16 %v1344
        %v2369 = vunpack.c.h.s8.bf16 %v1345
        %v2370 = vunpack.c.h.s8.bf16 %v1346
        %v2371 = vunpack.c.h.s8.bf16 %v1347
        %v2372 = vunpack.c.h.s8.bf16 %v1348
        %2373 = vmatprep.subr.bf16.mxu0 %v1350
        %2374 = vmatpush1.bf16.msra.mxu0 %v1349
        %2375 = vmatprep.subr.bf16.mxu0 %v1366
        %2376 = vmatpush1.bf16.msra.mxu0 %v1365
        %2377 = vmatprep.subr.bf16.mxu0 %v1382
        %2378 = vmatpush1.bf16.msra.mxu0 %v1381
        %2379 = vmatprep.subr.bf16.mxu0 %v1398
        %2380 = vmatpush1.bf16.msra.mxu0 %v1397
        %2381 = vmatprep.subr.bf16.mxu0 %v1414
        %2382 = vmatpush1.bf16.msra.mxu0 %v1413
        %2383 = vmatprep.subr.bf16.mxu0 %v1430
        %2384 = vmatpush1.bf16.msra.mxu0 %v1429
        %2385 = vmatprep.subr.bf16.mxu0 %v1446
        %2386 = vmatpush1.bf16.msra.mxu0 %v1445
        %2387 = vmatprep.subr.bf16.mxu0 %v1462
        %2388 = vmatpush1.bf16.msra.mxu0 %v1461
        %2389 = vmatprep.subr.bf16.mxu0 %v1478
        %2390 = vmatpush1.bf16.msra.mxu0 %v1477
        %2391 = vmatprep.subr.bf16.mxu0 %v1494
        %2392 = vmatpush1.bf16.msra.mxu0 %v1493
        %2393 = vmatprep.subr.bf16.mxu0 %v1510
        %2394 = vmatpush1.bf16.msra.mxu0 %v1509
        %2395 = vmatprep.subr.bf16.mxu0 %v1526
        %2396 = vmatpush1.bf16.msra.mxu0 %v1525
        %2397 = vmatprep.subr.bf16.mxu0 %v1542
        %2398 = vmatpush1.bf16.msra.mxu0 %v1541
        %2399 = vmatprep.subr.bf16.mxu0 %v1558
        %2400 = vmatpush1.bf16.msra.mxu0 %v1557
        %2401 = vmatprep.subr.bf16.mxu0 %v1574
        %2402 = vmatpush1.bf16.msra.mxu0 %v1573
        %2403 = vmatprep.subr.bf16.mxu0 %v1590
        %2404 = vmatpush1.bf16.msra.mxu0 %v1589
        %2405 = vmatprep.mubr.bf16.mxu0 %v830
        %2406 = vmatmul.mubr.bf16.gmra.mrb[0].mxu0 %v829
        %v2407 = vpop.f32.mrb[0].mxu0
        %v2408 = vadd.f32 0.0, %v2407
        %v2409 = vpop.f32.mrb[0].mxu0
        %v2410 = vadd.f32 0.0, %v2409
        %v2411 = vpop.f32.mrb[0].mxu0
        %v2412 = vpop.f32.mrb[0].mxu0
        %2413 = vdwg.mxu0
        %2414 = vmatprep.subr.bf16.mxu0 %v1606
        %2415 = vmatpush1.bf16.msra.mxu0 %v1605
        %2416 = vmatprep.subr.bf16.mxu0 %v1622
        %2417 = vmatpush1.bf16.msra.mxu0 %v1621
        %2418 = vmatprep.subr.bf16.mxu0 %v1638
        %2419 = vmatpush1.bf16.msra.mxu0 %v1637
        %2420 = vmatprep.subr.bf16.mxu0 %v1654
        %2421 = vmatpush1.bf16.msra.mxu0 %v1653
        %2422 = vmatprep.subr.bf16.mxu0 %v1670
        %2423 = vmatpush1.bf16.msra.mxu0 %v1669
        %2424 = vmatprep.subr.bf16.mxu0 %v1686
        %2425 = vmatpush1.bf16.msra.mxu0 %v1685
        %2426 = vmatprep.subr.bf16.mxu0 %v1702
        %2427 = vmatpush1.bf16.msra.mxu0 %v1701
        %2428 = vmatprep.subr.bf16.mxu0 %v1718
        %2429 = vmatpush1.bf16.msra.mxu0 %v1717
        %2430 = vmatprep.subr.bf16.mxu0 %v1734
        %2431 = vmatpush1.bf16.msra.mxu0 %v1733
        %2432 = vmatprep.subr.bf16.mxu0 %v1750
        %2433 = vmatpush1.bf16.msra.mxu0 %v1749
        %2434 = vmatprep.subr.bf16.mxu0 %v1766
        %2435 = vmatpush1.bf16.msra.mxu0 %v1765
        %2436 = vmatprep.subr.bf16.mxu0 %v1782
        %2437 = vmatpush1.bf16.msra.mxu0 %v1781
        %2438 = vmatprep.subr.bf16.mxu0 %v1798
        %2439 = vmatpush1.bf16.msra.mxu0 %v1797
        %2440 = vmatprep.subr.bf16.mxu0 %v1814
        %2441 = vmatpush1.bf16.msra.mxu0 %v1813
        %2442 = vmatprep.subr.bf16.mxu0 %v1830
        %2443 = vmatpush1.bf16.msra.mxu0 %v1829
        %2444 = vmatprep.subr.bf16.mxu0 %v1846
        %2445 = vmatpush1.bf16.msra.mxu0 %v1845
        %2446 = vmatprep.mubr.bf16.mxu0 %v832
        %2447 = vmatmul.mubr.bf16.gmra.mrb[0].mxu0 %v831
        %v2448 = vpop.f32.mrb[0].mxu0
        %v2449 = vadd.f32 %v2408, %v2448
        %v2450 = vpop.f32.mrb[0].mxu0
        %v2451 = vadd.f32 %v2410, %v2450
        %v2452 = vpop.f32.mrb[0].mxu0
        %v2453 = vpop.f32.mrb[0].mxu0
        %2454 = vdwg.mxu0
        %2455 = vmatprep.subr.bf16.mxu0 %v1862
        %2456 = vmatpush1.bf16.msra.mxu0 %v1861
        %2457 = vmatprep.subr.bf16.mxu0 %v1878
        %2458 = vmatpush1.bf16.msra.mxu0 %v1877
        %2459 = vmatprep.subr.bf16.mxu0 %v1894
        %2460 = vmatpush1.bf16.msra.mxu0 %v1893
        %2461 = vmatprep.subr.bf16.mxu0 %v1910
        %2462 = vmatpush1.bf16.msra.mxu0 %v1909
        %2463 = vmatprep.subr.bf16.mxu0 %v1926
        %2464 = vmatpush1.bf16.msra.mxu0 %v1925
        %2465 = vmatprep.subr.bf16.mxu0 %v1942
        %2466 = vmatpush1.bf16.msra.mxu0 %v1941
        %2467 = vmatprep.subr.bf16.mxu0 %v1958
        %2468 = vmatpush1.bf16.msra.mxu0 %v1957
        %2469 = vmatprep.subr.bf16.mxu0 %v1974
        %2470 = vmatpush1.bf16.msra.mxu0 %v1973
        %2471 = vmatprep.subr.bf16.mxu0 %v1990
        %2472 = vmatpush1.bf16.msra.mxu0 %v1989
        %2473 = vmatprep.subr.bf16.mxu0 %v2006
        %2474 = vmatpush1.bf16.msra.mxu0 %v2005
        %2475 = vmatprep.subr.bf16.mxu0 %v2022
        %2476 = vmatpush1.bf16.msra.mxu0 %v2021
        %2477 = vmatprep.subr.bf16.mxu0 %v2038
        %2478 = vmatpush1.bf16.msra.mxu0 %v2037
        %2479 = vmatprep.subr.bf16.mxu0 %v2054
        %2480 = vmatpush1.bf16.msra.mxu0 %v2053
        %2481 = vmatprep.subr.bf16.mxu0 %v2070
        %2482 = vmatpush1.bf16.msra.mxu0 %v2069
        %2483 = vmatprep.subr.bf16.mxu0 %v2086
        %2484 = vmatpush1.bf16.msra.mxu0 %v2085
        %2485 = vmatprep.subr.bf16.mxu0 %v2102
        %2486 = vmatpush1.bf16.msra.mxu0 %v2101
        %2487 = vmatprep.mubr.bf16.mxu0 %v834
        %2488 = vmatmul.mubr.bf16.gmra.mrb[0].mxu0 %v833
        %v2489 = vpop.f32.mrb[0].mxu0
        %v2490 = vadd.f32 %v2449, %v2489
        %v2491 = vpop.f32.mrb[0].mxu0
        %v2492 = vadd.f32 %v2451, %v2491
        %v2493 = vpop.f32.mrb[0].mxu0
        %v2494 = vpop.f32.mrb[0].mxu0
        %2495 = vdwg.mxu0
        %2496 = vmatprep.subr.bf16.mxu0 %v2118
        %2497 = vmatpush1.bf16.msra.mxu0 %v2117
        %2498 = vmatprep.subr.bf16.mxu0 %v2134
        %2499 = vmatpush1.bf16.msra.mxu0 %v2133
        %2500 = vmatprep.subr.bf16.mxu0 %v2150
        %2501 = vmatpush1.bf16.msra.mxu0 %v2149
        %2502 = vmatprep.subr.bf16.mxu0 %v2166
        %2503 = vmatpush1.bf16.msra.mxu0 %v2165
        %2504 = vmatprep.subr.bf16.mxu0 %v2182
        %2505 = vmatpush1.bf16.msra.mxu0 %v2181
        %2506 = vmatprep.subr.bf16.mxu0 %v2198
        %2507 = vmatpush1.bf16.msra.mxu0 %v2197
        %2508 = vmatprep.subr.bf16.mxu0 %v2214
        %2509 = vmatpush1.bf16.msra.mxu0 %v2213
        %2510 = vmatprep.subr.bf16.mxu0 %v2230
        %2511 = vmatpush1.bf16.msra.mxu0 %v2229
        %2512 = vmatprep.subr.bf16.mxu0 %v2246
        %2513 = vmatpush1.bf16.msra.mxu0 %v2245
        %2514 = vmatprep.subr.bf16.mxu0 %v2262
        %2515 = vmatpush1.bf16.msra.mxu0 %v2261
        %2516 = vmatprep.subr.bf16.mxu0 %v2278
        %2517 = vmatpush1.bf16.msra.mxu0 %v2277
        %2518 = vmatprep.subr.bf16.mxu0 %v2294
        %2519 = vmatpush1.bf16.msra.mxu0 %v2293
        %2520 = vmatprep.subr.bf16.mxu0 %v2310
        %2521 = vmatpush1.bf16.msra.mxu0 %v2309
        %2522 = vmatprep.subr.bf16.mxu0 %v2326
        %2523 = vmatpush1.bf16.msra.mxu0 %v2325
        %2524 = vmatprep.subr.bf16.mxu0 %v2342
        %2525 = vmatpush1.bf16.msra.mxu0 %v2341
        %2526 = vmatprep.subr.bf16.mxu0 %v2358
        %2527 = vmatpush1.bf16.msra.mxu0 %v2357
        %2528 = vmatprep.mubr.bf16.mxu0 %v836
        %2529 = vmatmul.mubr.bf16.gmra.mrb[0].mxu0 %v835
        %v2530 = vpop.f32.mrb[0].mxu0
        %v2531 = vadd.f32 %v2490, %v2530
        %v2532 = vpop.f32.mrb[0].mxu0
        %v2533 = vadd.f32 %v2492, %v2532
        %v2534 = vpop.f32.mrb[0].mxu0
        %v2535 = vpop.f32.mrb[0].mxu0
        %2536 = vdwg.mxu0
        %2537 = vmatprep.subr.bf16.mxu0 %v1352
        %2538 = vmatpush1.bf16.msra.mxu0 %v1351
        %2539 = vmatprep.subr.bf16.mxu0 %v1368
        %2540 = vmatpush1.bf16.msra.mxu0 %v1367
        %2541 = vmatprep.subr.bf16.mxu0 %v1384
        %2542 = vmatpush1.bf16.msra.mxu0 %v1383
        %2543 = vmatprep.subr.bf16.mxu0 %v1400
        %2544 = vmatpush1.bf16.msra.mxu0 %v1399
        %2545 = vmatprep.subr.bf16.mxu0 %v1416
        %2546 = vmatpush1.bf16.msra.mxu0 %v1415
        %2547 = vmatprep.subr.bf16.mxu0 %v1432
        %2548 = vmatpush1.bf16.msra.mxu0 %v1431
        %2549 = vmatprep.subr.bf16.mxu0 %v1448
        %2550 = vmatpush1.bf16.msra.mxu0 %v1447
        %2551 = vmatprep.subr.bf16.mxu0 %v1464
        %2552 = vmatpush1.bf16.msra.mxu0 %v1463
        %2553 = vmatprep.subr.bf16.mxu0 %v1480
        %2554 = vmatpush1.bf16.msra.mxu0 %v1479
        %2555 = vmatprep.subr.bf16.mxu0 %v1496
        %2556 = vmatpush1.bf16.msra.mxu0 %v1495
        %2557 = vmatprep.subr.bf16.mxu0 %v1512
        %2558 = vmatpush1.bf16.msra.mxu0 %v1511
        %2559 = vmatprep.subr.bf16.mxu0 %v1528
        %2560 = vmatpush1.bf16.msra.mxu0 %v1527
        %2561 = vmatprep.subr.bf16.mxu0 %v1544
        %2562 = vmatpush1.bf16.msra.mxu0 %v1543
        %2563 = vmatprep.subr.bf16.mxu0 %v1560
        %2564 = vmatpush1.bf16.msra.mxu0 %v1559
        %2565 = vmatprep.subr.bf16.mxu0 %v1576
        %2566 = vmatpush1.bf16.msra.mxu0 %v1575
        %2567 = vmatprep.subr.bf16.mxu0 %v1592
        %2568 = vmatpush1.bf16.msra.mxu0 %v1591
        %2569 = vmatprep.mubr.bf16.mxu0 %v830
        %2570 = vmatmul.mubr.bf16.gmra.mrb[0].mxu0 %v829
        %v2571 = vpop.f32.mrb[0].mxu0
        %v2572 = vadd.f32 0.0, %v2571
        %v2573 = vpop.f32.mrb[0].mxu0
        %v2574 = vadd.f32 0.0, %v2573
        %v2575 = vpop.f32.mrb[0].mxu0
        %v2576 = vpop.f32.mrb[0].mxu0
        %2577 = vdwg.mxu0
        %2578 = vmatprep.subr.bf16.mxu0 %v1608
        %2579 = vmatpush1.bf16.msra.mxu0 %v1607
        %2580 = vmatprep.subr.bf16.mxu0 %v1624
        %2581 = vmatpush1.bf16.msra.mxu0 %v1623
        %2582 = vmatprep.subr.bf16.mxu0 %v1640
        %2583 = vmatpush1.bf16.msra.mxu0 %v1639
        %2584 = vmatprep.subr.bf16.mxu0 %v1656
        %2585 = vmatpush1.bf16.msra.mxu0 %v1655
        %2586 = vmatprep.subr.bf16.mxu0 %v1672
        %2587 = vmatpush1.bf16.msra.mxu0 %v1671
        %2588 = vmatprep.subr.bf16.mxu0 %v1688
        %2589 = vmatpush1.bf16.msra.mxu0 %v1687
        %2590 = vmatprep.subr.bf16.mxu0 %v1704
        %2591 = vmatpush1.bf16.msra.mxu0 %v1703
        %2592 = vmatprep.subr.bf16.mxu0 %v1720
        %2593 = vmatpush1.bf16.msra.mxu0 %v1719
        %2594 = vmatprep.subr.bf16.mxu0 %v1736
        %2595 = vmatpush1.bf16.msra.mxu0 %v1735
        %2596 = vmatprep.subr.bf16.mxu0 %v1752
        %2597 = vmatpush1.bf16.msra.mxu0 %v1751
        %2598 = vmatprep.subr.bf16.mxu0 %v1768
        %2599 = vmatpush1.bf16.msra.mxu0 %v1767
        %2600 = vmatprep.subr.bf16.mxu0 %v1784
        %2601 = vmatpush1.bf16.msra.mxu0 %v1783
        %2602 = vmatprep.subr.bf16.mxu0 %v1800
        %2603 = vmatpush1.bf16.msra.mxu0 %v1799
        %2604 = vmatprep.subr.bf16.mxu0 %v1816
        %2605 = vmatpush1.bf16.msra.mxu0 %v1815
        %2606 = vmatprep.subr.bf16.mxu0 %v1832
        %2607 = vmatpush1.bf16.msra.mxu0 %v1831
        %2608 = vmatprep.subr.bf16.mxu0 %v1848
        %2609 = vmatpush1.bf16.msra.mxu0 %v1847
        %2610 = vmatprep.mubr.bf16.mxu0 %v832
        %2611 = vmatmul.mubr.bf16.gmra.mrb[0].mxu0 %v831
        %v2612 = vpop.f32.mrb[0].mxu0
        %v2613 = vadd.f32 %v2572, %v2612
        %v2614 = vpop.f32.mrb[0].mxu0
        %v2615 = vadd.f32 %v2574, %v2614
        %v2616 = vpop.f32.mrb[0].mxu0
        %v2617 = vpop.f32.mrb[0].mxu0
        %2618 = vdwg.mxu0
        %2619 = vmatprep.subr.bf16.mxu0 %v1864
        %2620 = vmatpush1.bf16.msra.mxu0 %v1863
        %2621 = vmatprep.subr.bf16.mxu0 %v1880
        %2622 = vmatpush1.bf16.msra.mxu0 %v1879
        %2623 = vmatprep.subr.bf16.mxu0 %v1896
        %2624 = vmatpush1.bf16.msra.mxu0 %v1895
        %2625 = vmatprep.subr.bf16.mxu0 %v1912
        %2626 = vmatpush1.bf16.msra.mxu0 %v1911
        %2627 = vmatprep.subr.bf16.mxu0 %v1928
        %2628 = vmatpush1.bf16.msra.mxu0 %v1927
        %2629 = vmatprep.subr.bf16.mxu0 %v1944
        %2630 = vmatpush1.bf16.msra.mxu0 %v1943
        %2631 = vmatprep.subr.bf16.mxu0 %v1960
        %2632 = vmatpush1.bf16.msra.mxu0 %v1959
        %2633 = vmatprep.subr.bf16.mxu0 %v1976
        %2634 = vmatpush1.bf16.msra.mxu0 %v1975
        %2635 = vmatprep.subr.bf16.mxu0 %v1992
        %2636 = vmatpush1.bf16.msra.mxu0 %v1991
        %2637 = vmatprep.subr.bf16.mxu0 %v2008
        %2638 = vmatpush1.bf16.msra.mxu0 %v2007
        %2639 = vmatprep.subr.bf16.mxu0 %v2024
        %2640 = vmatpush1.bf16.msra.mxu0 %v2023
        %2641 = vmatprep.subr.bf16.mxu0 %v2040
        %2642 = vmatpush1.bf16.msra.mxu0 %v2039
        %2643 = vmatprep.subr.bf16.mxu0 %v2056
        %2644 = vmatpush1.bf16.msra.mxu0 %v2055
        %2645 = vmatprep.subr.bf16.mxu0 %v2072
        %2646 = vmatpush1.bf16.msra.mxu0 %v2071
        %2647 = vmatprep.subr.bf16.mxu0 %v2088
        %2648 = vmatpush1.bf16.msra.mxu0 %v2087
        %2649 = vmatprep.subr.bf16.mxu0 %v2104
        %2650 = vmatpush1.bf16.msra.mxu0 %v2103
        %2651 = vmatprep.mubr.bf16.mxu0 %v834
        %2652 = vmatmul.mubr.bf16.gmra.mrb[0].mxu0 %v833
        %v2653 = vpop.f32.mrb[0].mxu0
        %v2654 = vadd.f32 %v2613, %v2653
        %v2655 = vpop.f32.mrb[0].mxu0
        %v2656 = vadd.f32 %v2615, %v2655
        %v2657 = vpop.f32.mrb[0].mxu0
        %v2658 = vpop.f32.mrb[0].mxu0
        %2659 = vdwg.mxu0
        %2660 = vmatprep.subr.bf16.mxu0 %v2120
        %2661 = vmatpush1.bf16.msra.mxu0 %v2119
        %2662 = vmatprep.subr.bf16.mxu0 %v2136
        %2663 = vmatpush1.bf16.msra.mxu0 %v2135
        %2664 = vmatprep.subr.bf16.mxu0 %v2152
        %2665 = vmatpush1.bf16.msra.mxu0 %v2151
        %2666 = vmatprep.subr.bf16.mxu0 %v2168
        %2667 = vmatpush1.bf16.msra.mxu0 %v2167
        %2668 = vmatprep.subr.bf16.mxu0 %v2184
        %2669 = vmatpush1.bf16.msra.mxu0 %v2183
        %2670 = vmatprep.subr.bf16.mxu0 %v2200
        %2671 = vmatpush1.bf16.msra.mxu0 %v2199
        %2672 = vmatprep.subr.bf16.mxu0 %v2216
        %2673 = vmatpush1.bf16.msra.mxu0 %v2215
        %2674 = vmatprep.subr.bf16.mxu0 %v2232
        %2675 = vmatpush1.bf16.msra.mxu0 %v2231
        %2676 = vmatprep.subr.bf16.mxu0 %v2248
        %2677 = vmatpush1.bf16.msra.mxu0 %v2247
        %2678 = vmatprep.subr.bf16.mxu0 %v2264
        %2679 = vmatpush1.bf16.msra.mxu0 %v2263
        %2680 = vmatprep.subr.bf16.mxu0 %v2280
        %2681 = vmatpush1.bf16.msra.mxu0 %v2279
        %2682 = vmatprep.subr.bf16.mxu0 %v2296
        %2683 = vmatpush1.bf16.msra.mxu0 %v2295
        %2684 = vmatprep.subr.bf16.mxu0 %v2312
        %2685 = vmatpush1.bf16.msra.mxu0 %v2311
        %2686 = vmatprep.subr.bf16.mxu0 %v2328
        %2687 = vmatpush1.bf16.msra.mxu0 %v2327
        %2688 = vmatprep.subr.bf16.mxu0 %v2344
        %2689 = vmatpush1.bf16.msra.mxu0 %v2343
        %2690 = vmatprep.subr.bf16.mxu0 %v2360
        %2691 = vmatpush1.bf16.msra.mxu0 %v2359
        %2692 = vmatprep.mubr.bf16.mxu0 %v836
        %2693 = vmatmul.mubr.bf16.gmra.mrb[0].mxu0 %v835
        %v2694 = vpop.f32.mrb[0].mxu0
        %v2695 = vadd.f32 %v2654, %v2694
        %v2696 = vpop.f32.mrb[0].mxu0
        %v2697 = vadd.f32 %v2656, %v2696
        %v2698 = vpop.f32.mrb[0].mxu0
        %v2699 = vpop.f32.mrb[0].mxu0
        %2700 = vdwg.mxu0
        %2701 = vmatprep.subr.bf16.mxu0 %v1354
        %2702 = vmatpush1.bf16.msra.mxu0 %v1353
        %2703 = vmatprep.subr.bf16.mxu0 %v1370
        %2704 = vmatpush1.bf16.msra.mxu0 %v1369
        %2705 = vmatprep.subr.bf16.mxu0 %v1386
        %2706 = vmatpush1.bf16.msra.mxu0 %v1385
        %2707 = vmatprep.subr.bf16.mxu0 %v1402
        %2708 = vmatpush1.bf16.msra.mxu0 %v1401
        %2709 = vmatprep.subr.bf16.mxu0 %v1418
        %2710 = vmatpush1.bf16.msra.mxu0 %v1417
        %2711 = vmatprep.subr.bf16.mxu0 %v1434
        %2712 = vmatpush1.bf16.msra.mxu0 %v1433
        %2713 = vmatprep.subr.bf16.mxu0 %v1450
        %2714 = vmatpush1.bf16.msra.mxu0 %v1449
        %2715 = vmatprep.subr.bf16.mxu0 %v1466
        %2716 = vmatpush1.bf16.msra.mxu0 %v1465
        %2717 = vmatprep.subr.bf16.mxu0 %v1482
        %2718 = vmatpush1.bf16.msra.mxu0 %v1481
        %2719 = vmatprep.subr.bf16.mxu0 %v1498
        %2720 = vmatpush1.bf16.msra.mxu0 %v1497
        %2721 = vmatprep.subr.bf16.mxu0 %v1514
        %2722 = vmatpush1.bf16.msra.mxu0 %v1513
        %2723 = vmatprep.subr.bf16.mxu0 %v1530
        %2724 = vmatpush1.bf16.msra.mxu0 %v1529
        %2725 = vmatprep.subr.bf16.mxu0 %v1546
        %2726 = vmatpush1.bf16.msra.mxu0 %v1545
        %2727 = vmatprep.subr.bf16.mxu0 %v1562
        %2728 = vmatpush1.bf16.msra.mxu0 %v1561
        %2729 = vmatprep.subr.bf16.mxu0 %v1578
        %2730 = vmatpush1.bf16.msra.mxu0 %v1577
        %2731 = vmatprep.subr.bf16.mxu0 %v1594
        %2732 = vmatpush1.bf16.msra.mxu0 %v1593
        %2733 = vmatprep.mubr.bf16.mxu0 %v830
        %2734 = vmatmul.mubr.bf16.gmra.mrb[0].mxu0 %v829
        %v2735 = vpop.f32.mrb[0].mxu0
        %v2736 = vadd.f32 0.0, %v2735
        %v2737 = vpop.f32.mrb[0].mxu0
        %v2738 = vadd.f32 0.0, %v2737
        %v2739 = vpop.f32.mrb[0].mxu0
        %v2740 = vpop.f32.mrb[0].mxu0
        %2741 = vdwg.mxu0
        %2742 = vmatprep.subr.bf16.mxu0 %v1610
        %2743 = vmatpush1.bf16.msra.mxu0 %v1609
        %2744 = vmatprep.subr.bf16.mxu0 %v1626
        %2745 = vmatpush1.bf16.msra.mxu0 %v1625
        %2746 = vmatprep.subr.bf16.mxu0 %v1642
        %2747 = vmatpush1.bf16.msra.mxu0 %v1641
        %2748 = vmatprep.subr.bf16.mxu0 %v1658
        %2749 = vmatpush1.bf16.msra.mxu0 %v1657
        %2750 = vmatprep.subr.bf16.mxu0 %v1674
        %2751 = vmatpush1.bf16.msra.mxu0 %v1673
        %2752 = vmatprep.subr.bf16.mxu0 %v1690
        %2753 = vmatpush1.bf16.msra.mxu0 %v1689
        %2754 = vmatprep.subr.bf16.mxu0 %v1706
        %2755 = vmatpush1.bf16.msra.mxu0 %v1705
        %2756 = vmatprep.subr.bf16.mxu0 %v1722
        %2757 = vmatpush1.bf16.msra.mxu0 %v1721
        %2758 = vmatprep.subr.bf16.mxu0 %v1738
        %2759 = vmatpush1.bf16.msra.mxu0 %v1737
        %2760 = vmatprep.subr.bf16.mxu0 %v1754
        %2761 = vmatpush1.bf16.msra.mxu0 %v1753
        %2762 = vmatprep.subr.bf16.mxu0 %v1770
        %2763 = vmatpush1.bf16.msra.mxu0 %v1769
        %2764 = vmatprep.subr.bf16.mxu0 %v1786
        %2765 = vmatpush1.bf16.msra.mxu0 %v1785
        %2766 = vmatprep.subr.bf16.mxu0 %v1802
        %2767 = vmatpush1.bf16.msra.mxu0 %v1801
        %2768 = vmatprep.subr.bf16.mxu0 %v1818
        %2769 = vmatpush1.bf16.msra.mxu0 %v1817
        %2770 = vmatprep.subr.bf16.mxu0 %v1834
        %2771 = vmatpush1.bf16.msra.mxu0 %v1833
        %2772 = vmatprep.subr.bf16.mxu0 %v1850
        %2773 = vmatpush1.bf16.msra.mxu0 %v1849
        %2774 = vmatprep.mubr.bf16.mxu0 %v832
        %2775 = vmatmul.mubr.bf16.gmra.mrb[0].mxu0 %v831
        %v2776 = vpop.f32.mrb[0].mxu0
        %v2777 = vadd.f32 %v2736, %v2776
        %v2778 = vpop.f32.mrb[0].mxu0
        %v2779 = vadd.f32 %v2738, %v2778
        %v2780 = vpop.f32.mrb[0].mxu0
        %v2781 = vpop.f32.mrb[0].mxu0
        %2782 = vdwg.mxu0
        %2783 = vmatprep.subr.bf16.mxu0 %v1866
        %2784 = vmatpush1.bf16.msra.mxu0 %v1865
        %2785 = vmatprep.subr.bf16.mxu0 %v1882
        %2786 = vmatpush1.bf16.msra.mxu0 %v1881
        %2787 = vmatprep.subr.bf16.mxu0 %v1898
        %2788 = vmatpush1.bf16.msra.mxu0 %v1897
        %2789 = vmatprep.subr.bf16.mxu0 %v1914
        %2790 = vmatpush1.bf16.msra.mxu0 %v1913
        %2791 = vmatprep.subr.bf16.mxu0 %v1930
        %2792 = vmatpush1.bf16.msra.mxu0 %v1929
        %2793 = vmatprep.subr.bf16.mxu0 %v1946
        %2794 = vmatpush1.bf16.msra.mxu0 %v1945
        %2795 = vmatprep.subr.bf16.mxu0 %v1962
        %2796 = vmatpush1.bf16.msra.mxu0 %v1961
        %2797 = vmatprep.subr.bf16.mxu0 %v1978
        %2798 = vmatpush1.bf16.msra.mxu0 %v1977
        %2799 = vmatprep.subr.bf16.mxu0 %v1994
        %2800 = vmatpush1.bf16.msra.mxu0 %v1993
        %2801 = vmatprep.subr.bf16.mxu0 %v2010
        %2802 = vmatpush1.bf16.msra.mxu0 %v2009
        %2803 = vmatprep.subr.bf16.mxu0 %v2026
        %2804 = vmatpush1.bf16.msra.mxu0 %v2025
        %2805 = vmatprep.subr.bf16.mxu0 %v2042
        %2806 = vmatpush1.bf16.msra.mxu0 %v2041
        %2807 = vmatprep.subr.bf16.mxu0 %v2058
        %2808 = vmatpush1.bf16.msra.mxu0 %v2057
        %2809 = vmatprep.subr.bf16.mxu0 %v2074
        %2810 = vmatpush1.bf16.msra.mxu0 %v2073
        %2811 = vmatprep.subr.bf16.mxu0 %v2090
        %2812 = vmatpush1.bf16.msra.mxu0 %v2089
        %2813 = vmatprep.subr.bf16.mxu0 %v2106
        %2814 = vmatpush1.bf16.msra.mxu0 %v2105
        %2815 = vmatprep.mubr.bf16.mxu0 %v834
        %2816 = vmatmul.mubr.bf16.gmra.mrb[0].mxu0 %v833
        %v2817 = vpop.f32.mrb[0].mxu0
        %v2818 = vadd.f32 %v2777, %v2817
        %v2819 = vpop.f32.mrb[0].mxu0
        %v2820 = vadd.f32 %v2779, %v2819
        %v2821 = vpop.f32.mrb[0].mxu0
        %v2822 = vpop.f32.mrb[0].mxu0
        %2823 = vdwg.mxu0
        %2824 = vmatprep.subr.bf16.mxu0 %v2122
        %2825 = vmatpush1.bf16.msra.mxu0 %v2121
        %2826 = vmatprep.subr.bf16.mxu0 %v2138
        %2827 = vmatpush1.bf16.msra.mxu0 %v2137
        %2828 = vmatprep.subr.bf16.mxu0 %v2154
        %2829 = vmatpush1.bf16.msra.mxu0 %v2153
        %2830 = vmatprep.subr.bf16.mxu0 %v2170
        %2831 = vmatpush1.bf16.msra.mxu0 %v2169
        %2832 = vmatprep.subr.bf16.mxu0 %v2186
        %2833 = vmatpush1.bf16.msra.mxu0 %v2185
        %2834 = vmatprep.subr.bf16.mxu0 %v2202
        %2835 = vmatpush1.bf16.msra.mxu0 %v2201
        %2836 = vmatprep.subr.bf16.mxu0 %v2218
        %2837 = vmatpush1.bf16.msra.mxu0 %v2217
        %2838 = vmatprep.subr.bf16.mxu0 %v2234
        %2839 = vmatpush1.bf16.msra.mxu0 %v2233
        %2840 = vmatprep.subr.bf16.mxu0 %v2250
        %2841 = vmatpush1.bf16.msra.mxu0 %v2249
        %2842 = vmatprep.subr.bf16.mxu0 %v2266
        %2843 = vmatpush1.bf16.msra.mxu0 %v2265
        %2844 = vmatprep.subr.bf16.mxu0 %v2282
        %2845 = vmatpush1.bf16.msra.mxu0 %v2281
        %2846 = vmatprep.subr.bf16.mxu0 %v2298
        %2847 = vmatpush1.bf16.msra.mxu0 %v2297
        %2848 = vmatprep.subr.bf16.mxu0 %v2314
        %2849 = vmatpush1.bf16.msra.mxu0 %v2313
        %2850 = vmatprep.subr.bf16.mxu0 %v2330
        %2851 = vmatpush1.bf16.msra.mxu0 %v2329
        %2852 = vmatprep.subr.bf16.mxu0 %v2346
        %2853 = vmatpush1.bf16.msra.mxu0 %v2345
        %2854 = vmatprep.subr.bf16.mxu0 %v2362
        %2855 = vmatpush1.bf16.msra.mxu0 %v2361
        %2856 = vmatprep.mubr.bf16.mxu0 %v836
        %2857 = vmatmul.mubr.bf16.gmra.mrb[0].mxu0 %v835
        %v2858 = vpop.f32.mrb[0].mxu0
        %v2859 = vadd.f32 %v2818, %v2858
        %v2860 = vpop.f32.mrb[0].mxu0
        %v2861 = vadd.f32 %v2820, %v2860
        %v2862 = vpop.f32.mrb[0].mxu0
        %v2863 = vpop.f32.mrb[0].mxu0
        %2864 = vdwg.mxu0
        %2865 = vmatprep.subr.bf16.mxu0 %v1356
        %2866 = vmatpush1.bf16.msra.mxu0 %v1355
        %2867 = vmatprep.subr.bf16.mxu0 %v1372
        %2868 = vmatpush1.bf16.msra.mxu0 %v1371
        %2869 = vmatprep.subr.bf16.mxu0 %v1388
        %2870 = vmatpush1.bf16.msra.mxu0 %v1387
        %2871 = vmatprep.subr.bf16.mxu0 %v1404
        %2872 = vmatpush1.bf16.msra.mxu0 %v1403
        %2873 = vmatprep.subr.bf16.mxu0 %v1420
        %2874 = vmatpush1.bf16.msra.mxu0 %v1419
        %2875 = vmatprep.subr.bf16.mxu0 %v1436
        %2876 = vmatpush1.bf16.msra.mxu0 %v1435
        %2877 = vmatprep.subr.bf16.mxu0 %v1452
        %2878 = vmatpush1.bf16.msra.mxu0 %v1451
        %2879 = vmatprep.subr.bf16.mxu0 %v1468
        %2880 = vmatpush1.bf16.msra.mxu0 %v1467
        %2881 = vmatprep.subr.bf16.mxu0 %v1484
        %2882 = vmatpush1.bf16.msra.mxu0 %v1483
        %2883 = vmatprep.subr.bf16.mxu0 %v1500
        %2884 = vmatpush1.bf16.msra.mxu0 %v1499
        %2885 = vmatprep.subr.bf16.mxu0 %v1516
        %2886 = vmatpush1.bf16.msra.mxu0 %v1515
        %2887 = vmatprep.subr.bf16.mxu0 %v1532
        %2888 = vmatpush1.bf16.msra.mxu0 %v1531
        %2889 = vmatprep.subr.bf16.mxu0 %v1548
        %2890 = vmatpush1.bf16.msra.mxu0 %v1547
        %2891 = vmatprep.subr.bf16.mxu0 %v1564
        %2892 = vmatpush1.bf16.msra.mxu0 %v1563
        %2893 = vmatprep.subr.bf16.mxu0 %v1580
        %2894 = vmatpush1.bf16.msra.mxu0 %v1579
        %2895 = vmatprep.subr.bf16.mxu0 %v1596
        %2896 = vmatpush1.bf16.msra.mxu0 %v1595
        %2897 = vmatprep.mubr.bf16.mxu0 %v830
        %2898 = vmatmul.mubr.bf16.gmra.mrb[0].mxu0 %v829
        %v2899 = vpop.f32.mrb[0].mxu0
        %v2900 = vadd.f32 0.0, %v2899
        %v2901 = vpop.f32.mrb[0].mxu0
        %v2902 = vadd.f32 0.0, %v2901
        %v2903 = vpop.f32.mrb[0].mxu0
        %v2904 = vpop.f32.mrb[0].mxu0
        %2905 = vdwg.mxu0
        %2906 = vmatprep.subr.bf16.mxu0 %v1612
        %2907 = vmatpush1.bf16.msra.mxu0 %v1611
        %2908 = vmatprep.subr.bf16.mxu0 %v1628
        %2909 = vmatpush1.bf16.msra.mxu0 %v1627
        %2910 = vmatprep.subr.bf16.mxu0 %v1644
        %2911 = vmatpush1.bf16.msra.mxu0 %v1643
        %2912 = vmatprep.subr.bf16.mxu0 %v1660
        %2913 = vmatpush1.bf16.msra.mxu0 %v1659
        %2914 = vmatprep.subr.bf16.mxu0 %v1676
        %2915 = vmatpush1.bf16.msra.mxu0 %v1675
        %2916 = vmatprep.subr.bf16.mxu0 %v1692
        %2917 = vmatpush1.bf16.msra.mxu0 %v1691
        %2918 = vmatprep.subr.bf16.mxu0 %v1708
        %2919 = vmatpush1.bf16.msra.mxu0 %v1707
        %2920 = vmatprep.subr.bf16.mxu0 %v1724
        %2921 = vmatpush1.bf16.msra.mxu0 %v1723
        %2922 = vmatprep.subr.bf16.mxu0 %v1740
        %2923 = vmatpush1.bf16.msra.mxu0 %v1739
        %2924 = vmatprep.subr.bf16.mxu0 %v1756
        %2925 = vmatpush1.bf16.msra.mxu0 %v1755
        %2926 = vmatprep.subr.bf16.mxu0 %v1772
        %2927 = vmatpush1.bf16.msra.mxu0 %v1771
        %2928 = vmatprep.subr.bf16.mxu0 %v1788
        %2929 = vmatpush1.bf16.msra.mxu0 %v1787
        %2930 = vmatprep.subr.bf16.mxu0 %v1804
        %2931 = vmatpush1.bf16.msra.mxu0 %v1803
        %2932 = vmatprep.subr.bf16.mxu0 %v1820
        %2933 = vmatpush1.bf16.msra.mxu0 %v1819
        %2934 = vmatprep.subr.bf16.mxu0 %v1836
        %2935 = vmatpush1.bf16.msra.mxu0 %v1835
        %2936 = vmatprep.subr.bf16.mxu0 %v1852
        %2937 = vmatpush1.bf16.msra.mxu0 %v1851
        %2938 = vmatprep.mubr.bf16.mxu0 %v832
        %2939 = vmatmul.mubr.bf16.gmra.mrb[0].mxu0 %v831
        %v2940 = vpop.f32.mrb[0].mxu0
        %v2941 = vadd.f32 %v2900, %v2940
        %v2942 = vpop.f32.mrb[0].mxu0
        %v2943 = vadd.f32 %v2902, %v2942
        %v2944 = vpop.f32.mrb[0].mxu0
        %v2945 = vpop.f32.mrb[0].mxu0
        %2946 = vdwg.mxu0
        %2947 = vmatprep.subr.bf16.mxu0 %v1868
        %2948 = vmatpush1.bf16.msra.mxu0 %v1867
        %2949 = vmatprep.subr.bf16.mxu0 %v1884
        %2950 = vmatpush1.bf16.msra.mxu0 %v1883
        %2951 = vmatprep.subr.bf16.mxu0 %v1900
        %2952 = vmatpush1.bf16.msra.mxu0 %v1899
        %2953 = vmatprep.subr.bf16.mxu0 %v1916
        %2954 = vmatpush1.bf16.msra.mxu0 %v1915
        %2955 = vmatprep.subr.bf16.mxu0 %v1932
        %2956 = vmatpush1.bf16.msra.mxu0 %v1931
        %2957 = vmatprep.subr.bf16.mxu0 %v1948
        %2958 = vmatpush1.bf16.msra.mxu0 %v1947
        %2959 = vmatprep.subr.bf16.mxu0 %v1964
        %2960 = vmatpush1.bf16.msra.mxu0 %v1963
        %2961 = vmatprep.subr.bf16.mxu0 %v1980
        %2962 = vmatpush1.bf16.msra.mxu0 %v1979
        %2963 = vmatprep.subr.bf16.mxu0 %v1996
        %2964 = vmatpush1.bf16.msra.mxu0 %v1995
        %2965 = vmatprep.subr.bf16.mxu0 %v2012
        %2966 = vmatpush1.bf16.msra.mxu0 %v2011
        %2967 = vmatprep.subr.bf16.mxu0 %v2028
        %2968 = vmatpush1.bf16.msra.mxu0 %v2027
        %2969 = vmatprep.subr.bf16.mxu0 %v2044
        %2970 = vmatpush1.bf16.msra.mxu0 %v2043
        %2971 = vmatprep.subr.bf16.mxu0 %v2060
        %2972 = vmatpush1.bf16.msra.mxu0 %v2059
        %2973 = vmatprep.subr.bf16.mxu0 %v2076
        %2974 = vmatpush1.bf16.msra.mxu0 %v2075
        %2975 = vmatprep.subr.bf16.mxu0 %v2092
        %2976 = vmatpush1.bf16.msra.mxu0 %v2091
        %2977 = vmatprep.subr.bf16.mxu0 %v2108
        %2978 = vmatpush1.bf16.msra.mxu0 %v2107
        %2979 = vmatprep.mubr.bf16.mxu0 %v834
        %2980 = vmatmul.mubr.bf16.gmra.mrb[0].mxu0 %v833
        %v2981 = vpop.f32.mrb[0].mxu0
        %v2982 = vadd.f32 %v2941, %v2981
        %v2983 = vpop.f32.mrb[0].mxu0
        %v2984 = vadd.f32 %v2943, %v2983
        %v2985 = vpop.f32.mrb[0].mxu0
        %v2986 = vpop.f32.mrb[0].mxu0
        %2987 = vdwg.mxu0
        %2988 = vmatprep.subr.bf16.mxu0 %v2124
        %2989 = vmatpush1.bf16.msra.mxu0 %v2123
        %2990 = vmatprep.subr.bf16.mxu0 %v2140
        %2991 = vmatpush1.bf16.msra.mxu0 %v2139
        %2992 = vmatprep.subr.bf16.mxu0 %v2156
        %2993 = vmatpush1.bf16.msra.mxu0 %v2155
        %2994 = vmatprep.subr.bf16.mxu0 %v2172
        %2995 = vmatpush1.bf16.msra.mxu0 %v2171
        %2996 = vmatprep.subr.bf16.mxu0 %v2188
        %2997 = vmatpush1.bf16.msra.mxu0 %v2187
        %2998 = vmatprep.subr.bf16.mxu0 %v2204
        %2999 = vmatpush1.bf16.msra.mxu0 %v2203
        %3000 = vmatprep.subr.bf16.mxu0 %v2220
        %3001 = vmatpush1.bf16.msra.mxu0 %v2219
        %3002 = vmatprep.subr.bf16.mxu0 %v2236
        %3003 = vmatpush1.bf16.msra.mxu0 %v2235
        %3004 = vmatprep.subr.bf16.mxu0 %v2252
        %3005 = vmatpush1.bf16.msra.mxu0 %v2251
        %3006 = vmatprep.subr.bf16.mxu0 %v2268
        %3007 = vmatpush1.bf16.msra.mxu0 %v2267
        %3008 = vmatprep.subr.bf16.mxu0 %v2284
        %3009 = vmatpush1.bf16.msra.mxu0 %v2283
        %3010 = vmatprep.subr.bf16.mxu0 %v2300
        %3011 = vmatpush1.bf16.msra.mxu0 %v2299
        %3012 = vmatprep.subr.bf16.mxu0 %v2316
        %3013 = vmatpush1.bf16.msra.mxu0 %v2315
        %3014 = vmatprep.subr.bf16.mxu0 %v2332
        %3015 = vmatpush1.bf16.msra.mxu0 %v2331
        %3016 = vmatprep.subr.bf16.mxu0 %v2348
        %3017 = vmatpush1.bf16.msra.mxu0 %v2347
        %3018 = vmatprep.subr.bf16.mxu0 %v2364
        %3019 = vmatpush1.bf16.msra.mxu0 %v2363
        %3020 = vmatprep.mubr.bf16.mxu0 %v836
        %3021 = vmatmul.mubr.bf16.gmra.mrb[0].mxu0 %v835
        %v3022 = vpop.f32.mrb[0].mxu0
        %v3023 = vadd.f32 %v2982, %v3022
        %v3024 = vpop.f32.mrb[0].mxu0
        %v3025 = vadd.f32 %v2984, %v3024
        %v3026 = vpop.f32.mrb[0].mxu0
        %v3027 = vpop.f32.mrb[0].mxu0
        %3028 = vdwg.mxu0
        %3029 = vmatprep.subr.bf16.mxu0 %v1358
        %3030 = vmatpush1.bf16.msra.mxu0 %v1357
        %3031 = vmatprep.subr.bf16.mxu0 %v1374
        %3032 = vmatpush1.bf16.msra.mxu0 %v1373
        %3033 = vmatprep.subr.bf16.mxu0 %v1390
        %3034 = vmatpush1.bf16.msra.mxu0 %v1389
        %3035 = vmatprep.subr.bf16.mxu0 %v1406
        %3036 = vmatpush1.bf16.msra.mxu0 %v1405
        %3037 = vmatprep.subr.bf16.mxu0 %v1422
        %3038 = vmatpush1.bf16.msra.mxu0 %v1421
        %3039 = vmatprep.subr.bf16.mxu0 %v1438
        %3040 = vmatpush1.bf16.msra.mxu0 %v1437
        %3041 = vmatprep.subr.bf16.mxu0 %v1454
        %3042 = vmatpush1.bf16.msra.mxu0 %v1453
        %3043 = vmatprep.subr.bf16.mxu0 %v1470
        %3044 = vmatpush1.bf16.msra.mxu0 %v1469
        %3045 = vmatprep.subr.bf16.mxu0 %v1486
        %3046 = vmatpush1.bf16.msra.mxu0 %v1485
        %3047 = vmatprep.subr.bf16.mxu0 %v1502
        %3048 = vmatpush1.bf16.msra.mxu0 %v1501
        %3049 = vmatprep.subr.bf16.mxu0 %v1518
        %3050 = vmatpush1.bf16.msra.mxu0 %v1517
        %3051 = vmatprep.subr.bf16.mxu0 %v1534
        %3052 = vmatpush1.bf16.msra.mxu0 %v1533
        %3053 = vmatprep.subr.bf16.mxu0 %v1550
        %3054 = vmatpush1.bf16.msra.mxu0 %v1549
        %3055 = vmatprep.subr.bf16.mxu0 %v1566
        %3056 = vmatpush1.bf16.msra.mxu0 %v1565
        %3057 = vmatprep.subr.bf16.mxu0 %v1582
        %3058 = vmatpush1.bf16.msra.mxu0 %v1581
        %3059 = vmatprep.subr.bf16.mxu0 %v1598
        %3060 = vmatpush1.bf16.msra.mxu0 %v1597
        %3061 = vmatprep.mubr.bf16.mxu0 %v830
        %3062 = vmatmul.mubr.bf16.gmra.mrb[0].mxu0 %v829
        %v3063 = vpop.f32.mrb[0].mxu0
        %v3064 = vadd.f32 0.0, %v3063
        %v3065 = vpop.f32.mrb[0].mxu0
        %v3066 = vadd.f32 0.0, %v3065
        %v3067 = vpop.f32.mrb[0].mxu0
        %v3068 = vpop.f32.mrb[0].mxu0
        %3069 = vdwg.mxu0
        %3070 = vmatprep.subr.bf16.mxu0 %v1614
        %3071 = vmatpush1.bf16.msra.mxu0 %v1613
        %3072 = vmatprep.subr.bf16.mxu0 %v1630
        %3073 = vmatpush1.bf16.msra.mxu0 %v1629
        %3074 = vmatprep.subr.bf16.mxu0 %v1646
        %3075 = vmatpush1.bf16.msra.mxu0 %v1645
        %3076 = vmatprep.subr.bf16.mxu0 %v1662
        %3077 = vmatpush1.bf16.msra.mxu0 %v1661
        %3078 = vmatprep.subr.bf16.mxu0 %v1678
        %3079 = vmatpush1.bf16.msra.mxu0 %v1677
        %3080 = vmatprep.subr.bf16.mxu0 %v1694
        %3081 = vmatpush1.bf16.msra.mxu0 %v1693
        %3082 = vmatprep.subr.bf16.mxu0 %v1710
        %3083 = vmatpush1.bf16.msra.mxu0 %v1709
        %3084 = vmatprep.subr.bf16.mxu0 %v1726
        %3085 = vmatpush1.bf16.msra.mxu0 %v1725
        %3086 = vmatprep.subr.bf16.mxu0 %v1742
        %3087 = vmatpush1.bf16.msra.mxu0 %v1741
        %3088 = vmatprep.subr.bf16.mxu0 %v1758
        %3089 = vmatpush1.bf16.msra.mxu0 %v1757
        %3090 = vmatprep.subr.bf16.mxu0 %v1774
        %3091 = vmatpush1.bf16.msra.mxu0 %v1773
        %3092 = vmatprep.subr.bf16.mxu0 %v1790
        %3093 = vmatpush1.bf16.msra.mxu0 %v1789
        %3094 = vmatprep.subr.bf16.mxu0 %v1806
        %3095 = vmatpush1.bf16.msra.mxu0 %v1805
        %3096 = vmatprep.subr.bf16.mxu0 %v1822
        %3097 = vmatpush1.bf16.msra.mxu0 %v1821
        %3098 = vmatprep.subr.bf16.mxu0 %v1838
        %3099 = vmatpush1.bf16.msra.mxu0 %v1837
        %3100 = vmatprep.subr.bf16.mxu0 %v1854
        %3101 = vmatpush1.bf16.msra.mxu0 %v1853
        %3102 = vmatprep.mubr.bf16.mxu0 %v832
        %3103 = vmatmul.mubr.bf16.gmra.mrb[0].mxu0 %v831
        %v3104 = vpop.f32.mrb[0].mxu0
        %v3105 = vadd.f32 %v3064, %v3104
        %v3106 = vpop.f32.mrb[0].mxu0
        %v3107 = vadd.f32 %v3066, %v3106
        %v3108 = vpop.f32.mrb[0].mxu0
        %v3109 = vpop.f32.mrb[0].mxu0
        %3110 = vdwg.mxu0
        %3111 = vmatprep.subr.bf16.mxu0 %v1870
        %3112 = vmatpush1.bf16.msra.mxu0 %v1869
        %3113 = vmatprep.subr.bf16.mxu0 %v1886
        %3114 = vmatpush1.bf16.msra.mxu0 %v1885
        %3115 = vmatprep.subr.bf16.mxu0 %v1902
        %3116 = vmatpush1.bf16.msra.mxu0 %v1901
        %3117 = vmatprep.subr.bf16.mxu0 %v1918
        %3118 = vmatpush1.bf16.msra.mxu0 %v1917
        %3119 = vmatprep.subr.bf16.mxu0 %v1934
        %3120 = vmatpush1.bf16.msra.mxu0 %v1933
        %3121 = vmatprep.subr.bf16.mxu0 %v1950
        %3122 = vmatpush1.bf16.msra.mxu0 %v1949
        %3123 = vmatprep.subr.bf16.mxu0 %v1966
        %3124 = vmatpush1.bf16.msra.mxu0 %v1965
        %3125 = vmatprep.subr.bf16.mxu0 %v1982
        %3126 = vmatpush1.bf16.msra.mxu0 %v1981
        %3127 = vmatprep.subr.bf16.mxu0 %v1998
        %3128 = vmatpush1.bf16.msra.mxu0 %v1997
        %3129 = vmatprep.subr.bf16.mxu0 %v2014
        %3130 = vmatpush1.bf16.msra.mxu0 %v2013
        %3131 = vmatprep.subr.bf16.mxu0 %v2030
        %3132 = vmatpush1.bf16.msra.mxu0 %v2029
        %3133 = vmatprep.subr.bf16.mxu0 %v2046
        %3134 = vmatpush1.bf16.msra.mxu0 %v2045
        %3135 = vmatprep.subr.bf16.mxu0 %v2062
        %3136 = vmatpush1.bf16.msra.mxu0 %v2061
        %3137 = vmatprep.subr.bf16.mxu0 %v2078
        %3138 = vmatpush1.bf16.msra.mxu0 %v2077
        %3139 = vmatprep.subr.bf16.mxu0 %v2094
        %3140 = vmatpush1.bf16.msra.mxu0 %v2093
        %3141 = vmatprep.subr.bf16.mxu0 %v2110
        %3142 = vmatpush1.bf16.msra.mxu0 %v2109
        %3143 = vmatprep.mubr.bf16.mxu0 %v834
        %3144 = vmatmul.mubr.bf16.gmra.mrb[0].mxu0 %v833
        %v3145 = vpop.f32.mrb[0].mxu0
        %v3146 = vadd.f32 %v3105, %v3145
        %v3147 = vpop.f32.mrb[0].mxu0
        %v3148 = vadd.f32 %v3107, %v3147
        %v3149 = vpop.f32.mrb[0].mxu0
        %v3150 = vpop.f32.mrb[0].mxu0
        %3151 = vdwg.mxu0
        %3152 = vmatprep.subr.bf16.mxu0 %v2126
        %3153 = vmatpush1.bf16.msra.mxu0 %v2125
        %3154 = vmatprep.subr.bf16.mxu0 %v2142
        %3155 = vmatpush1.bf16.msra.mxu0 %v2141
        %3156 = vmatprep.subr.bf16.mxu0 %v2158
        %3157 = vmatpush1.bf16.msra.mxu0 %v2157
        %3158 = vmatprep.subr.bf16.mxu0 %v2174
        %3159 = vmatpush1.bf16.msra.mxu0 %v2173
        %3160 = vmatprep.subr.bf16.mxu0 %v2190
        %3161 = vmatpush1.bf16.msra.mxu0 %v2189
        %3162 = vmatprep.subr.bf16.mxu0 %v2206
        %3163 = vmatpush1.bf16.msra.mxu0 %v2205
        %3164 = vmatprep.subr.bf16.mxu0 %v2222
        %3165 = vmatpush1.bf16.msra.mxu0 %v2221
        %3166 = vmatprep.subr.bf16.mxu0 %v2238
        %3167 = vmatpush1.bf16.msra.mxu0 %v2237
        %3168 = vmatprep.subr.bf16.mxu0 %v2254
        %3169 = vmatpush1.bf16.msra.mxu0 %v2253
        %3170 = vmatprep.subr.bf16.mxu0 %v2270
        %3171 = vmatpush1.bf16.msra.mxu0 %v2269
        %3172 = vmatprep.subr.bf16.mxu0 %v2286
        %3173 = vmatpush1.bf16.msra.mxu0 %v2285
        %3174 = vmatprep.subr.bf16.mxu0 %v2302
        %3175 = vmatpush1.bf16.msra.mxu0 %v2301
        %3176 = vmatprep.subr.bf16.mxu0 %v2318
        %3177 = vmatpush1.bf16.msra.mxu0 %v2317
        %3178 = vmatprep.subr.bf16.mxu0 %v2334
        %3179 = vmatpush1.bf16.msra.mxu0 %v2333
        %3180 = vmatprep.subr.bf16.mxu0 %v2350
        %3181 = vmatpush1.bf16.msra.mxu0 %v2349
        %3182 = vmatprep.subr.bf16.mxu0 %v2366
        %3183 = vmatpush1.bf16.msra.mxu0 %v2365
        %3184 = vmatprep.mubr.bf16.mxu0 %v836
        %3185 = vmatmul.mubr.bf16.gmra.mrb[0].mxu0 %v835
        %v3186 = vpop.f32.mrb[0].mxu0
        %v3187 = vadd.f32 %v3146, %v3186
        %v3188 = vpop.f32.mrb[0].mxu0
        %v3189 = vadd.f32 %v3148, %v3188
        %v3190 = vpop.f32.mrb[0].mxu0
        %v3191 = vpop.f32.mrb[0].mxu0
        %3192 = vdwg.mxu0
        %3193 = vmatprep.subr.bf16.mxu0 %v1360
        %3194 = vmatpush1.bf16.msra.mxu0 %v1359
        %3195 = vmatprep.subr.bf16.mxu0 %v1376
        %3196 = vmatpush1.bf16.msra.mxu0 %v1375
        %3197 = vmatprep.subr.bf16.mxu0 %v1392
        %3198 = vmatpush1.bf16.msra.mxu0 %v1391
        %3199 = vmatprep.subr.bf16.mxu0 %v1408
        %3200 = vmatpush1.bf16.msra.mxu0 %v1407
        %3201 = vmatprep.subr.bf16.mxu0 %v1424
        %3202 = vmatpush1.bf16.msra.mxu0 %v1423
        %3203 = vmatprep.subr.bf16.mxu0 %v1440
        %3204 = vmatpush1.bf16.msra.mxu0 %v1439
        %3205 = vmatprep.subr.bf16.mxu0 %v1456
        %3206 = vmatpush1.bf16.msra.mxu0 %v1455
        %3207 = vmatprep.subr.bf16.mxu0 %v1472
        %3208 = vmatpush1.bf16.msra.mxu0 %v1471
        %3209 = vmatprep.subr.bf16.mxu0 %v1488
        %3210 = vmatpush1.bf16.msra.mxu0 %v1487
        %3211 = vmatprep.subr.bf16.mxu0 %v1504
        %3212 = vmatpush1.bf16.msra.mxu0 %v1503
        %3213 = vmatprep.subr.bf16.mxu0 %v1520
        %3214 = vmatpush1.bf16.msra.mxu0 %v1519
        %3215 = vmatprep.subr.bf16.mxu0 %v1536
        %3216 = vmatpush1.bf16.msra.mxu0 %v1535
        %3217 = vmatprep.subr.bf16.mxu0 %v1552
        %3218 = vmatpush1.bf16.msra.mxu0 %v1551
        %3219 = vmatprep.subr.bf16.mxu0 %v1568
        %3220 = vmatpush1.bf16.msra.mxu0 %v1567
        %3221 = vmatprep.subr.bf16.mxu0 %v1584
        %3222 = vmatpush1.bf16.msra.mxu0 %v1583
        %3223 = vmatprep.subr.bf16.mxu0 %v1600
        %3224 = vmatpush1.bf16.msra.mxu0 %v1599
        %3225 = vmatprep.mubr.bf16.mxu0 %v830
        %3226 = vmatmul.mubr.bf16.gmra.mrb[0].mxu0 %v829
        %v3227 = vpop.f32.mrb[0].mxu0
        %v3228 = vadd.f32 0.0, %v3227
        %v3229 = vpop.f32.mrb[0].mxu0
        %v3230 = vadd.f32 0.0, %v3229
        %v3231 = vpop.f32.mrb[0].mxu0
        %v3232 = vpop.f32.mrb[0].mxu0
        %3233 = vdwg.mxu0
        %3234 = vmatprep.subr.bf16.mxu0 %v1616
        %3235 = vmatpush1.bf16.msra.mxu0 %v1615
        %3236 = vmatprep.subr.bf16.mxu0 %v1632
        %3237 = vmatpush1.bf16.msra.mxu0 %v1631
        %3238 = vmatprep.subr.bf16.mxu0 %v1648
        %3239 = vmatpush1.bf16.msra.mxu0 %v1647
        %3240 = vmatprep.subr.bf16.mxu0 %v1664
        %3241 = vmatpush1.bf16.msra.mxu0 %v1663
        %3242 = vmatprep.subr.bf16.mxu0 %v1680
        %3243 = vmatpush1.bf16.msra.mxu0 %v1679
        %3244 = vmatprep.subr.bf16.mxu0 %v1696
        %3245 = vmatpush1.bf16.msra.mxu0 %v1695
        %3246 = vmatprep.subr.bf16.mxu0 %v1712
        %3247 = vmatpush1.bf16.msra.mxu0 %v1711
        %3248 = vmatprep.subr.bf16.mxu0 %v1728
        %3249 = vmatpush1.bf16.msra.mxu0 %v1727
        %3250 = vmatprep.subr.bf16.mxu0 %v1744
        %3251 = vmatpush1.bf16.msra.mxu0 %v1743
        %3252 = vmatprep.subr.bf16.mxu0 %v1760
        %3253 = vmatpush1.bf16.msra.mxu0 %v1759
        %3254 = vmatprep.subr.bf16.mxu0 %v1776
        %3255 = vmatpush1.bf16.msra.mxu0 %v1775
        %3256 = vmatprep.subr.bf16.mxu0 %v1792
        %3257 = vmatpush1.bf16.msra.mxu0 %v1791
        %3258 = vmatprep.subr.bf16.mxu0 %v1808
        %3259 = vmatpush1.bf16.msra.mxu0 %v1807
        %3260 = vmatprep.subr.bf16.mxu0 %v1824
        %3261 = vmatpush1.bf16.msra.mxu0 %v1823
        %3262 = vmatprep.subr.bf16.mxu0 %v1840
        %3263 = vmatpush1.bf16.msra.mxu0 %v1839
        %3264 = vmatprep.subr.bf16.mxu0 %v1856
        %3265 = vmatpush1.bf16.msra.mxu0 %v1855
        %3266 = vmatprep.mubr.bf16.mxu0 %v832
        %3267 = vmatmul.mubr.bf16.gmra.mrb[0].mxu0 %v831
        %v3268 = vpop.f32.mrb[0].mxu0
        %v3269 = vadd.f32 %v3228, %v3268
        %v3270 = vpop.f32.mrb[0].mxu0
        %v3271 = vadd.f32 %v3230, %v3270
        %v3272 = vpop.f32.mrb[0].mxu0
        %v3273 = vpop.f32.mrb[0].mxu0
        %3274 = vdwg.mxu0
        %3275 = vmatprep.subr.bf16.mxu0 %v1872
        %3276 = vmatpush1.bf16.msra.mxu0 %v1871
        %3277 = vmatprep.subr.bf16.mxu0 %v1888
        %3278 = vmatpush1.bf16.msra.mxu0 %v1887
        %3279 = vmatprep.subr.bf16.mxu0 %v1904
        %3280 = vmatpush1.bf16.msra.mxu0 %v1903
        %3281 = vmatprep.subr.bf16.mxu0 %v1920
        %3282 = vmatpush1.bf16.msra.mxu0 %v1919
        %3283 = vmatprep.subr.bf16.mxu0 %v1936
        %3284 = vmatpush1.bf16.msra.mxu0 %v1935
        %3285 = vmatprep.subr.bf16.mxu0 %v1952
        %3286 = vmatpush1.bf16.msra.mxu0 %v1951
        %3287 = vmatprep.subr.bf16.mxu0 %v1968
        %3288 = vmatpush1.bf16.msra.mxu0 %v1967
        %3289 = vmatprep.subr.bf16.mxu0 %v1984
        %3290 = vmatpush1.bf16.msra.mxu0 %v1983
        %3291 = vmatprep.subr.bf16.mxu0 %v2000
        %3292 = vmatpush1.bf16.msra.mxu0 %v1999
        %3293 = vmatprep.subr.bf16.mxu0 %v2016
        %3294 = vmatpush1.bf16.msra.mxu0 %v2015
        %3295 = vmatprep.subr.bf16.mxu0 %v2032
        %3296 = vmatpush1.bf16.msra.mxu0 %v2031
        %3297 = vmatprep.subr.bf16.mxu0 %v2048
        %3298 = vmatpush1.bf16.msra.mxu0 %v2047
        %3299 = vmatprep.subr.bf16.mxu0 %v2064
        %3300 = vmatpush1.bf16.msra.mxu0 %v2063
        %3301 = vmatprep.subr.bf16.mxu0 %v2080
        %3302 = vmatpush1.bf16.msra.mxu0 %v2079
        %3303 = vmatprep.subr.bf16.mxu0 %v2096
        %3304 = vmatpush1.bf16.msra.mxu0 %v2095
        %3305 = vmatprep.subr.bf16.mxu0 %v2112
        %3306 = vmatpush1.bf16.msra.mxu0 %v2111
        %3307 = vmatprep.mubr.bf16.mxu0 %v834
        %3308 = vmatmul.mubr.bf16.gmra.mrb[0].mxu0 %v833
        %v3309 = vpop.f32.mrb[0].mxu0
        %v3310 = vadd.f32 %v3269, %v3309
        %v3311 = vpop.f32.mrb[0].mxu0
        %v3312 = vadd.f32 %v3271, %v3311
        %v3313 = vpop.f32.mrb[0].mxu0
        %v3314 = vpop.f32.mrb[0].mxu0
        %3315 = vdwg.mxu0
        %3316 = vmatprep.subr.bf16.mxu0 %v2128
        %3317 = vmatpush1.bf16.msra.mxu0 %v2127
        %3318 = vmatprep.subr.bf16.mxu0 %v2144
        %3319 = vmatpush1.bf16.msra.mxu0 %v2143
        %3320 = vmatprep.subr.bf16.mxu0 %v2160
        %3321 = vmatpush1.bf16.msra.mxu0 %v2159
        %3322 = vmatprep.subr.bf16.mxu0 %v2176
        %3323 = vmatpush1.bf16.msra.mxu0 %v2175
        %3324 = vmatprep.subr.bf16.mxu0 %v2192
        %3325 = vmatpush1.bf16.msra.mxu0 %v2191
        %3326 = vmatprep.subr.bf16.mxu0 %v2208
        %3327 = vmatpush1.bf16.msra.mxu0 %v2207
        %3328 = vmatprep.subr.bf16.mxu0 %v2224
        %3329 = vmatpush1.bf16.msra.mxu0 %v2223
        %3330 = vmatprep.subr.bf16.mxu0 %v2240
        %3331 = vmatpush1.bf16.msra.mxu0 %v2239
        %3332 = vmatprep.subr.bf16.mxu0 %v2256
        %3333 = vmatpush1.bf16.msra.mxu0 %v2255
        %3334 = vmatprep.subr.bf16.mxu0 %v2272
        %3335 = vmatpush1.bf16.msra.mxu0 %v2271
        %3336 = vmatprep.subr.bf16.mxu0 %v2288
        %3337 = vmatpush1.bf16.msra.mxu0 %v2287
        %3338 = vmatprep.subr.bf16.mxu0 %v2304
        %3339 = vmatpush1.bf16.msra.mxu0 %v2303
        %3340 = vmatprep.subr.bf16.mxu0 %v2320
        %3341 = vmatpush1.bf16.msra.mxu0 %v2319
        %3342 = vmatprep.subr.bf16.mxu0 %v2336
        %3343 = vmatpush1.bf16.msra.mxu0 %v2335
        %3344 = vmatprep.subr.bf16.mxu0 %v2352
        %3345 = vmatpush1.bf16.msra.mxu0 %v2351
        %3346 = vmatprep.subr.bf16.mxu0 %v2368
        %3347 = vmatpush1.bf16.msra.mxu0 %v2367
        %3348 = vmatprep.mubr.bf16.mxu0 %v836
        %3349 = vmatmul.mubr.bf16.gmra.mrb[0].mxu0 %v835
        %v3350 = vpop.f32.mrb[0].mxu0
        %v3351 = vadd.f32 %v3310, %v3350
        %v3352 = vpop.f32.mrb[0].mxu0
        %v3353 = vadd.f32 %v3312, %v3352
        %v3354 = vpop.f32.mrb[0].mxu0
        %v3355 = vpop.f32.mrb[0].mxu0
        %3356 = vdwg.mxu0
        %3357 = vmatprep.subr.bf16.mxu0 %v1362
        %3358 = vmatpush1.bf16.msra.mxu0 %v1361
        %3359 = vmatprep.subr.bf16.mxu0 %v1378
        %3360 = vmatpush1.bf16.msra.mxu0 %v1377
        %3361 = vmatprep.subr.bf16.mxu0 %v1394
        %3362 = vmatpush1.bf16.msra.mxu0 %v1393
        %3363 = vmatprep.subr.bf16.mxu0 %v1410
        %3364 = vmatpush1.bf16.msra.mxu0 %v1409
        %3365 = vmatprep.subr.bf16.mxu0 %v1426
        %3366 = vmatpush1.bf16.msra.mxu0 %v1425
        %3367 = vmatprep.subr.bf16.mxu0 %v1442
        %3368 = vmatpush1.bf16.msra.mxu0 %v1441
        %3369 = vmatprep.subr.bf16.mxu0 %v1458
        %3370 = vmatpush1.bf16.msra.mxu0 %v1457
        %3371 = vmatprep.subr.bf16.mxu0 %v1474
        %3372 = vmatpush1.bf16.msra.mxu0 %v1473
        %3373 = vmatprep.subr.bf16.mxu0 %v1490
        %3374 = vmatpush1.bf16.msra.mxu0 %v1489
        %3375 = vmatprep.subr.bf16.mxu0 %v1506
        %3376 = vmatpush1.bf16.msra.mxu0 %v1505
        %3377 = vmatprep.subr.bf16.mxu0 %v1522
        %3378 = vmatpush1.bf16.msra.mxu0 %v1521
        %3379 = vmatprep.subr.bf16.mxu0 %v1538
        %3380 = vmatpush1.bf16.msra.mxu0 %v1537
        %3381 = vmatprep.subr.bf16.mxu0 %v1554
        %3382 = vmatpush1.bf16.msra.mxu0 %v1553
        %3383 = vmatprep.subr.bf16.mxu0 %v1570
        %3384 = vmatpush1.bf16.msra.mxu0 %v1569
        %3385 = vmatprep.subr.bf16.mxu0 %v1586
        %3386 = vmatpush1.bf16.msra.mxu0 %v1585
        %3387 = vmatprep.subr.bf16.mxu0 %v1602
        %3388 = vmatpush1.bf16.msra.mxu0 %v1601
        %3389 = vmatprep.mubr.bf16.mxu0 %v830
        %3390 = vmatmul.mubr.bf16.gmra.mrb[0].mxu0 %v829
        %v3391 = vpop.f32.mrb[0].mxu0
        %v3392 = vadd.f32 0.0, %v3391
        %v3393 = vpop.f32.mrb[0].mxu0
        %v3394 = vadd.f32 0.0, %v3393
        %v3395 = vpop.f32.mrb[0].mxu0
        %v3396 = vpop.f32.mrb[0].mxu0
        %3397 = vdwg.mxu0
        %3398 = vmatprep.subr.bf16.mxu0 %v1618
        %3399 = vmatpush1.bf16.msra.mxu0 %v1617
        %3400 = vmatprep.subr.bf16.mxu0 %v1634
        %3401 = vmatpush1.bf16.msra.mxu0 %v1633
        %3402 = vmatprep.subr.bf16.mxu0 %v1650
        %3403 = vmatpush1.bf16.msra.mxu0 %v1649
        %3404 = vmatprep.subr.bf16.mxu0 %v1666
        %3405 = vmatpush1.bf16.msra.mxu0 %v1665
        %3406 = vmatprep.subr.bf16.mxu0 %v1682
        %3407 = vmatpush1.bf16.msra.mxu0 %v1681
        %3408 = vmatprep.subr.bf16.mxu0 %v1698
        %3409 = vmatpush1.bf16.msra.mxu0 %v1697
        %3410 = vmatprep.subr.bf16.mxu0 %v1714
        %3411 = vmatpush1.bf16.msra.mxu0 %v1713
        %3412 = vmatprep.subr.bf16.mxu0 %v1730
        %3413 = vmatpush1.bf16.msra.mxu0 %v1729
        %3414 = vmatprep.subr.bf16.mxu0 %v1746
        %3415 = vmatpush1.bf16.msra.mxu0 %v1745
        %3416 = vmatprep.subr.bf16.mxu0 %v1762
        %3417 = vmatpush1.bf16.msra.mxu0 %v1761
        %3418 = vmatprep.subr.bf16.mxu0 %v1778
        %3419 = vmatpush1.bf16.msra.mxu0 %v1777
        %3420 = vmatprep.subr.bf16.mxu0 %v1794
        %3421 = vmatpush1.bf16.msra.mxu0 %v1793
        %3422 = vmatprep.subr.bf16.mxu0 %v1810
        %3423 = vmatpush1.bf16.msra.mxu0 %v1809
        %3424 = vmatprep.subr.bf16.mxu0 %v1826
        %3425 = vmatpush1.bf16.msra.mxu0 %v1825
        %3426 = vmatprep.subr.bf16.mxu0 %v1842
        %3427 = vmatpush1.bf16.msra.mxu0 %v1841
        %3428 = vmatprep.subr.bf16.mxu0 %v1858
        %3429 = vmatpush1.bf16.msra.mxu0 %v1857
        %3430 = vmatprep.mubr.bf16.mxu0 %v832
        %3431 = vmatmul.mubr.bf16.gmra.mrb[0].mxu0 %v831
        %v3432 = vpop.f32.mrb[0].mxu0
        %v3433 = vadd.f32 %v3392, %v3432
        %v3434 = vpop.f32.mrb[0].mxu0
        %v3435 = vadd.f32 %v3394, %v3434
        %v3436 = vpop.f32.mrb[0].mxu0
        %v3437 = vpop.f32.mrb[0].mxu0
        %3438 = vdwg.mxu0
        %3439 = vmatprep.subr.bf16.mxu0 %v1874
        %3440 = vmatpush1.bf16.msra.mxu0 %v1873
        %3441 = vmatprep.subr.bf16.mxu0 %v1890
        %3442 = vmatpush1.bf16.msra.mxu0 %v1889
        %3443 = vmatprep.subr.bf16.mxu0 %v1906
        %3444 = vmatpush1.bf16.msra.mxu0 %v1905
        %3445 = vmatprep.subr.bf16.mxu0 %v1922
        %3446 = vmatpush1.bf16.msra.mxu0 %v1921
        %3447 = vmatprep.subr.bf16.mxu0 %v1938
        %3448 = vmatpush1.bf16.msra.mxu0 %v1937
        %3449 = vmatprep.subr.bf16.mxu0 %v1954
        %3450 = vmatpush1.bf16.msra.mxu0 %v1953
        %3451 = vmatprep.subr.bf16.mxu0 %v1970
        %3452 = vmatpush1.bf16.msra.mxu0 %v1969
        %3453 = vmatprep.subr.bf16.mxu0 %v1986
        %3454 = vmatpush1.bf16.msra.mxu0 %v1985
        %3455 = vmatprep.subr.bf16.mxu0 %v2002
        %3456 = vmatpush1.bf16.msra.mxu0 %v2001
        %3457 = vmatprep.subr.bf16.mxu0 %v2018
        %3458 = vmatpush1.bf16.msra.mxu0 %v2017
        %3459 = vmatprep.subr.bf16.mxu0 %v2034
        %3460 = vmatpush1.bf16.msra.mxu0 %v2033
        %3461 = vmatprep.subr.bf16.mxu0 %v2050
        %3462 = vmatpush1.bf16.msra.mxu0 %v2049
        %3463 = vmatprep.subr.bf16.mxu0 %v2066
        %3464 = vmatpush1.bf16.msra.mxu0 %v2065
        %3465 = vmatprep.subr.bf16.mxu0 %v2082
        %3466 = vmatpush1.bf16.msra.mxu0 %v2081
        %3467 = vmatprep.subr.bf16.mxu0 %v2098
        %3468 = vmatpush1.bf16.msra.mxu0 %v2097
        %3469 = vmatprep.subr.bf16.mxu0 %v2114
        %3470 = vmatpush1.bf16.msra.mxu0 %v2113
        %3471 = vmatprep.mubr.bf16.mxu0 %v834
        %3472 = vmatmul.mubr.bf16.gmra.mrb[0].mxu0 %v833
        %v3473 = vpop.f32.mrb[0].mxu0
        %v3474 = vadd.f32 %v3433, %v3473
        %v3475 = vpop.f32.mrb[0].mxu0
        %v3476 = vadd.f32 %v3435, %v3475
        %v3477 = vpop.f32.mrb[0].mxu0
        %v3478 = vpop.f32.mrb[0].mxu0
        %3479 = vdwg.mxu0
        %3480 = vmatprep.subr.bf16.mxu0 %v2130
        %3481 = vmatpush1.bf16.msra.mxu0 %v2129
        %3482 = vmatprep.subr.bf16.mxu0 %v2146
        %3483 = vmatpush1.bf16.msra.mxu0 %v2145
        %3484 = vmatprep.subr.bf16.mxu0 %v2162
        %3485 = vmatpush1.bf16.msra.mxu0 %v2161
        %3486 = vmatprep.subr.bf16.mxu0 %v2178
        %3487 = vmatpush1.bf16.msra.mxu0 %v2177
        %3488 = vmatprep.subr.bf16.mxu0 %v2194
        %3489 = vmatpush1.bf16.msra.mxu0 %v2193
        %3490 = vmatprep.subr.bf16.mxu0 %v2210
        %3491 = vmatpush1.bf16.msra.mxu0 %v2209
        %3492 = vmatprep.subr.bf16.mxu0 %v2226
        %3493 = vmatpush1.bf16.msra.mxu0 %v2225
        %3494 = vmatprep.subr.bf16.mxu0 %v2242
        %3495 = vmatpush1.bf16.msra.mxu0 %v2241
        %3496 = vmatprep.subr.bf16.mxu0 %v2258
        %3497 = vmatpush1.bf16.msra.mxu0 %v2257
        %3498 = vmatprep.subr.bf16.mxu0 %v2274
        %3499 = vmatpush1.bf16.msra.mxu0 %v2273
        %3500 = vmatprep.subr.bf16.mxu0 %v2290
        %3501 = vmatpush1.bf16.msra.mxu0 %v2289
        %3502 = vmatprep.subr.bf16.mxu0 %v2306
        %3503 = vmatpush1.bf16.msra.mxu0 %v2305
        %3504 = vmatprep.subr.bf16.mxu0 %v2322
        %3505 = vmatpush1.bf16.msra.mxu0 %v2321
        %3506 = vmatprep.subr.bf16.mxu0 %v2338
        %3507 = vmatpush1.bf16.msra.mxu0 %v2337
        %3508 = vmatprep.subr.bf16.mxu0 %v2354
        %3509 = vmatpush1.bf16.msra.mxu0 %v2353
        %3510 = vmatprep.subr.bf16.mxu0 %v2370
        %3511 = vmatpush1.bf16.msra.mxu0 %v2369
        %3512 = vmatprep.mubr.bf16.mxu0 %v836
        %3513 = vmatmul.mubr.bf16.gmra.mrb[0].mxu0 %v835
        %v3514 = vpop.f32.mrb[0].mxu0
        %v3515 = vadd.f32 %v3474, %v3514
        %v3516 = vpop.f32.mrb[0].mxu0
        %v3517 = vadd.f32 %v3476, %v3516
        %v3518 = vpop.f32.mrb[0].mxu0
        %v3519 = vpop.f32.mrb[0].mxu0
        %3520 = vdwg.mxu0
        %3521 = vmatprep.subr.bf16.mxu0 %v1364
        %3522 = vmatpush1.bf16.msra.mxu0 %v1363
        %3523 = vmatprep.subr.bf16.mxu0 %v1380
        %3524 = vmatpush1.bf16.msra.mxu0 %v1379
        %3525 = vmatprep.subr.bf16.mxu0 %v1396
        %3526 = vmatpush1.bf16.msra.mxu0 %v1395
        %3527 = vmatprep.subr.bf16.mxu0 %v1412
        %3528 = vmatpush1.bf16.msra.mxu0 %v1411
        %3529 = vmatprep.subr.bf16.mxu0 %v1428
        %3530 = vmatpush1.bf16.msra.mxu0 %v1427
        %3531 = vmatprep.subr.bf16.mxu0 %v1444
        %3532 = vmatpush1.bf16.msra.mxu0 %v1443
        %3533 = vmatprep.subr.bf16.mxu0 %v1460
        %3534 = vmatpush1.bf16.msra.mxu0 %v1459
        %3535 = vmatprep.subr.bf16.mxu0 %v1476
        %3536 = vmatpush1.bf16.msra.mxu0 %v1475
        %3537 = vmatprep.subr.bf16.mxu0 %v1492
        %3538 = vmatpush1.bf16.msra.mxu0 %v1491
        %3539 = vmatprep.subr.bf16.mxu0 %v1508
        %3540 = vmatpush1.bf16.msra.mxu0 %v1507
        %3541 = vmatprep.subr.bf16.mxu0 %v1524
        %3542 = vmatpush1.bf16.msra.mxu0 %v1523
        %3543 = vmatprep.subr.bf16.mxu0 %v1540
        %3544 = vmatpush1.bf16.msra.mxu0 %v1539
        %3545 = vmatprep.subr.bf16.mxu0 %v1556
        %3546 = vmatpush1.bf16.msra.mxu0 %v1555
        %3547 = vmatprep.subr.bf16.mxu0 %v1572
        %3548 = vmatpush1.bf16.msra.mxu0 %v1571
        %3549 = vmatprep.subr.bf16.mxu0 %v1588
        %3550 = vmatpush1.bf16.msra.mxu0 %v1587
        %3551 = vmatprep.subr.bf16.mxu0 %v1604
        %3552 = vmatpush1.bf16.msra.mxu0 %v1603
        %3553 = vmatprep.mubr.bf16.mxu0 %v830
        %3554 = vmatmul.mubr.bf16.gmra.mrb[0].mxu0 %v829
        %v3555 = vpop.f32.mrb[0].mxu0
        %v3556 = vadd.f32 0.0, %v3555
        %v3557 = vpop.f32.mrb[0].mxu0
        %v3558 = vadd.f32 0.0, %v3557
        %v3559 = vpop.f32.mrb[0].mxu0
        %v3560 = vpop.f32.mrb[0].mxu0
        %3561 = vdwg.mxu0
        %3562 = vmatprep.subr.bf16.mxu0 %v1620
        %3563 = vmatpush1.bf16.msra.mxu0 %v1619
        %3564 = vmatprep.subr.bf16.mxu0 %v1636
        %3565 = vmatpush1.bf16.msra.mxu0 %v1635
        %3566 = vmatprep.subr.bf16.mxu0 %v1652
        %3567 = vmatpush1.bf16.msra.mxu0 %v1651
        %3568 = vmatprep.subr.bf16.mxu0 %v1668
        %3569 = vmatpush1.bf16.msra.mxu0 %v1667
        %3570 = vmatprep.subr.bf16.mxu0 %v1684
        %3571 = vmatpush1.bf16.msra.mxu0 %v1683
        %3572 = vmatprep.subr.bf16.mxu0 %v1700
        %3573 = vmatpush1.bf16.msra.mxu0 %v1699
        %3574 = vmatprep.subr.bf16.mxu0 %v1716
        %3575 = vmatpush1.bf16.msra.mxu0 %v1715
        %3576 = vmatprep.subr.bf16.mxu0 %v1732
        %3577 = vmatpush1.bf16.msra.mxu0 %v1731
        %3578 = vmatprep.subr.bf16.mxu0 %v1748
        %3579 = vmatpush1.bf16.msra.mxu0 %v1747
        %3580 = vmatprep.subr.bf16.mxu0 %v1764
        %3581 = vmatpush1.bf16.msra.mxu0 %v1763
        %3582 = vmatprep.subr.bf16.mxu0 %v1780
        %3583 = vmatpush1.bf16.msra.mxu0 %v1779
        %3584 = vmatprep.subr.bf16.mxu0 %v1796
        %3585 = vmatpush1.bf16.msra.mxu0 %v1795
        %3586 = vmatprep.subr.bf16.mxu0 %v1812
        %3587 = vmatpush1.bf16.msra.mxu0 %v1811
        %3588 = vmatprep.subr.bf16.mxu0 %v1828
        %3589 = vmatpush1.bf16.msra.mxu0 %v1827
        %3590 = vmatprep.subr.bf16.mxu0 %v1844
        %3591 = vmatpush1.bf16.msra.mxu0 %v1843
        %3592 = vmatprep.subr.bf16.mxu0 %v1860
        %3593 = vmatpush1.bf16.msra.mxu0 %v1859
        %3594 = vmatprep.mubr.bf16.mxu0 %v832
        %3595 = vmatmul.mubr.bf16.gmra.mrb[0].mxu0 %v831
        %v3596 = vpop.f32.mrb[0].mxu0
        %v3597 = vadd.f32 %v3556, %v3596
        %v3598 = vpop.f32.mrb[0].mxu0
        %v3599 = vadd.f32 %v3558, %v3598
        %v3600 = vpop.f32.mrb[0].mxu0
        %v3601 = vpop.f32.mrb[0].mxu0
        %3602 = vdwg.mxu0
        %3603 = vmatprep.subr.bf16.mxu0 %v1876
        %3604 = vmatpush1.bf16.msra.mxu0 %v1875
        %3605 = vmatprep.subr.bf16.mxu0 %v1892
        %3606 = vmatpush1.bf16.msra.mxu0 %v1891
        %3607 = vmatprep.subr.bf16.mxu0 %v1908
        %3608 = vmatpush1.bf16.msra.mxu0 %v1907
        %3609 = vmatprep.subr.bf16.mxu0 %v1924
        %3610 = vmatpush1.bf16.msra.mxu0 %v1923
        %3611 = vmatprep.subr.bf16.mxu0 %v1940
        %3612 = vmatpush1.bf16.msra.mxu0 %v1939
        %3613 = vmatprep.subr.bf16.mxu0 %v1956
        %3614 = vmatpush1.bf16.msra.mxu0 %v1955
        %3615 = vmatprep.subr.bf16.mxu0 %v1972
        %3616 = vmatpush1.bf16.msra.mxu0 %v1971
        %3617 = vmatprep.subr.bf16.mxu0 %v1988
        %3618 = vmatpush1.bf16.msra.mxu0 %v1987
        %3619 = vmatprep.subr.bf16.mxu0 %v2004
        %3620 = vmatpush1.bf16.msra.mxu0 %v2003
        %3621 = vmatprep.subr.bf16.mxu0 %v2020
        %3622 = vmatpush1.bf16.msra.mxu0 %v2019
        %3623 = vmatprep.subr.bf16.mxu0 %v2036
        %3624 = vmatpush1.bf16.msra.mxu0 %v2035
        %3625 = vmatprep.subr.bf16.mxu0 %v2052
        %3626 = vmatpush1.bf16.msra.mxu0 %v2051
        %3627 = vmatprep.subr.bf16.mxu0 %v2068
        %3628 = vmatpush1.bf16.msra.mxu0 %v2067
        %3629 = vmatprep.subr.bf16.mxu0 %v2084
        %3630 = vmatpush1.bf16.msra.mxu0 %v2083
        %3631 = vmatprep.subr.bf16.mxu0 %v2100
        %3632 = vmatpush1.bf16.msra.mxu0 %v2099
        %3633 = vmatprep.subr.bf16.mxu0 %v2116
        %3634 = vmatpush1.bf16.msra.mxu0 %v2115
        %3635 = vmatprep.mubr.bf16.mxu0 %v834
        %3636 = vmatmul.mubr.bf16.gmra.mrb[0].mxu0 %v833
        %v3637 = vpop.f32.mrb[0].mxu0
        %v3638 = vadd.f32 %v3597, %v3637
        %v3639 = vpop.f32.mrb[0].mxu0
        %v3640 = vadd.f32 %v3599, %v3639
        %v3641 = vpop.f32.mrb[0].mxu0
        %v3642 = vpop.f32.mrb[0].mxu0
        %3643 = vdwg.mxu0
        %3644 = vmatprep.subr.bf16.mxu0 %v2132
        %3645 = vmatpush1.bf16.msra.mxu0 %v2131
        %3646 = vmatprep.subr.bf16.mxu0 %v2148
        %3647 = vmatpush1.bf16.msra.mxu0 %v2147
        %3648 = vmatprep.subr.bf16.mxu0 %v2164
        %3649 = vmatpush1.bf16.msra.mxu0 %v2163
        %3650 = vmatprep.subr.bf16.mxu0 %v2180
        %3651 = vmatpush1.bf16.msra.mxu0 %v2179
        %3652 = vmatprep.subr.bf16.mxu0 %v2196
        %3653 = vmatpush1.bf16.msra.mxu0 %v2195
        %3654 = vmatprep.subr.bf16.mxu0 %v2212
        %3655 = vmatpush1.bf16.msra.mxu0 %v2211
        %3656 = vmatprep.subr.bf16.mxu0 %v2228
        %3657 = vmatpush1.bf16.msra.mxu0 %v2227
        %3658 = vmatprep.subr.bf16.mxu0 %v2244
        %3659 = vmatpush1.bf16.msra.mxu0 %v2243
        %3660 = vmatprep.subr.bf16.mxu0 %v2260
        %3661 = vmatpush1.bf16.msra.mxu0 %v2259
        %3662 = vmatprep.subr.bf16.mxu0 %v2276
        %3663 = vmatpush1.bf16.msra.mxu0 %v2275
        %3664 = vmatprep.subr.bf16.mxu0 %v2292
        %3665 = vmatpush1.bf16.msra.mxu0 %v2291
        %3666 = vmatprep.subr.bf16.mxu0 %v2308
        %3667 = vmatpush1.bf16.msra.mxu0 %v2307
        %3668 = vmatprep.subr.bf16.mxu0 %v2324
        %3669 = vmatpush1.bf16.msra.mxu0 %v2323
        %3670 = vmatprep.subr.bf16.mxu0 %v2340
        %3671 = vmatpush1.bf16.msra.mxu0 %v2339
        %3672 = vmatprep.subr.bf16.mxu0 %v2356
        %3673 = vmatpush1.bf16.msra.mxu0 %v2355
        %3674 = vmatprep.subr.bf16.mxu0 %v2372
        %3675 = vmatpush1.bf16.msra.mxu0 %v2371
        %3676 = vmatprep.mubr.bf16.mxu0 %v836
        %3677 = vmatmul.mubr.bf16.gmra.mrb[0].mxu0 %v835
        %v3678 = vpop.f32.mrb[0].mxu0
        %v3679 = vadd.f32 %v3638, %v3678
        %v3680 = vpop.f32.mrb[0].mxu0
        %v3681 = vadd.f32 %v3640, %v3680
        %v3682 = vpop.f32.mrb[0].mxu0
        %v3683 = vpop.f32.mrb[0].mxu0
        %3684 = vdwg.mxu0
        %v3685 = vld [vmem:[#allocation12] sm:$0xff]
        %v3686 = vld [vmem:[#allocation12 + $0x8] sm:$0xff]
        %v3689 = vlaneseq
        %v3690 = vshrl.u32 %v3689, 7
        %v3691 = vsub.s32 0, %v3690
        %v3692 = vrot.slane %v3685, %v3691
        %v3693 = vlaneseq
        %v3694 = vshrl.u32 %v3693, 7
        %v3695 = vsub.s32 1, %v3694
        %v3696 = vrot.slane %v3685, %v3695
        %v3697 = vlaneseq
        %v3698 = vshrl.u32 %v3697, 7
        %v3699 = vsub.s32 2, %v3698
        %v3700 = vrot.slane %v3685, %v3699
        %v3701 = vlaneseq
        %v3702 = vshrl.u32 %v3701, 7
        %v3703 = vsub.s32 3, %v3702
        %v3704 = vrot.slane %v3685, %v3703
        %v3705 = vlaneseq
        %v3706 = vshrl.u32 %v3705, 7
        %v3707 = vsub.s32 4, %v3706
        %v3708 = vrot.slane %v3685, %v3707
        %v3709 = vlaneseq
        %v3710 = vshrl.u32 %v3709, 7
        %v3711 = vsub.s32 5, %v3710
        %v3712 = vrot.slane %v3685, %v3711
        %v3713 = vlaneseq
        %v3714 = vshrl.u32 %v3713, 7
        %v3715 = vsub.s32 6, %v3714
        %v3716 = vrot.slane %v3685, %v3715
        %v3717 = vlaneseq
        %v3718 = vshrl.u32 %v3717, 7
        %v3719 = vsub.s32 7, %v3718
        %v3720 = vrot.slane %v3685, %v3719
        %v3721 = vlaneseq
        %v3722 = vshrl.u32 %v3721, 7
        %v3723 = vsub.s32 0, %v3722
        %v3724 = vrot.slane %v3686, %v3723
        %v3725 = vlaneseq
        %v3726 = vshrl.u32 %v3725, 7
        %v3727 = vsub.s32 1, %v3726
        %v3728 = vrot.slane %v3686, %v3727
        %v3729 = vlaneseq
        %v3730 = vshrl.u32 %v3729, 7
        %v3731 = vsub.s32 2, %v3730
        %v3732 = vrot.slane %v3686, %v3731
        %v3733 = vlaneseq
        %v3734 = vshrl.u32 %v3733, 7
        %v3735 = vsub.s32 3, %v3734
        %v3736 = vrot.slane %v3686, %v3735
        %v3737 = vlaneseq
        %v3738 = vshrl.u32 %v3737, 7
        %v3739 = vsub.s32 4, %v3738
        %v3740 = vrot.slane %v3686, %v3739
        %v3741 = vlaneseq
        %v3742 = vshrl.u32 %v3741, 7
        %v3743 = vsub.s32 5, %v3742
        %v3744 = vrot.slane %v3686, %v3743
        %v3745 = vlaneseq
        %v3746 = vshrl.u32 %v3745, 7
        %v3747 = vsub.s32 6, %v3746
        %v3748 = vrot.slane %v3686, %v3747
        %v3749 = vlaneseq
        %v3750 = vshrl.u32 %v3749, 7
        %v3751 = vsub.s32 7, %v3750
        %v3752 = vrot.slane %v3686, %v3751
        %v3769 = vmul.f32 %v2531, %v3692
        %v3770 = vmul.f32 %v2533, %v3696
        %v3771 = vmul.f32 %v2695, %v3700
        %v3772 = vmul.f32 %v2697, %v3704
        %v3773 = vmul.f32 %v2859, %v3708
        %v3774 = vmul.f32 %v2861, %v3712
        %v3775 = vmul.f32 %v3023, %v3716
        %v3776 = vmul.f32 %v3025, %v3720
        %v3777 = vmul.f32 %v3187, %v3724
        %v3778 = vmul.f32 %v3189, %v3728
        %v3779 = vmul.f32 %v3351, %v3732
        %v3780 = vmul.f32 %v3353, %v3736
        %v3781 = vmul.f32 %v3515, %v3740
        %v3782 = vmul.f32 %v3517, %v3744
        %v3783 = vmul.f32 %v3679, %v3748
        %v3784 = vmul.f32 %v3681, %v3752
        %p3785 = scmp.eq.s32.totalorder %s34, 0
        // Predicated region
        $region85: #{tpu_custom_call.1} parent=51 // pred_check
          %p3786 = pneg %p3785
        $region86: #{tpu_custom_call.1} parent=51 // pred_check_branch
          %3788 = sbr.rel (%p3786) target = $region88
        $region87: #{tpu_custom_call.1} parent=51 // pred_region
          %3789 = vst [vmem:[#allocation2] sm:$0xff] %v3769
          %3790 = vst [vmem:[#allocation2 + $0x8] sm:$0xff] %v3770
          %3791 = vst [vmem:[#allocation2 + $0x10] sm:$0xff] %v3771
          %3792 = vst [vmem:[#allocation2 + $0x18] sm:$0xff] %v3772
          %3793 = vst [vmem:[#allocation2 + $0x20] sm:$0xff] %v3773
          %3794 = vst [vmem:[#allocation2 + $0x28] sm:$0xff] %v3774
          %3795 = vst [vmem:[#allocation2 + $0x30] sm:$0xff] %v3775
          %3796 = vst [vmem:[#allocation2 + $0x38] sm:$0xff] %v3776
          %3797 = vst [vmem:[#allocation2 + $0x40] sm:$0xff] %v3777
          %3798 = vst [vmem:[#allocation2 + $0x48] sm:$0xff] %v3778
          %3799 = vst [vmem:[#allocation2 + $0x50] sm:$0xff] %v3779
          %3800 = vst [vmem:[#allocation2 + $0x58] sm:$0xff] %v3780
          %3801 = vst [vmem:[#allocation2 + $0x60] sm:$0xff] %v3781
          %3802 = vst [vmem:[#allocation2 + $0x68] sm:$0xff] %v3782
          %3803 = vst [vmem:[#allocation2 + $0x70] sm:$0xff] %v3783
          %3804 = vst [vmem:[#allocation2 + $0x78] sm:$0xff] %v3784
        $region88: #{tpu_custom_call.1} parent=51 // pred_fallthru
          _
        %p3805 = scmp.gt.s32.totalorder %s34, 0
        // Predicated region
        $region89: #{tpu_custom_call.1} parent=51 // pred_check
          %p3806 = pneg %p3805
        $region90: #{tpu_custom_call.1} parent=51 // pred_check_branch
          %3808 = sbr.rel (%p3806) target = $region92
        $region91: #{tpu_custom_call.1} parent=51 // pred_region
          %v3809 = vld [vmem:[#allocation2] sm:$0xff]
          %v3810 = vld [vmem:[#allocation2 + $0x8] sm:$0xff]
          %v3811 = vld [vmem:[#allocation2 + $0x10] sm:$0xff]
          %v3812 = vld [vmem:[#allocation2 + $0x18] sm:$0xff]
          %v3813 = vld [vmem:[#allocation2 + $0x20] sm:$0xff]
          %v3814 = vld [vmem:[#allocation2 + $0x28] sm:$0xff]
          %v3815 = vld [vmem:[#allocation2 + $0x30] sm:$0xff]
          %v3816 = vld [vmem:[#allocation2 + $0x38] sm:$0xff]
          %v3817 = vld [vmem:[#allocation2 + $0x40] sm:$0xff]
          %v3818 = vld [vmem:[#allocation2 + $0x48] sm:$0xff]
          %v3819 = vld [vmem:[#allocation2 + $0x50] sm:$0xff]
          %v3820 = vld [vmem:[#allocation2 + $0x58] sm:$0xff]
          %v3821 = vld [vmem:[#allocation2 + $0x60] sm:$0xff]
          %v3822 = vld [vmem:[#allocation2 + $0x68] sm:$0xff]
          %v3823 = vld [vmem:[#allocation2 + $0x70] sm:$0xff]
          %v3824 = vld [vmem:[#allocation2 + $0x78] sm:$0xff]
          %v3825 = vadd.f32 %v3809, %v3769
          %v3826 = vadd.f32 %v3810, %v3770
          %v3827 = vadd.f32 %v3811, %v3771
          %v3828 = vadd.f32 %v3812, %v3772
          %v3829 = vadd.f32 %v3813, %v3773
          %v3830 = vadd.f32 %v3814, %v3774
          %v3831 = vadd.f32 %v3815, %v3775
          %v3832 = vadd.f32 %v3816, %v3776
          %v3833 = vadd.f32 %v3817, %v3777
          %v3834 = vadd.f32 %v3818, %v3778
          %v3835 = vadd.f32 %v3819, %v3779
          %v3836 = vadd.f32 %v3820, %v3780
          %v3837 = vadd.f32 %v3821, %v3781
          %v3838 = vadd.f32 %v3822, %v3782
          %v3839 = vadd.f32 %v3823, %v3783
          %v3840 = vadd.f32 %v3824, %v3784
          %3841 = vst [vmem:[#allocation2] sm:$0xff] %v3825
          %3842 = vst [vmem:[#allocation2 + $0x8] sm:$0xff] %v3826
          %3843 = vst [vmem:[#allocation2 + $0x10] sm:$0xff] %v3827
          %3844 = vst [vmem:[#allocation2 + $0x18] sm:$0xff] %v3828
          %3845 = vst [vmem:[#allocation2 + $0x20] sm:$0xff] %v3829
          %3846 = vst [vmem:[#allocation2 + $0x28] sm:$0xff] %v3830
          %3847 = vst [vmem:[#allocation2 + $0x30] sm:$0xff] %v3831
          %3848 = vst [vmem:[#allocation2 + $0x38] sm:$0xff] %v3832
          %3849 = vst [vmem:[#allocation2 + $0x40] sm:$0xff] %v3833
          %3850 = vst [vmem:[#allocation2 + $0x48] sm:$0xff] %v3834
          %3851 = vst [vmem:[#allocation2 + $0x50] sm:$0xff] %v3835
          %3852 = vst [vmem:[#allocation2 + $0x58] sm:$0xff] %v3836
          %3853 = vst [vmem:[#allocation2 + $0x60] sm:$0xff] %v3837
          %3854 = vst [vmem:[#allocation2 + $0x68] sm:$0xff] %v3838
          %3855 = vst [vmem:[#allocation2 + $0x70] sm:$0xff] %v3839
          %3856 = vst [vmem:[#allocation2 + $0x78] sm:$0xff] %v3840
        $region92: #{tpu_custom_call.1} parent=51 // pred_fallthru
          _
        %p3857 = scmp.eq.s32.totalorder %s34, 1
        // Predicated region
        $region93: #{tpu_custom_call.1} parent=51 // pred_check
          %p3858 = pneg %p3857
        $region94: #{tpu_custom_call.1} parent=51 // pred_check_branch
          %3860 = sbr.rel (%p3858) target = $region96
        $region95: #{tpu_custom_call.1} parent=51 // pred_region
          %v3861 = vld [vmem:[#allocation2] sm:$0xff]
          %v3862 = vld [vmem:[#allocation2 + $0x8] sm:$0xff]
          %v3863 = vld [vmem:[#allocation2 + $0x10] sm:$0xff]
          %v3864 = vld [vmem:[#allocation2 + $0x18] sm:$0xff]
          %v3865 = vld [vmem:[#allocation2 + $0x20] sm:$0xff]
          %v3866 = vld [vmem:[#allocation2 + $0x28] sm:$0xff]
          %v3867 = vld [vmem:[#allocation2 + $0x30] sm:$0xff]
          %v3868 = vld [vmem:[#allocation2 + $0x38] sm:$0xff]
          %v3869 = vld [vmem:[#allocation2 + $0x40] sm:$0xff]
          %v3870 = vld [vmem:[#allocation2 + $0x48] sm:$0xff]
          %v3871 = vld [vmem:[#allocation2 + $0x50] sm:$0xff]
          %v3872 = vld [vmem:[#allocation2 + $0x58] sm:$0xff]
          %v3873 = vld [vmem:[#allocation2 + $0x60] sm:$0xff]
          %v3874 = vld [vmem:[#allocation2 + $0x68] sm:$0xff]
          %v3875 = vld [vmem:[#allocation2 + $0x70] sm:$0xff]
          %v3876 = vld [vmem:[#allocation2 + $0x78] sm:$0xff]
          %v3877 = vld [vmem:[#allocation14] sm:$0xff]
          %v3878 = vld [vmem:[#allocation14 + $0x8] sm:$0xff]
          %v3881 = vlaneseq
          %v3882 = vshrl.u32 %v3881, 7
          %v3883 = vsub.s32 0, %v3882
          %v3884 = vrot.slane %v3877, %v3883
          %v3885 = vlaneseq
          %v3886 = vshrl.u32 %v3885, 7
          %v3887 = vsub.s32 1, %v3886
          %v3888 = vrot.slane %v3877, %v3887
          %v3889 = vlaneseq
          %v3890 = vshrl.u32 %v3889, 7
          %v3891 = vsub.s32 2, %v3890
          %v3892 = vrot.slane %v3877, %v3891
          %v3893 = vlaneseq
          %v3894 = vshrl.u32 %v3893, 7
          %v3895 = vsub.s32 3, %v3894
          %v3896 = vrot.slane %v3877, %v3895
          %v3897 = vlaneseq
          %v3898 = vshrl.u32 %v3897, 7
          %v3899 = vsub.s32 4, %v3898
          %v3900 = vrot.slane %v3877, %v3899
          %v3901 = vlaneseq
          %v3902 = vshrl.u32 %v3901, 7
          %v3903 = vsub.s32 5, %v3902
          %v3904 = vrot.slane %v3877, %v3903
          %v3905 = vlaneseq
          %v3906 = vshrl.u32 %v3905, 7
          %v3907 = vsub.s32 6, %v3906
          %v3908 = vrot.slane %v3877, %v3907
          %v3909 = vlaneseq
          %v3910 = vshrl.u32 %v3909, 7
          %v3911 = vsub.s32 7, %v3910
          %v3912 = vrot.slane %v3877, %v3911
          %v3913 = vlaneseq
          %v3914 = vshrl.u32 %v3913, 7
          %v3915 = vsub.s32 0, %v3914
          %v3916 = vrot.slane %v3878, %v3915
          %v3917 = vlaneseq
          %v3918 = vshrl.u32 %v3917, 7
          %v3919 = vsub.s32 1, %v3918
          %v3920 = vrot.slane %v3878, %v3919
          %v3921 = vlaneseq
          %v3922 = vshrl.u32 %v3921, 7
          %v3923 = vsub.s32 2, %v3922
          %v3924 = vrot.slane %v3878, %v3923
          %v3925 = vlaneseq
          %v3926 = vshrl.u32 %v3925, 7
          %v3927 = vsub.s32 3, %v3926
          %v3928 = vrot.slane %v3878, %v3927
          %v3929 = vlaneseq
          %v3930 = vshrl.u32 %v3929, 7
          %v3931 = vsub.s32 4, %v3930
          %v3932 = vrot.slane %v3878, %v3931
          %v3933 = vlaneseq
          %v3934 = vshrl.u32 %v3933, 7
          %v3935 = vsub.s32 5, %v3934
          %v3936 = vrot.slane %v3878, %v3935
          %v3937 = vlaneseq
          %v3938 = vshrl.u32 %v3937, 7
          %v3939 = vsub.s32 6, %v3938
          %v3940 = vrot.slane %v3878, %v3939
          %v3941 = vlaneseq
          %v3942 = vshrl.u32 %v3941, 7
          %v3943 = vsub.s32 7, %v3942
          %v3944 = vrot.slane %v3878, %v3943
          %v3961 = vadd.f32 %v3861, %v3884
          %v3962 = vadd.f32 %v3862, %v3888
          %v3963 = vadd.f32 %v3863, %v3892
          %v3964 = vadd.f32 %v3864, %v3896
          %v3965 = vadd.f32 %v3865, %v3900
          %v3966 = vadd.f32 %v3866, %v3904
          %v3967 = vadd.f32 %v3867, %v3908
          %v3968 = vadd.f32 %v3868, %v3912
          %v3969 = vadd.f32 %v3869, %v3916
          %v3970 = vadd.f32 %v3870, %v3920
          %v3971 = vadd.f32 %v3871, %v3924
          %v3972 = vadd.f32 %v3872, %v3928
          %v3973 = vadd.f32 %v3873, %v3932
          %v3974 = vadd.f32 %v3874, %v3936
          %v3975 = vadd.f32 %v3875, %v3940
          %v3976 = vadd.f32 %v3876, %v3944
          %v3977 = vpack.c.bf16 %v3961, %v3961
          %v3978 = vpack.c.bf16 %v3962, %v3962
          %v3979 = vpack.c.bf16 %v3963, %v3963
          %v3980 = vpack.c.bf16 %v3964, %v3964
          %v3981 = vpack.c.bf16 %v3965, %v3965
          %v3982 = vpack.c.bf16 %v3966, %v3966
          %v3983 = vpack.c.bf16 %v3967, %v3967
          %v3984 = vpack.c.bf16 %v3968, %v3968
          %v3985 = vpack.c.bf16 %v3969, %v3969
          %v3986 = vpack.c.bf16 %v3970, %v3970
          %v3987 = vpack.c.bf16 %v3971, %v3971
          %v3988 = vpack.c.bf16 %v3972, %v3972
          %v3989 = vpack.c.bf16 %v3973, %v3973
          %v3990 = vpack.c.bf16 %v3974, %v3974
          %v3991 = vpack.c.bf16 %v3975, %v3975
          %v3992 = vpack.c.bf16 %v3976, %v3976
          %v3993 = vld [vmem:[#allocation15] sm:$0xff]
          %v3994 = vld [vmem:[#allocation15 + $0x8] sm:$0xff]
          %v3995 = vld [vmem:[#allocation15 + $0x10] sm:$0xff]
          %v3996 = vld [vmem:[#allocation15 + $0x18] sm:$0xff]
          %v3997 = vld [vmem:[#allocation15 + $0x20] sm:$0xff]
          %v3998 = vld [vmem:[#allocation15 + $0x28] sm:$0xff]
          %v3999 = vld [vmem:[#allocation15 + $0x30] sm:$0xff]
          %v4000 = vld [vmem:[#allocation15 + $0x38] sm:$0xff]
          %v4001 = vld [vmem:[#allocation15 + $0x40] sm:$0xff]
          %v4002 = vld [vmem:[#allocation15 + $0x48] sm:$0xff]
          %v4003 = vld [vmem:[#allocation15 + $0x50] sm:$0xff]
          %v4004 = vld [vmem:[#allocation15 + $0x58] sm:$0xff]
          %v4005 = vld [vmem:[#allocation15 + $0x60] sm:$0xff]
          %v4006 = vld [vmem:[#allocation15 + $0x68] sm:$0xff]
          %v4007 = vld [vmem:[#allocation15 + $0x70] sm:$0xff]
          %v4008 = vld [vmem:[#allocation15 + $0x78] sm:$0xff]
          %v4025 = vunpack.c.l.b16 %v3993
          %v4026 = vunpack.c.h.b16 %v3993
          %v4027 = vunpack.c.l.b16 %v3994
          %v4028 = vunpack.c.h.b16 %v3994
          %v4029 = vunpack.c.l.b16 %v3995
          %v4030 = vunpack.c.h.b16 %v3995
          %v4031 = vunpack.c.l.b16 %v3996
          %v4032 = vunpack.c.h.b16 %v3996
          %v4033 = vunpack.c.l.b16 %v3997
          %v4034 = vunpack.c.h.b16 %v3997
          %v4035 = vunpack.c.l.b16 %v3998
          %v4036 = vunpack.c.h.b16 %v3998
          %v4037 = vunpack.c.l.b16 %v3999
          %v4038 = vunpack.c.h.b16 %v3999
          %v4039 = vunpack.c.l.b16 %v4000
          %v4040 = vunpack.c.h.b16 %v4000
          %v4041 = vunpack.c.l.b16 %v4001
          %v4042 = vunpack.c.h.b16 %v4001
          %v4043 = vunpack.c.l.b16 %v4002
          %v4044 = vunpack.c.h.b16 %v4002
          %v4045 = vunpack.c.l.b16 %v4003
          %v4046 = vunpack.c.h.b16 %v4003
          %v4047 = vunpack.c.l.b16 %v4004
          %v4048 = vunpack.c.h.b16 %v4004
          %v4049 = vunpack.c.l.b16 %v4005
          %v4050 = vunpack.c.h.b16 %v4005
          %v4051 = vunpack.c.l.b16 %v4006
          %v4052 = vunpack.c.h.b16 %v4006
          %v4053 = vunpack.c.l.b16 %v4007
          %v4054 = vunpack.c.h.b16 %v4007
          %v4055 = vunpack.c.l.b16 %v4008
          %v4056 = vunpack.c.h.b16 %v4008
          %v4057 = vpack.c.b16 %v4041, %v4025
          %v4058 = vpack.c.b16 %v4042, %v4026
          %v4059 = vpack.c.b16 %v4043, %v4027
          %v4060 = vpack.c.b16 %v4044, %v4028
          %v4061 = vpack.c.b16 %v4045, %v4029
          %v4062 = vpack.c.b16 %v4046, %v4030
          %v4063 = vpack.c.b16 %v4047, %v4031
          %v4064 = vpack.c.b16 %v4048, %v4032
          %v4065 = vpack.c.b16 %v4049, %v4033
          %v4066 = vpack.c.b16 %v4050, %v4034
          %v4067 = vpack.c.b16 %v4051, %v4035
          %v4068 = vpack.c.b16 %v4052, %v4036
          %v4069 = vpack.c.b16 %v4053, %v4037
          %v4070 = vpack.c.b16 %v4054, %v4038
          %v4071 = vpack.c.b16 %v4055, %v4039
          %v4072 = vpack.c.b16 %v4056, %v4040
          %4089 = vmatprep.subr.bf16.mxu0 %v4058
          %4090 = vmatpush1.bf16.xpose.msra.mxu0 %v4057
          %4091 = vmatprep.subr.bf16.mxu0 0
          %4092 = vmatpush1.bf16.xpose.msra.mxu0 0
          %4093 = vmatprep.subr.bf16.mxu0 0
          %4094 = vmatpush1.bf16.xpose.msra.mxu0 0
          %4095 = vmatprep.subr.bf16.mxu0 0
          %4096 = vmatpush1.bf16.xpose.msra.mxu0 0
          %4097 = vmatprep.subr.bf16.mxu0 0
          %4098 = vmatpush1.bf16.xpose.msra.mxu0 0
          %4099 = vmatprep.subr.bf16.mxu0 0
          %4100 = vmatpush1.bf16.xpose.msra.mxu0 0
          %4101 = vmatprep.subr.bf16.mxu0 0
          %4102 = vmatpush1.bf16.xpose.msra.mxu0 0
          %4103 = vmatprep.subr.bf16.mxu0 0
          %4104 = vmatpush1.bf16.xpose.msra.mxu0 0
          %4105 = vmatprep.subr.bf16.mxu0 0
          %4106 = vmatpush1.bf16.xpose.msra.mxu0 0
          %4107 = vmatprep.subr.bf16.mxu0 0
          %4108 = vmatpush1.bf16.xpose.msra.mxu0 0
          %4109 = vmatprep.subr.bf16.mxu0 0
          %4110 = vmatpush1.bf16.xpose.msra.mxu0 0
          %4111 = vmatprep.subr.bf16.mxu0 0
          %4112 = vmatpush1.bf16.xpose.msra.mxu0 0
          %4113 = vmatprep.subr.bf16.mxu0 0
          %4114 = vmatpush1.bf16.xpose.msra.mxu0 0
          %4115 = vmatprep.subr.bf16.mxu0 0
          %4116 = vmatpush1.bf16.xpose.msra.mxu0 0
          %4117 = vmatprep.subr.bf16.mxu0 0
          %4118 = vmatpush1.bf16.xpose.msra.mxu0 0
          %4119 = vmatprep.subr.bf16.mxu0 0
          %4120 = vmatpush1.bf16.xpose.msra.mxu0 0
          %4121 = vmatprep.mubr.bf16.mxu0 %v3978
          %4122 = vmatmul.mubr.bf16.gmra.mrb[0].mxu0 %v3977
          %v4123 = vpop.f32.mrb[0].mxu0
          %v4124 = vadd.f32 0.0, %v4123
          %v4125 = vpop.f32.mrb[0].mxu0
          %v4126 = vpop.f32.mrb[0].mxu0
          %v4127 = vpop.f32.mrb[0].mxu0
          %4128 = vdwg.mxu0
          %4129 = vmatprep.subr.bf16.mxu0 %v4060
          %4130 = vmatpush1.bf16.xpose.msra.mxu0 %v4059
          %4131 = vmatprep.subr.bf16.mxu0 0
          %4132 = vmatpush1.bf16.xpose.msra.mxu0 0
          %4133 = vmatprep.subr.bf16.mxu0 0
          %4134 = vmatpush1.bf16.xpose.msra.mxu0 0
          %4135 = vmatprep.subr.bf16.mxu0 0
          %4136 = vmatpush1.bf16.xpose.msra.mxu0 0
          %4137 = vmatprep.subr.bf16.mxu0 0
          %4138 = vmatpush1.bf16.xpose.msra.mxu0 0
          %4139 = vmatprep.subr.bf16.mxu0 0
          %4140 = vmatpush1.bf16.xpose.msra.mxu0 0
          %4141 = vmatprep.subr.bf16.mxu0 0
          %4142 = vmatpush1.bf16.xpose.msra.mxu0 0
          %4143 = vmatprep.subr.bf16.mxu0 0
          %4144 = vmatpush1.bf16.xpose.msra.mxu0 0
          %4145 = vmatprep.subr.bf16.mxu0 0
          %4146 = vmatpush1.bf16.xpose.msra.mxu0 0
          %4147 = vmatprep.subr.bf16.mxu0 0
          %4148 = vmatpush1.bf16.xpose.msra.mxu0 0
          %4149 = vmatprep.subr.bf16.mxu0 0
          %4150 = vmatpush1.bf16.xpose.msra.mxu0 0
          %4151 = vmatprep.subr.bf16.mxu0 0
          %4152 = vmatpush1.bf16.xpose.msra.mxu0 0
          %4153 = vmatprep.subr.bf16.mxu0 0
          %4154 = vmatpush1.bf16.xpose.msra.mxu0 0
          %4155 = vmatprep.subr.bf16.mxu0 0
          %4156 = vmatpush1.bf16.xpose.msra.mxu0 0
          %4157 = vmatprep.subr.bf16.mxu0 0
          %4158 = vmatpush1.bf16.xpose.msra.mxu0 0
          %4159 = vmatprep.subr.bf16.mxu0 0
          %4160 = vmatpush1.bf16.xpose.msra.mxu0 0
          %4161 = vmatprep.mubr.bf16.mxu0 %v3980
          %4162 = vmatmul.mubr.bf16.gmra.mrb[0].mxu0 %v3979
          %v4163 = vpop.f32.mrb[0].mxu0
          %v4164 = vadd.f32 %v4124, %v4163
          %v4165 = vpop.f32.mrb[0].mxu0
          %v4166 = vpop.f32.mrb[0].mxu0
          %v4167 = vpop.f32.mrb[0].mxu0
          %4168 = vdwg.mxu0
          %4169 = vmatprep.subr.bf16.mxu0 %v4062
          %4170 = vmatpush1.bf16.xpose.msra.mxu0 %v4061
          %4171 = vmatprep.subr.bf16.mxu0 0
          %4172 = vmatpush1.bf16.xpose.msra.mxu0 0
          %4173 = vmatprep.subr.bf16.mxu0 0
          %4174 = vmatpush1.bf16.xpose.msra.mxu0 0
          %4175 = vmatprep.subr.bf16.mxu0 0
          %4176 = vmatpush1.bf16.xpose.msra.mxu0 0
          %4177 = vmatprep.subr.bf16.mxu0 0
          %4178 = vmatpush1.bf16.xpose.msra.mxu0 0
          %4179 = vmatprep.subr.bf16.mxu0 0
          %4180 = vmatpush1.bf16.xpose.msra.mxu0 0
          %4181 = vmatprep.subr.bf16.mxu0 0
          %4182 = vmatpush1.bf16.xpose.msra.mxu0 0
          %4183 = vmatprep.subr.bf16.mxu0 0
          %4184 = vmatpush1.bf16.xpose.msra.mxu0 0
          %4185 = vmatprep.subr.bf16.mxu0 0
          %4186 = vmatpush1.bf16.xpose.msra.mxu0 0
          %4187 = vmatprep.subr.bf16.mxu0 0
          %4188 = vmatpush1.bf16.xpose.msra.mxu0 0
          %4189 = vmatprep.subr.bf16.mxu0 0
          %4190 = vmatpush1.bf16.xpose.msra.mxu0 0
          %4191 = vmatprep.subr.bf16.mxu0 0
          %4192 = vmatpush1.bf16.xpose.msra.mxu0 0
          %4193 = vmatprep.subr.bf16.mxu0 0
          %4194 = vmatpush1.bf16.xpose.msra.mxu0 0
          %4195 = vmatprep.subr.bf16.mxu0 0
          %4196 = vmatpush1.bf16.xpose.msra.mxu0 0
          %4197 = vmatprep.subr.bf16.mxu0 0
          %4198 = vmatpush1.bf16.xpose.msra.mxu0 0
          %4199 = vmatprep.subr.bf16.mxu0 0
          %4200 = vmatpush1.bf16.xpose.msra.mxu0 0
          %4201 = vmatprep.mubr.bf16.mxu0 %v3982
          %4202 = vmatmul.mubr.bf16.gmra.mrb[0].mxu0 %v3981
          %v4203 = vpop.f32.mrb[0].mxu0
          %v4204 = vadd.f32 %v4164, %v4203
          %v4205 = vpop.f32.mrb[0].mxu0
          %v4206 = vpop.f32.mrb[0].mxu0
          %v4207 = vpop.f32.mrb[0].mxu0
          %4208 = vdwg.mxu0
          %4209 = vmatprep.subr.bf16.mxu0 %v4064
          %4210 = vmatpush1.bf16.xpose.msra.mxu0 %v4063
          %4211 = vmatprep.subr.bf16.mxu0 0
          %4212 = vmatpush1.bf16.xpose.msra.mxu0 0
          %4213 = vmatprep.subr.bf16.mxu0 0
          %4214 = vmatpush1.bf16.xpose.msra.mxu0 0
          %4215 = vmatprep.subr.bf16.mxu0 0
          %4216 = vmatpush1.bf16.xpose.msra.mxu0 0
          %4217 = vmatprep.subr.bf16.mxu0 0
          %4218 = vmatpush1.bf16.xpose.msra.mxu0 0
          %4219 = vmatprep.subr.bf16.mxu0 0
          %4220 = vmatpush1.bf16.xpose.msra.mxu0 0
          %4221 = vmatprep.subr.bf16.mxu0 0
          %4222 = vmatpush1.bf16.xpose.msra.mxu0 0
          %4223 = vmatprep.subr.bf16.mxu0 0
          %4224 = vmatpush1.bf16.xpose.msra.mxu0 0
          %4225 = vmatprep.subr.bf16.mxu0 0
          %4226 = vmatpush1.bf16.xpose.msra.mxu0 0
          %4227 = vmatprep.subr.bf16.mxu0 0
          %4228 = vmatpush1.bf16.xpose.msra.mxu0 0
          %4229 = vmatprep.subr.bf16.mxu0 0
          %4230 = vmatpush1.bf16.xpose.msra.mxu0 0
          %4231 = vmatprep.subr.bf16.mxu0 0
          %4232 = vmatpush1.bf16.xpose.msra.mxu0 0
          %4233 = vmatprep.subr.bf16.mxu0 0
          %4234 = vmatpush1.bf16.xpose.msra.mxu0 0
          %4235 = vmatprep.subr.bf16.mxu0 0
          %4236 = vmatpush1.bf16.xpose.msra.mxu0 0
          %4237 = vmatprep.subr.bf16.mxu0 0
          %4238 = vmatpush1.bf16.xpose.msra.mxu0 0
          %4239 = vmatprep.subr.bf16.mxu0 0
          %4240 = vmatpush1.bf16.xpose.msra.mxu0 0
          %4241 = vmatprep.mubr.bf16.mxu0 %v3984
          %4242 = vmatmul.mubr.bf16.gmra.mrb[0].mxu0 %v3983
          %v4243 = vpop.f32.mrb[0].mxu0
          %v4244 = vadd.f32 %v4204, %v4243
          %v4245 = vpop.f32.mrb[0].mxu0
          %v4246 = vpop.f32.mrb[0].mxu0
          %v4247 = vpop.f32.mrb[0].mxu0
          %4248 = vdwg.mxu0
          %4249 = vmatprep.subr.bf16.mxu0 %v4066
          %4250 = vmatpush1.bf16.xpose.msra.mxu0 %v4065
          %4251 = vmatprep.subr.bf16.mxu0 0
          %4252 = vmatpush1.bf16.xpose.msra.mxu0 0
          %4253 = vmatprep.subr.bf16.mxu0 0
          %4254 = vmatpush1.bf16.xpose.msra.mxu0 0
          %4255 = vmatprep.subr.bf16.mxu0 0
          %4256 = vmatpush1.bf16.xpose.msra.mxu0 0
          %4257 = vmatprep.subr.bf16.mxu0 0
          %4258 = vmatpush1.bf16.xpose.msra.mxu0 0
          %4259 = vmatprep.subr.bf16.mxu0 0
          %4260 = vmatpush1.bf16.xpose.msra.mxu0 0
          %4261 = vmatprep.subr.bf16.mxu0 0
          %4262 = vmatpush1.bf16.xpose.msra.mxu0 0
          %4263 = vmatprep.subr.bf16.mxu0 0
          %4264 = vmatpush1.bf16.xpose.msra.mxu0 0
          %4265 = vmatprep.subr.bf16.mxu0 0
          %4266 = vmatpush1.bf16.xpose.msra.mxu0 0
          %4267 = vmatprep.subr.bf16.mxu0 0
          %4268 = vmatpush1.bf16.xpose.msra.mxu0 0
          %4269 = vmatprep.subr.bf16.mxu0 0
          %4270 = vmatpush1.bf16.xpose.msra.mxu0 0
          %4271 = vmatprep.subr.bf16.mxu0 0
          %4272 = vmatpush1.bf16.xpose.msra.mxu0 0
          %4273 = vmatprep.subr.bf16.mxu0 0
          %4274 = vmatpush1.bf16.xpose.msra.mxu0 0
          %4275 = vmatprep.subr.bf16.mxu0 0
          %4276 = vmatpush1.bf16.xpose.msra.mxu0 0
          %4277 = vmatprep.subr.bf16.mxu0 0
          %4278 = vmatpush1.bf16.xpose.msra.mxu0 0
          %4279 = vmatprep.subr.bf16.mxu0 0
          %4280 = vmatpush1.bf16.xpose.msra.mxu0 0
          %4281 = vmatprep.mubr.bf16.mxu0 %v3986
          %4282 = vmatmul.mubr.bf16.gmra.mrb[0].mxu0 %v3985
          %v4283 = vpop.f32.mrb[0].mxu0
          %v4284 = vadd.f32 %v4244, %v4283
          %v4285 = vpop.f32.mrb[0].mxu0
          %v4286 = vpop.f32.mrb[0].mxu0
          %v4287 = vpop.f32.mrb[0].mxu0
          %4288 = vdwg.mxu0
          %4289 = vmatprep.subr.bf16.mxu0 %v4068
          %4290 = vmatpush1.bf16.xpose.msra.mxu0 %v4067
          %4291 = vmatprep.subr.bf16.mxu0 0
          %4292 = vmatpush1.bf16.xpose.msra.mxu0 0
          %4293 = vmatprep.subr.bf16.mxu0 0
          %4294 = vmatpush1.bf16.xpose.msra.mxu0 0
          %4295 = vmatprep.subr.bf16.mxu0 0
          %4296 = vmatpush1.bf16.xpose.msra.mxu0 0
          %4297 = vmatprep.subr.bf16.mxu0 0
          %4298 = vmatpush1.bf16.xpose.msra.mxu0 0
          %4299 = vmatprep.subr.bf16.mxu0 0
          %4300 = vmatpush1.bf16.xpose.msra.mxu0 0
          %4301 = vmatprep.subr.bf16.mxu0 0
          %4302 = vmatpush1.bf16.xpose.msra.mxu0 0
          %4303 = vmatprep.subr.bf16.mxu0 0
          %4304 = vmatpush1.bf16.xpose.msra.mxu0 0
          %4305 = vmatprep.subr.bf16.mxu0 0
          %4306 = vmatpush1.bf16.xpose.msra.mxu0 0
          %4307 = vmatprep.subr.bf16.mxu0 0
          %4308 = vmatpush1.bf16.xpose.msra.mxu0 0
          %4309 = vmatprep.subr.bf16.mxu0 0
          %4310 = vmatpush1.bf16.xpose.msra.mxu0 0
          %4311 = vmatprep.subr.bf16.mxu0 0
          %4312 = vmatpush1.bf16.xpose.msra.mxu0 0
          %4313 = vmatprep.subr.bf16.mxu0 0
          %4314 = vmatpush1.bf16.xpose.msra.mxu0 0
          %4315 = vmatprep.subr.bf16.mxu0 0
          %4316 = vmatpush1.bf16.xpose.msra.mxu0 0
          %4317 = vmatprep.subr.bf16.mxu0 0
          %4318 = vmatpush1.bf16.xpose.msra.mxu0 0
          %4319 = vmatprep.subr.bf16.mxu0 0
          %4320 = vmatpush1.bf16.xpose.msra.mxu0 0
          %4321 = vmatprep.mubr.bf16.mxu0 %v3988
          %4322 = vmatmul.mubr.bf16.gmra.mrb[0].mxu0 %v3987
          %v4323 = vpop.f32.mrb[0].mxu0
          %v4324 = vadd.f32 %v4284, %v4323
          %v4325 = vpop.f32.mrb[0].mxu0
          %v4326 = vpop.f32.mrb[0].mxu0
          %v4327 = vpop.f32.mrb[0].mxu0
          %4328 = vdwg.mxu0
          %4329 = vmatprep.subr.bf16.mxu0 %v4070
          %4330 = vmatpush1.bf16.xpose.msra.mxu0 %v4069
          %4331 = vmatprep.subr.bf16.mxu0 0
          %4332 = vmatpush1.bf16.xpose.msra.mxu0 0
          %4333 = vmatprep.subr.bf16.mxu0 0
          %4334 = vmatpush1.bf16.xpose.msra.mxu0 0
          %4335 = vmatprep.subr.bf16.mxu0 0
          %4336 = vmatpush1.bf16.xpose.msra.mxu0 0
          %4337 = vmatprep.subr.bf16.mxu0 0
          %4338 = vmatpush1.bf16.xpose.msra.mxu0 0
          %4339 = vmatprep.subr.bf16.mxu0 0
          %4340 = vmatpush1.bf16.xpose.msra.mxu0 0
          %4341 = vmatprep.subr.bf16.mxu0 0
          %4342 = vmatpush1.bf16.xpose.msra.mxu0 0
          %4343 = vmatprep.subr.bf16.mxu0 0
          %4344 = vmatpush1.bf16.xpose.msra.mxu0 0
          %4345 = vmatprep.subr.bf16.mxu0 0
          %4346 = vmatpush1.bf16.xpose.msra.mxu0 0
          %4347 = vmatprep.subr.bf16.mxu0 0
          %4348 = vmatpush1.bf16.xpose.msra.mxu0 0
          %4349 = vmatprep.subr.bf16.mxu0 0
          %4350 = vmatpush1.bf16.xpose.msra.mxu0 0
          %4351 = vmatprep.subr.bf16.mxu0 0
          %4352 = vmatpush1.bf16.xpose.msra.mxu0 0
          %4353 = vmatprep.subr.bf16.mxu0 0
          %4354 = vmatpush1.bf16.xpose.msra.mxu0 0
          %4355 = vmatprep.subr.bf16.mxu0 0
          %4356 = vmatpush1.bf16.xpose.msra.mxu0 0
          %4357 = vmatprep.subr.bf16.mxu0 0
          %4358 = vmatpush1.bf16.xpose.msra.mxu0 0
          %4359 = vmatprep.subr.bf16.mxu0 0
          %4360 = vmatpush1.bf16.xpose.msra.mxu0 0
          %4361 = vmatprep.mubr.bf16.mxu0 %v3990
          %4362 = vmatmul.mubr.bf16.gmra.mrb[0].mxu0 %v3989
          %v4363 = vpop.f32.mrb[0].mxu0
          %v4364 = vadd.f32 %v4324, %v4363
          %v4365 = vpop.f32.mrb[0].mxu0
          %v4366 = vpop.f32.mrb[0].mxu0
          %v4367 = vpop.f32.mrb[0].mxu0
          %4368 = vdwg.mxu0
          %4369 = vmatprep.subr.bf16.mxu0 %v4072
          %4370 = vmatpush1.bf16.xpose.msra.mxu0 %v4071
          %4371 = vmatprep.subr.bf16.mxu0 0
          %4372 = vmatpush1.bf16.xpose.msra.mxu0 0
          %4373 = vmatprep.subr.bf16.mxu0 0
          %4374 = vmatpush1.bf16.xpose.msra.mxu0 0
          %4375 = vmatprep.subr.bf16.mxu0 0
          %4376 = vmatpush1.bf16.xpose.msra.mxu0 0
          %4377 = vmatprep.subr.bf16.mxu0 0
          %4378 = vmatpush1.bf16.xpose.msra.mxu0 0
          %4379 = vmatprep.subr.bf16.mxu0 0
          %4380 = vmatpush1.bf16.xpose.msra.mxu0 0
          %4381 = vmatprep.subr.bf16.mxu0 0
          %4382 = vmatpush1.bf16.xpose.msra.mxu0 0
          %4383 = vmatprep.subr.bf16.mxu0 0
          %4384 = vmatpush1.bf16.xpose.msra.mxu0 0
          %4385 = vmatprep.subr.bf16.mxu0 0
          %4386 = vmatpush1.bf16.xpose.msra.mxu0 0
          %4387 = vmatprep.subr.bf16.mxu0 0
          %4388 = vmatpush1.bf16.xpose.msra.mxu0 0
          %4389 = vmatprep.subr.bf16.mxu0 0
          %4390 = vmatpush1.bf16.xpose.msra.mxu0 0
          %4391 = vmatprep.subr.bf16.mxu0 0
          %4392 = vmatpush1.bf16.xpose.msra.mxu0 0
          %4393 = vmatprep.subr.bf16.mxu0 0
          %4394 = vmatpush1.bf16.xpose.msra.mxu0 0
          %4395 = vmatprep.subr.bf16.mxu0 0
          %4396 = vmatpush1.bf16.xpose.msra.mxu0 0
          %4397 = vmatprep.subr.bf16.mxu0 0
          %4398 = vmatpush1.bf16.xpose.msra.mxu0 0
          %4399 = vmatprep.subr.bf16.mxu0 0
          %4400 = vmatpush1.bf16.xpose.msra.mxu0 0
          %4401 = vmatprep.mubr.bf16.mxu0 %v3992
          %4402 = vmatmul.mubr.bf16.gmra.mrb[0].mxu0 %v3991
          %v4403 = vpop.f32.mrb[0].mxu0
          %v4404 = vadd.f32 %v4364, %v4403
          %v4405 = vpop.f32.mrb[0].mxu0
          %v4406 = vpop.f32.mrb[0].mxu0
          %v4407 = vpop.f32.mrb[0].mxu0
          %4408 = vdwg.mxu0
          %vm4409 = vcmask 130048
          %4410 = vst.msk [vmem:[#allocation17] sm:$0xff] %vm4409, %v4404
        $region96: #{tpu_custom_call.1} parent=51 // pred_fallthru
          _
        // Predicated region
        $region97: #{tpu_custom_call.1} parent=51 // pred_check
          %p4411 = pneg %p264
        $region98: #{tpu_custom_call.1} parent=51 // pred_check_branch
          %4413 = sbr.rel (%p4411) target = $region100
        $region99: #{tpu_custom_call.1} parent=51 // pred_region
          %s4415 = ssub.s32 128, 128
          %4416 = vsyncadd [#allocation5], %s4415
          %s4417 = smul.addr %s33, 128
          %s4418 = scalar_lea.hbm %s8, %s4417
          %s4420 = sshll.u32 [#allocation17], 4
          %s4421 = int_to_ptr.vmem [resolvable:$true] %s4420
          %4423 = dma.vmem_to_hbm [thread:$0]  %s4421, 128, %s4418, [#allocation5]
        $region100: #{tpu_custom_call.1} parent=51 // pred_fallthru
          _
        // Predicated region
        $region101: #{tpu_custom_call.1} parent=51 // pred_check
          %p4424 = pneg %p264
        $region102: #{tpu_custom_call.1} parent=51 // pred_check_branch
          %4426 = sbr.rel (%p4424) target = $region104
        $region103: #{tpu_custom_call.1} parent=51 // pred_region
          %4427 = dma.done [#allocation5], 128
        $region104: #{tpu_custom_call.1} parent=51 // pred_fallthru
          _
      $region52: #{tpu_custom_call.1} parent=5 // pred_fallthru
        _
      %p4428 = scmp.le.s32.totalorder 2, %s24
      // Predicated region
      $region105: #{tpu_custom_call.1} parent=5 // pred_check
        %p4429 = pneg %p4428
      $region106: #{tpu_custom_call.1} parent=5 // pred_check_branch
        %4431 = sbr.rel (%p4429) target = $region108
      $region107: #{tpu_custom_call.1} parent=5 // pred_region
        %s4432 = ssub.s32 %s24, 2
      $region108: #{tpu_custom_call.1} parent=5 // pred_fallthru
        _
    $region6: #{tpu_custom_call.1} parent=1 // loop_footer
      %s28 = sadd.s32 1, %s24
    $region7: #{tpu_custom_call.1} parent=1 // loop_footer_branch
      %23 = sbr.rel target = $region3
    $region8: #{tpu_custom_call.1} parent=1 // loop_exit
      _
    %4433 = vsyncpa [#allocation4], 1
    %s4434 = scalar_lea.sflag [#allocation4], 1
    %4435 = vsyncpa %s4434, 1
    %4436 = vsyncpa [#allocation7], 1
    %s4437 = scalar_lea.sflag [#allocation7], 1
    %4438 = vsyncpa %s4437, 1
    %4439 = vsyncpa [#allocation10], 1
    %s4440 = scalar_lea.sflag [#allocation10], 1
    %4441 = vsyncpa %s4440, 1
    %4442 = vsyncpa [#allocation13], 1
    %4443 = vsyncpa [#allocation16], 1
    %4444 = vsyncpa [#allocation5], 1
    %s4445 = scalar_lea.sflag [#allocation5], 1
    %4446 = vsyncpa %s4445, 1

</llo_original>
